<compile_context>
chip_gen: v7x
topology: tpu7x:2x2x1
jax: 0.10.0
libtpu: 0.0.40
codegen_flags: <defaults>
</compile_context>

<pallas_src>
import functools

import jax
import jax.numpy as jnp
from jax.experimental import pallas as pl
from jax.experimental.pallas import tpu as pltpu

IN_DIM = 784
HID_DIM = 300
OUT_DIM = 10

HID_PAD = 384   # 3 * 128 (lane-aligned hidden width)
OUT_PAD = 128   # lane-dense output width


def _mlp_kernel(x_ref, w1_ref, b1_ref, w2_ref, b2_ref, o_ref):
    # x_ref : (TB, IN_DIM)        bf16
    # w1_ref: (IN_DIM, HID_PAD)   bf16 (cols >= HID_DIM are zero)
    # b1_ref: (1, HID_PAD)        f32  (cols >= HID_DIM are zero)
    # w2_ref: (HID_PAD, OUT_PAD)  bf16 (rows >= HID_DIM and cols >= OUT_DIM are zero)
    # b2_ref: (1, OUT_PAD)        f32  (cols >= OUT_DIM are -1e30 -> built-in lane mask)
    # o_ref : (TB, OUT_PAD)       f32  (only cols < OUT_DIM are meaningful)
    x = x_ref[...]

    # Linear 1 + ReLU: bf16 MXU matmul with f32 accumulation; bias/ReLU in f32.
    h = jnp.dot(x, w1_ref[...], preferred_element_type=jnp.float32) + b1_ref[...]
    h = jnp.maximum(h, 0.0)

    # Linear 2 into a lane-dense (TB, 128) block. Padded output lanes get the
    # -1e30 bias, so they vanish from the log-softmax reduction below.
    logits = jnp.dot(h.astype(jnp.bfloat16), w2_ref[...],
                     preferred_element_type=jnp.float32) + b2_ref[...]

    # Numerically stable log_softmax over the last axis (all f32).
    m = jnp.max(logits, axis=-1, keepdims=True)
    shifted = logits - m
    lse = jnp.log(jnp.sum(jnp.exp(shifted), axis=-1, keepdims=True))
    o_ref[...] = shifted - lse


def prepare_params(w1, b1, w2, b2):
    """One-time padding + dtype prep (call once, reuse across forward calls).

    w1: (IN_DIM, HID_DIM), b1: (HID_DIM,), w2: (HID_DIM, OUT_DIM), b2: (OUT_DIM,).
    """
    w1_p = jnp.pad(w1, ((0, 0), (0, HID_PAD - HID_DIM))).astype(jnp.bfloat16)
    b1_p = jnp.pad(b1.reshape(1, HID_DIM),
                   ((0, 0), (0, HID_PAD - HID_DIM))).astype(jnp.float32)
    w2_p = jnp.pad(w2, ((0, HID_PAD - HID_DIM),
                        (0, OUT_PAD - OUT_DIM))).astype(jnp.bfloat16)
    # Fold the padded-lane mask into the bias: padded w2 columns are zero, so
    # padded-lane logits become exactly -1e30 (exp underflows to 0 in log-softmax).
    b2_p = jnp.pad(b2.reshape(1, OUT_DIM),
                   ((0, 0), (0, OUT_PAD - OUT_DIM)),
                   constant_values=-1e30).astype(jnp.float32)
    return w1_p, b1_p, w2_p, b2_p


@functools.partial(jax.jit, static_argnames=("tb",))
def mlp_forward_padded(x, w1_p, b1_p, w2_p, b2_p, tb=512):
    """x: (B, IN_DIM) f32; padded params from prepare_params()."""
    B = x.shape[0]
    n_steps = pl.cdiv(B, tb)
    padded_B = n_steps * tb

    # bf16 MXU operand + pad batch so every grid step is a full, unmasked tile.
    x_p = x.astype(jnp.bfloat16)
    if padded_B != B:
        x_p = jnp.pad(x_p, ((0, padded_B - B), (0, 0)))

    cost = pl.CostEstimate(
        flops=2 * padded_B * (IN_DIM * HID_PAD + HID_PAD * OUT_PAD),
        transcendentals=padded_B * OUT_PAD,
        bytes_accessed=(padded_B * IN_DIM * 2            # x (bf16)
                        + padded_B * OUT_PAD * 4         # out (f32)
                        + IN_DIM * HID_PAD * 2           # w1 (bf16)
                        + HID_PAD * OUT_PAD * 2          # w2 (bf16)
                        + (HID_PAD + OUT_PAD) * 4),      # biases (f32)
    )

    out = pl.pallas_call(
        _mlp_kernel,
        out_shape=jax.ShapeDtypeStruct((padded_B, OUT_PAD), jnp.float32),
        grid_spec=pltpu.PrefetchScalarGridSpec(
            num_scalar_prefetch=0,
            grid=(n_steps,),
            in_specs=[
                pl.BlockSpec((tb, IN_DIM), lambda i: (i, 0)),
                pl.BlockSpec((IN_DIM, HID_PAD), lambda i: (0, 0)),
                pl.BlockSpec((1, HID_PAD), lambda i: (0, 0)),
                pl.BlockSpec((HID_PAD, OUT_PAD), lambda i: (0, 0)),
                pl.BlockSpec((1, OUT_PAD), lambda i: (0, 0)),
            ],
            out_specs=pl.BlockSpec((tb, OUT_PAD), lambda i: (i, 0)),
        ),
        compiler_params=pltpu.CompilerParams(
            dimension_semantics=("parallel",),
        ),
        cost_estimate=cost,
    )(x_p, w1_p, b1_p, w2_p, b2_p)

    return out[:B, :OUT_DIM]


def mlp_forward(x, w1, b1, w2, b2, tb=512):
    """Convenience wrapper: pads params per call. Prefer prepare_params() + mlp_forward_padded()."""
    return mlp_forward_padded(x, *prepare_params(w1, b1, w2, b2), tb=tb)


def init_params(key):
    """Deterministic init mimicking nn.Linear's U(-1/sqrt(fan_in), 1/sqrt(fan_in))."""
    k1, k2, k3, k4 = jax.random.split(key, 4)
    bound1 = 1.0 / (IN_DIM ** 0.5)
    bound2 = 1.0 / (HID_DIM ** 0.5)
    # Stored as (in_features, out_features) == PyTorch weight.T
    w1 = jax.random.uniform(k1, (IN_DIM, HID_DIM), jnp.float32, -bound1, bound1)
    b1 = jax.random.uniform(k2, (HID_DIM,), jnp.float32, -bound1, bound1)
    w2 = jax.random.uniform(k3, (HID_DIM, OUT_DIM), jnp.float32, -bound2, bound2)
    b2 = jax.random.uniform(k4, (OUT_DIM,), jnp.float32, -bound2, bound2)
    return w1, b1, w2, b2


def mlp_reference(x, w1, b1, w2, b2):
    h = jnp.maximum(x @ w1 + b1, 0.0)
    logits = h @ w2 + b2
    return jax.nn.log_softmax(logits, axis=-1)


if __name__ == "__main__":
    key = jax.random.PRNGKey(0)
    kx, kp = jax.random.split(key)

    B = 16  # small batch; wrapper pads to one full batch tile
    x = jax.random.normal(kx, (B, IN_DIM), jnp.float32)
    w1, b1, w2, b2 = init_params(kp)

    # One-time param prep (padding + bf16 cast), then the jitted forward.
    params_p = prepare_params(w1, b1, w2, b2)
    out = mlp_forward_padded(x, *params_p)
    out = jax.block_until_ready(out)

    # Sanity check against a pure-JAX f32 reference (tolerance loosened for bf16 MXU operands).
    ref = jax.block_until_ready(mlp_reference(x, w1, b1, w2, b2))
    assert out.shape == (B, OUT_DIM)
    assert jnp.allclose(out, ref, atol=2e-2, rtol=2e-2), "mismatch vs reference"
    # log_softmax rows should sum (in prob space) to ~1 (f32 epilogue keeps this tight).
    assert jnp.allclose(jnp.sum(jnp.exp(out), axis=-1), 1.0, atol=1e-4)

    print("KERNEL_OK")
</pallas_src>

<mosaic_0001>
module attributes {stable_mosaic.version = 11 : i64} {
  func.func @_mlp_kernel(%arg0: i32, %arg1: memref<512x784xbf16, #tpu.memory_space<vmem>>, %arg2: memref<784x384xbf16, #tpu.memory_space<vmem>>, %arg3: memref<1x384xf32, #tpu.memory_space<vmem>>, %arg4: memref<384x128xbf16, #tpu.memory_space<vmem>>, %arg5: memref<1x128xf32, #tpu.memory_space<vmem>>, %arg6: memref<512x128xf32, #tpu.memory_space<vmem>>) attributes {dimension_semantics = [#tpu.dimension_semantics<parallel>], iteration_bounds = array<i64: 1>, scalar_prefetch = 0 : i64, scratch_operands = 0 : i64, tpu.core_type = #tpu.core_type<tc>, window_params = [{transform_indices = @transform_0, window_bounds = array<i64: 512, 784>}, {pipeline_mode = #tpu.pipeline_mode<synchronous>, transform_indices = @transform_1, window_bounds = array<i64: 784, 384>}, {pipeline_mode = #tpu.pipeline_mode<synchronous>, transform_indices = @transform_2, window_bounds = array<i64: 1, 384>}, {pipeline_mode = #tpu.pipeline_mode<synchronous>, transform_indices = @transform_3, window_bounds = array<i64: 384, 128>}, {pipeline_mode = #tpu.pipeline_mode<synchronous>, transform_indices = @transform_4, window_bounds = array<i64: 1, 128>}, {transform_indices = @transform_5, window_bounds = array<i64: 512, 128>}]} {
    %c0 = arith.constant 0 : index
    %c0_0 = arith.constant 0 : index
    %0 = vector.load %arg1[%c0, %c0_0] : memref<512x784xbf16, #tpu.memory_space<vmem>>, vector<512x784xbf16>
    %c0_1 = arith.constant 0 : index
    %c0_2 = arith.constant 0 : index
    %1 = vector.load %arg2[%c0_1, %c0_2] : memref<784x384xbf16, #tpu.memory_space<vmem>>, vector<784x384xbf16>
    %cst = arith.constant dense<0.000000e+00> : vector<512x384xf32>
    %2 = tpu.matmul %0, %1, %cst {dimension_numbers = #tpu.dot_dimension_numbers<[1], [0], [0], [1], [0, 0, 1, 1], [], []>} : vector<512x784xbf16>, vector<784x384xbf16>, vector<512x384xf32> -> vector<512x384xf32>
    %c0_3 = arith.constant 0 : index
    %c0_4 = arith.constant 0 : index
    %3 = vector.load %arg3[%c0_3, %c0_4] : memref<1x384xf32, #tpu.memory_space<vmem>>, vector<1x384xf32>
    %4 = vector.broadcast %3 : vector<1x384xf32> to vector<512x384xf32>
    %5 = arith.addf %2, %4 : vector<512x384xf32>
    %cst_5 = arith.constant 0.000000e+00 : f32
    %6 = vector.broadcast %cst_5 : f32 to vector<512x384xf32>
    %7 = arith.maximumf %5, %6 : vector<512x384xf32>
    %8 = arith.truncf %7 : vector<512x384xf32> to vector<512x384xbf16>
    %c0_6 = arith.constant 0 : index
    %c0_7 = arith.constant 0 : index
    %9 = vector.load %arg4[%c0_6, %c0_7] : memref<384x128xbf16, #tpu.memory_space<vmem>>, vector<384x128xbf16>
    %cst_8 = arith.constant dense<0.000000e+00> : vector<512x128xf32>
    %10 = tpu.matmul %8, %9, %cst_8 {dimension_numbers = #tpu.dot_dimension_numbers<[1], [0], [0], [1], [0, 0, 1, 1], [], []>} : vector<512x384xbf16>, vector<384x128xbf16>, vector<512x128xf32> -> vector<512x128xf32>
    %c0_9 = arith.constant 0 : index
    %c0_10 = arith.constant 0 : index
    %11 = vector.load %arg5[%c0_9, %c0_10] : memref<1x128xf32, #tpu.memory_space<vmem>>, vector<1x128xf32>
    %12 = vector.broadcast %11 : vector<1x128xf32> to vector<512x128xf32>
    %13 = arith.addf %10, %12 : vector<512x128xf32>
    %cst_11 = arith.constant dense<0xFF800000> : vector<512xf32>
    %14 = vector.multi_reduction <maximumf>, %13, %cst_11 [1] : vector<512x128xf32> to vector<512xf32>
    %15 = vector.shape_cast %14 : vector<512xf32> to vector<512x1xf32>
    %16 = vector.broadcast %15 : vector<512x1xf32> to vector<512x128xf32>
    %17 = arith.subf %13, %16 : vector<512x128xf32>
    %18 = math.exp %17 : vector<512x128xf32>
    %cst_12 = arith.constant dense<0.000000e+00> : vector<512xf32>
    %19 = vector.multi_reduction <add>, %18, %cst_12 [1] : vector<512x128xf32> to vector<512xf32>
    %20 = vector.shape_cast %19 : vector<512xf32> to vector<512x1xf32>
    %21 = math.log %20 : vector<512x1xf32>
    %22 = vector.broadcast %21 : vector<512x1xf32> to vector<512x128xf32>
    %23 = arith.subf %17, %22 : vector<512x128xf32>
    %c0_13 = arith.constant 0 : index
    %c0_14 = arith.constant 0 : index
    %24 = vector.load %arg6[%c0_13, %c0_14] : memref<512x128xf32, #tpu.memory_space<vmem>>, vector<512x128xf32>
    tpu.vector_store %arg6[%c0_13, %c0_14], %23 {strides = array<i32>} : memref<512x128xf32, #tpu.memory_space<vmem>>, vector<512x128xf32>,
    return
  }
  func.func @transform_0(%arg0: i32) -> (i32, i32) {
    %c0_i32 = arith.constant 0 : i32
    %c0_i32_0 = arith.constant 0 : i32
    return %arg0, %c0_i32 : i32, i32
  }
  func.func @transform_1(%arg0: i32) -> (i32, i32) {
    %c0_i32 = arith.constant 0 : i32
    %c0_i32_0 = arith.constant 0 : i32
    %c0_i32_1 = arith.constant 0 : i32
    return %c0_i32, %c0_i32_0 : i32, i32
  }
  func.func @transform_2(%arg0: i32) -> (i32, i32) {
    %c0_i32 = arith.constant 0 : i32
    %c0_i32_0 = arith.constant 0 : i32
    %c0_i32_1 = arith.constant 0 : i32
    return %c0_i32, %c0_i32_0 : i32, i32
  }
  func.func @transform_3(%arg0: i32) -> (i32, i32) {
    %c0_i32 = arith.constant 0 : i32
    %c0_i32_0 = arith.constant 0 : i32
    %c0_i32_1 = arith.constant 0 : i32
    return %c0_i32, %c0_i32_0 : i32, i32
  }
  func.func @transform_4(%arg0: i32) -> (i32, i32) {
    %c0_i32 = arith.constant 0 : i32
    %c0_i32_0 = arith.constant 0 : i32
    %c0_i32_1 = arith.constant 0 : i32
    return %c0_i32, %c0_i32_0 : i32, i32
  }
  func.func @transform_5(%arg0: i32) -> (i32, i32) {
    %c0_i32 = arith.constant 0 : i32
    %c0_i32_0 = arith.constant 0 : i32
    return %arg0, %c0_i32 : i32, i32
  }
}

</mosaic_0001>

<llo_original>
// kernel: mlp_forward_padded.1
$region0: #{mlp_forward_padded.1}
  #allocation0 [shape = 'u32[]', space=smem, size = 0x4, offset = 0x4, fixed_abs, tag = 'smem constant byte address 0x4 - core index']
  #allocation1 [shape = 'u32[144,128]{1,0:T(1,128)}', space=vmem, size = 0x12000, scoped, tag = 'internal scratch']
  %s0 = inlined_call_operand.vmem [shape: bf16[512,784], index: 0, kind: input, shape index: {}]
  %s1 = inlined_call_operand.vmem [shape: bf16[784,384], index: 1, kind: input, shape index: {}]
  %s2 = inlined_call_operand.vmem [shape: f32[1,384], index: 2, kind: input, shape index: {}]
  %s3 = inlined_call_operand.vmem [shape: bf16[384,128], index: 3, kind: input, shape index: {}]
  %s4 = inlined_call_operand.vmem [shape: f32[1,128], index: 4, kind: input, shape index: {}]
  %s5 = inlined_call_operand.vmem [shape: f32[512,128], index: 5, kind: output, shape index: {}]
  %s6 = sld [smem:[#allocation0]]
  $region30: #{mlp_forward_padded.1} parent=0
    _
  %s8 = ssub.s32 1, %s6
  %s9 = scalar_select 0, %s8, %s6
  // Predicated region
  $region2: #{mlp_forward_padded.1} parent=0 // pred_check
    _
  $region3: #{mlp_forward_padded.1} parent=0 // pred_check_branch
    %11 = sbr.rel (0) target = $region5
  $region4: #{mlp_forward_padded.1} parent=0 // pred_region
    _
  $region5: #{mlp_forward_padded.1} parent=0 // pred_fallthru
    _
  // Predicated region
  $region6: #{mlp_forward_padded.1} parent=0 // pred_check
    _
  $region7: #{mlp_forward_padded.1} parent=0 // pred_check_branch
    %13 = sbr.rel (0) target = $region9
  $region8: #{mlp_forward_padded.1} parent=0 // pred_region
    _
  $region9: #{mlp_forward_padded.1} parent=0 // pred_fallthru
    _
  // Predicated region
  $region10: #{mlp_forward_padded.1} parent=0 // pred_check
    _
  $region11: #{mlp_forward_padded.1} parent=0 // pred_check_branch
    %15 = sbr.rel (0) target = $region13
  $region12: #{mlp_forward_padded.1} parent=0 // pred_region
    _
  $region13: #{mlp_forward_padded.1} parent=0 // pred_fallthru
    _
  // Predicated region
  $region14: #{mlp_forward_padded.1} parent=0 // pred_check
    _
  $region15: #{mlp_forward_padded.1} parent=0 // pred_check_branch
    %17 = sbr.rel (0) target = $region17
  $region16: #{mlp_forward_padded.1} parent=0 // pred_region
    _
  $region17: #{mlp_forward_padded.1} parent=0 // pred_fallthru
    _
  // Predicated region
  $region18: #{mlp_forward_padded.1} parent=0 // pred_check
    _
  $region19: #{mlp_forward_padded.1} parent=0 // pred_check_branch
    %19 = sbr.rel (0) target = $region21
  $region20: #{mlp_forward_padded.1} parent=0 // pred_region
    _
  $region21: #{mlp_forward_padded.1} parent=0 // pred_fallthru
    _
  %v21 = vld [vmem:[%s0] sm:$0xff]
  %v22 = vld [vmem:[%s0 + $0x8] sm:$0xff]
  %v23 = vld [vmem:[%s0 + $0x10] sm:$0xff]
  %v24 = vld [vmem:[%s0 + $0x18] sm:$0xf]
  %v25 = vld [vmem:[%s0 + $0x1c] sm:$0xff]
  %v26 = vld [vmem:[%s0 + $0x24] sm:$0xff]
  %v27 = vld [vmem:[%s0 + $0x2c] sm:$0xff]
  %v28 = vld [vmem:[%s0 + $0x34] sm:$0xf]
  %v29 = vld [vmem:[%s0 + $0x38] sm:$0xff]
  %v30 = vld [vmem:[%s0 + $0x40] sm:$0xff]
  %v31 = vld [vmem:[%s0 + $0x48] sm:$0xff]
  %v32 = vld [vmem:[%s0 + $0x50] sm:$0xf]
  %v33 = vld [vmem:[%s0 + $0x54] sm:$0xff]
  %v34 = vld [vmem:[%s0 + $0x5c] sm:$0xff]
  %v35 = vld [vmem:[%s0 + $0x64] sm:$0xff]
  %v36 = vld [vmem:[%s0 + $0x6c] sm:$0xf]
  %v37 = vld [vmem:[%s0 + $0x70] sm:$0xff]
  %v38 = vld [vmem:[%s0 + $0x78] sm:$0xff]
  %v39 = vld [vmem:[%s0 + $0x80] sm:$0xff]
  %v40 = vld [vmem:[%s0 + $0x88] sm:$0xf]
  %v41 = vld [vmem:[%s0 + $0x8c] sm:$0xff]
  %v42 = vld [vmem:[%s0 + $0x94] sm:$0xff]
  %v43 = vld [vmem:[%s0 + $0x9c] sm:$0xff]
  %v44 = vld [vmem:[%s0 + $0xa4] sm:$0xf]
  %v45 = vld [vmem:[%s0 + $0xa8] sm:$0xff]
  %v46 = vld [vmem:[%s0 + $0xb0] sm:$0xff]
  %v47 = vld [vmem:[%s0 + $0xb8] sm:$0xff]
  %v48 = vld [vmem:[%s0 + $0xc0] sm:$0xf]
  %v49 = vld [vmem:[%s0 + $0xc4] sm:$0xff]
  %v50 = vld [vmem:[%s0 + $0xcc] sm:$0xff]
  %v51 = vld [vmem:[%s0 + $0xd4] sm:$0xff]
  %v52 = vld [vmem:[%s0 + $0xdc] sm:$0xf]
  %v53 = vld [vmem:[%s0 + $0xe0] sm:$0xff]
  %v54 = vld [vmem:[%s0 + $0xe8] sm:$0xff]
  %v55 = vld [vmem:[%s0 + $0xf0] sm:$0xff]
  %v56 = vld [vmem:[%s0 + $0xf8] sm:$0xf]
  %v57 = vld [vmem:[%s0 + $0xfc] sm:$0xff]
  %v58 = vld [vmem:[%s0 + $0x104] sm:$0xff]
  %v59 = vld [vmem:[%s0 + $0x10c] sm:$0xff]
  %v60 = vld [vmem:[%s0 + $0x114] sm:$0xf]
  %v61 = vld [vmem:[%s0 + $0x118] sm:$0xff]
  %v62 = vld [vmem:[%s0 + $0x120] sm:$0xff]
  %v63 = vld [vmem:[%s0 + $0x128] sm:$0xff]
  %v64 = vld [vmem:[%s0 + $0x130] sm:$0xf]
  %v65 = vld [vmem:[%s0 + $0x134] sm:$0xff]
  %v66 = vld [vmem:[%s0 + $0x13c] sm:$0xff]
  %v67 = vld [vmem:[%s0 + $0x144] sm:$0xff]
  %v68 = vld [vmem:[%s0 + $0x14c] sm:$0xf]
  %v69 = vld [vmem:[%s0 + $0x150] sm:$0xff]
  %v70 = vld [vmem:[%s0 + $0x158] sm:$0xff]
  %v71 = vld [vmem:[%s0 + $0x160] sm:$0xff]
  %v72 = vld [vmem:[%s0 + $0x168] sm:$0xf]
  %v73 = vld [vmem:[%s0 + $0x16c] sm:$0xff]
  %v74 = vld [vmem:[%s0 + $0x174] sm:$0xff]
  %v75 = vld [vmem:[%s0 + $0x17c] sm:$0xff]
  %v76 = vld [vmem:[%s0 + $0x184] sm:$0xf]
  %v77 = vld [vmem:[%s0 + $0x188] sm:$0xff]
  %v78 = vld [vmem:[%s0 + $0x190] sm:$0xff]
  %v79 = vld [vmem:[%s0 + $0x198] sm:$0xff]
  %v80 = vld [vmem:[%s0 + $0x1a0] sm:$0xf]
  %v81 = vld [vmem:[%s0 + $0x1a4] sm:$0xff]
  %v82 = vld [vmem:[%s0 + $0x1ac] sm:$0xff]
  %v83 = vld [vmem:[%s0 + $0x1b4] sm:$0xff]
  %v84 = vld [vmem:[%s0 + $0x1bc] sm:$0xf]
  %v85 = vld [vmem:[%s0 + $0x1c0] sm:$0xff]
  %v86 = vld [vmem:[%s0 + $0x1c8] sm:$0xff]
  %v87 = vld [vmem:[%s0 + $0x1d0] sm:$0xff]
  %v88 = vld [vmem:[%s0 + $0x1d8] sm:$0xf]
  %v89 = vld [vmem:[%s0 + $0x1dc] sm:$0xff]
  %v90 = vld [vmem:[%s0 + $0x1e4] sm:$0xff]
  %v91 = vld [vmem:[%s0 + $0x1ec] sm:$0xff]
  %v92 = vld [vmem:[%s0 + $0x1f4] sm:$0xf]
  %v93 = vld [vmem:[%s0 + $0x1f8] sm:$0xff]
  %v94 = vld [vmem:[%s0 + $0x200] sm:$0xff]
  %v95 = vld [vmem:[%s0 + $0x208] sm:$0xff]
  %v96 = vld [vmem:[%s0 + $0x210] sm:$0xf]
  %v97 = vld [vmem:[%s0 + $0x214] sm:$0xff]
  %v98 = vld [vmem:[%s0 + $0x21c] sm:$0xff]
  %v99 = vld [vmem:[%s0 + $0x224] sm:$0xff]
  %v100 = vld [vmem:[%s0 + $0x22c] sm:$0xf]
  %v101 = vld [vmem:[%s0 + $0x230] sm:$0xff]
  %v102 = vld [vmem:[%s0 + $0x238] sm:$0xff]
  %v103 = vld [vmem:[%s0 + $0x240] sm:$0xff]
  %v104 = vld [vmem:[%s0 + $0x248] sm:$0xf]
  %v105 = vld [vmem:[%s0 + $0x24c] sm:$0xff]
  %v106 = vld [vmem:[%s0 + $0x254] sm:$0xff]
  %v107 = vld [vmem:[%s0 + $0x25c] sm:$0xff]
  %v108 = vld [vmem:[%s0 + $0x264] sm:$0xf]
  %v109 = vld [vmem:[%s0 + $0x268] sm:$0xff]
  %v110 = vld [vmem:[%s0 + $0x270] sm:$0xff]
  %v111 = vld [vmem:[%s0 + $0x278] sm:$0xff]
  %v112 = vld [vmem:[%s0 + $0x280] sm:$0xf]
  %v113 = vld [vmem:[%s0 + $0x284] sm:$0xff]
  %v114 = vld [vmem:[%s0 + $0x28c] sm:$0xff]
  %v115 = vld [vmem:[%s0 + $0x294] sm:$0xff]
  %v116 = vld [vmem:[%s0 + $0x29c] sm:$0xf]
  %v117 = vld [vmem:[%s0 + $0x2a0] sm:$0xff]
  %v118 = vld [vmem:[%s0 + $0x2a8] sm:$0xff]
  %v119 = vld [vmem:[%s0 + $0x2b0] sm:$0xff]
  %v120 = vld [vmem:[%s0 + $0x2b8] sm:$0xf]
  %v121 = vld [vmem:[%s0 + $0x2bc] sm:$0xff]
  %v122 = vld [vmem:[%s0 + $0x2c4] sm:$0xff]
  %v123 = vld [vmem:[%s0 + $0x2cc] sm:$0xff]
  %v124 = vld [vmem:[%s0 + $0x2d4] sm:$0xf]
  %v125 = vld [vmem:[%s0 + $0x2d8] sm:$0xff]
  %v126 = vld [vmem:[%s0 + $0x2e0] sm:$0xff]
  %v127 = vld [vmem:[%s0 + $0x2e8] sm:$0xff]
  %v128 = vld [vmem:[%s0 + $0x2f0] sm:$0xf]
  %v129 = vld [vmem:[%s0 + $0x2f4] sm:$0xff]
  %v130 = vld [vmem:[%s0 + $0x2fc] sm:$0xff]
  %v131 = vld [vmem:[%s0 + $0x304] sm:$0xff]
  %v132 = vld [vmem:[%s0 + $0x30c] sm:$0xf]
  %v133 = vld [vmem:[%s0 + $0x310] sm:$0xff]
  %v134 = vld [vmem:[%s0 + $0x318] sm:$0xff]
  %v135 = vld [vmem:[%s0 + $0x320] sm:$0xff]
  %v136 = vld [vmem:[%s0 + $0x328] sm:$0xf]
  %v137 = vld [vmem:[%s0 + $0x32c] sm:$0xff]
  %v138 = vld [vmem:[%s0 + $0x334] sm:$0xff]
  %v139 = vld [vmem:[%s0 + $0x33c] sm:$0xff]
  %v140 = vld [vmem:[%s0 + $0x344] sm:$0xf]
  %v141 = vld [vmem:[%s0 + $0x348] sm:$0xff]
  %v142 = vld [vmem:[%s0 + $0x350] sm:$0xff]
  %v143 = vld [vmem:[%s0 + $0x358] sm:$0xff]
  %v144 = vld [vmem:[%s0 + $0x360] sm:$0xf]
  %v145 = vld [vmem:[%s0 + $0x364] sm:$0xff]
  %v146 = vld [vmem:[%s0 + $0x36c] sm:$0xff]
  %v147 = vld [vmem:[%s0 + $0x374] sm:$0xff]
  %v148 = vld [vmem:[%s0 + $0x37c] sm:$0xf]
  %v149 = vld [vmem:[%s0 + $0x380] sm:$0xff]
  %v150 = vld [vmem:[%s0 + $0x388] sm:$0xff]
  %v151 = vld [vmem:[%s0 + $0x390] sm:$0xff]
  %v152 = vld [vmem:[%s0 + $0x398] sm:$0xf]
  %v153 = vld [vmem:[%s0 + $0x39c] sm:$0xff]
  %v154 = vld [vmem:[%s0 + $0x3a4] sm:$0xff]
  %v155 = vld [vmem:[%s0 + $0x3ac] sm:$0xff]
  %v156 = vld [vmem:[%s0 + $0x3b4] sm:$0xf]
  %v157 = vld [vmem:[%s0 + $0x3b8] sm:$0xff]
  %v158 = vld [vmem:[%s0 + $0x3c0] sm:$0xff]
  %v159 = vld [vmem:[%s0 + $0x3c8] sm:$0xff]
  %v160 = vld [vmem:[%s0 + $0x3d0] sm:$0xf]
  %v161 = vld [vmem:[%s0 + $0x3d4] sm:$0xff]
  %v162 = vld [vmem:[%s0 + $0x3dc] sm:$0xff]
  %v163 = vld [vmem:[%s0 + $0x3e4] sm:$0xff]
  %v164 = vld [vmem:[%s0 + $0x3ec] sm:$0xf]
  %v165 = vld [vmem:[%s0 + $0x3f0] sm:$0xff]
  %v166 = vld [vmem:[%s0 + $0x3f8] sm:$0xff]
  %v167 = vld [vmem:[%s0 + $0x400] sm:$0xff]
  %v168 = vld [vmem:[%s0 + $0x408] sm:$0xf]
  %v169 = vld [vmem:[%s0 + $0x40c] sm:$0xff]
  %v170 = vld [vmem:[%s0 + $0x414] sm:$0xff]
  %v171 = vld [vmem:[%s0 + $0x41c] sm:$0xff]
  %v172 = vld [vmem:[%s0 + $0x424] sm:$0xf]
  %v173 = vld [vmem:[%s0 + $0x428] sm:$0xff]
  %v174 = vld [vmem:[%s0 + $0x430] sm:$0xff]
  %v175 = vld [vmem:[%s0 + $0x438] sm:$0xff]
  %v176 = vld [vmem:[%s0 + $0x440] sm:$0xf]
  %v177 = vld [vmem:[%s0 + $0x444] sm:$0xff]
  %v178 = vld [vmem:[%s0 + $0x44c] sm:$0xff]
  %v179 = vld [vmem:[%s0 + $0x454] sm:$0xff]
  %v180 = vld [vmem:[%s0 + $0x45c] sm:$0xf]
  %v181 = vld [vmem:[%s0 + $0x460] sm:$0xff]
  %v182 = vld [vmem:[%s0 + $0x468] sm:$0xff]
  %v183 = vld [vmem:[%s0 + $0x470] sm:$0xff]
  %v184 = vld [vmem:[%s0 + $0x478] sm:$0xf]
  %v185 = vld [vmem:[%s0 + $0x47c] sm:$0xff]
  %v186 = vld [vmem:[%s0 + $0x484] sm:$0xff]
  %v187 = vld [vmem:[%s0 + $0x48c] sm:$0xff]
  %v188 = vld [vmem:[%s0 + $0x494] sm:$0xf]
  %v189 = vld [vmem:[%s0 + $0x498] sm:$0xff]
  %v190 = vld [vmem:[%s0 + $0x4a0] sm:$0xff]
  %v191 = vld [vmem:[%s0 + $0x4a8] sm:$0xff]
  %v192 = vld [vmem:[%s0 + $0x4b0] sm:$0xf]
  %v193 = vld [vmem:[%s0 + $0x4b4] sm:$0xff]
  %v194 = vld [vmem:[%s0 + $0x4bc] sm:$0xff]
  %v195 = vld [vmem:[%s0 + $0x4c4] sm:$0xff]
  %v196 = vld [vmem:[%s0 + $0x4cc] sm:$0xf]
  %v197 = vld [vmem:[%s0 + $0x4d0] sm:$0xff]
  %v198 = vld [vmem:[%s0 + $0x4d8] sm:$0xff]
  %v199 = vld [vmem:[%s0 + $0x4e0] sm:$0xff]
  %v200 = vld [vmem:[%s0 + $0x4e8] sm:$0xf]
  %v201 = vld [vmem:[%s0 + $0x4ec] sm:$0xff]
  %v202 = vld [vmem:[%s0 + $0x4f4] sm:$0xff]
  %v203 = vld [vmem:[%s0 + $0x4fc] sm:$0xff]
  %v204 = vld [vmem:[%s0 + $0x504] sm:$0xf]
  %v205 = vld [vmem:[%s0 + $0x508] sm:$0xff]
  %v206 = vld [vmem:[%s0 + $0x510] sm:$0xff]
  %v207 = vld [vmem:[%s0 + $0x518] sm:$0xff]
  %v208 = vld [vmem:[%s0 + $0x520] sm:$0xf]
  %v209 = vld [vmem:[%s0 + $0x524] sm:$0xff]
  %v210 = vld [vmem:[%s0 + $0x52c] sm:$0xff]
  %v211 = vld [vmem:[%s0 + $0x534] sm:$0xff]
  %v212 = vld [vmem:[%s0 + $0x53c] sm:$0xf]
  %v213 = vld [vmem:[%s0 + $0x540] sm:$0xff]
  %v214 = vld [vmem:[%s0 + $0x548] sm:$0xff]
  %v215 = vld [vmem:[%s0 + $0x550] sm:$0xff]
  %v216 = vld [vmem:[%s0 + $0x558] sm:$0xf]
  %v217 = vld [vmem:[%s0 + $0x55c] sm:$0xff]
  %v218 = vld [vmem:[%s0 + $0x564] sm:$0xff]
  %v219 = vld [vmem:[%s0 + $0x56c] sm:$0xff]
  %v220 = vld [vmem:[%s0 + $0x574] sm:$0xf]
  %v221 = vld [vmem:[%s0 + $0x578] sm:$0xff]
  %v222 = vld [vmem:[%s0 + $0x580] sm:$0xff]
  %v223 = vld [vmem:[%s0 + $0x588] sm:$0xff]
  %v224 = vld [vmem:[%s0 + $0x590] sm:$0xf]
  %v225 = vld [vmem:[%s0 + $0x594] sm:$0xff]
  %v226 = vld [vmem:[%s0 + $0x59c] sm:$0xff]
  %v227 = vld [vmem:[%s0 + $0x5a4] sm:$0xff]
  %v228 = vld [vmem:[%s0 + $0x5ac] sm:$0xf]
  %v229 = vld [vmem:[%s0 + $0x5b0] sm:$0xff]
  %v230 = vld [vmem:[%s0 + $0x5b8] sm:$0xff]
  %v231 = vld [vmem:[%s0 + $0x5c0] sm:$0xff]
  %v232 = vld [vmem:[%s0 + $0x5c8] sm:$0xf]
  %v233 = vld [vmem:[%s0 + $0x5cc] sm:$0xff]
  %v234 = vld [vmem:[%s0 + $0x5d4] sm:$0xff]
  %v235 = vld [vmem:[%s0 + $0x5dc] sm:$0xff]
  %v236 = vld [vmem:[%s0 + $0x5e4] sm:$0xf]
  %v237 = vld [vmem:[%s0 + $0x5e8] sm:$0xff]
  %v238 = vld [vmem:[%s0 + $0x5f0] sm:$0xff]
  %v239 = vld [vmem:[%s0 + $0x5f8] sm:$0xff]
  %v240 = vld [vmem:[%s0 + $0x600] sm:$0xf]
  %v241 = vld [vmem:[%s0 + $0x604] sm:$0xff]
  %v242 = vld [vmem:[%s0 + $0x60c] sm:$0xff]
  %v243 = vld [vmem:[%s0 + $0x614] sm:$0xff]
  %v244 = vld [vmem:[%s0 + $0x61c] sm:$0xf]
  %v245 = vld [vmem:[%s0 + $0x620] sm:$0xff]
  %v246 = vld [vmem:[%s0 + $0x628] sm:$0xff]
  %v247 = vld [vmem:[%s0 + $0x630] sm:$0xff]
  %v248 = vld [vmem:[%s0 + $0x638] sm:$0xf]
  %v249 = vld [vmem:[%s0 + $0x63c] sm:$0xff]
  %v250 = vld [vmem:[%s0 + $0x644] sm:$0xff]
  %v251 = vld [vmem:[%s0 + $0x64c] sm:$0xff]
  %v252 = vld [vmem:[%s0 + $0x654] sm:$0xf]
  %v253 = vld [vmem:[%s0 + $0x658] sm:$0xff]
  %v254 = vld [vmem:[%s0 + $0x660] sm:$0xff]
  %v255 = vld [vmem:[%s0 + $0x668] sm:$0xff]
  %v256 = vld [vmem:[%s0 + $0x670] sm:$0xf]
  %v257 = vld [vmem:[%s0 + $0x674] sm:$0xff]
  %v258 = vld [vmem:[%s0 + $0x67c] sm:$0xff]
  %v259 = vld [vmem:[%s0 + $0x684] sm:$0xff]
  %v260 = vld [vmem:[%s0 + $0x68c] sm:$0xf]
  %v261 = vld [vmem:[%s0 + $0x690] sm:$0xff]
  %v262 = vld [vmem:[%s0 + $0x698] sm:$0xff]
  %v263 = vld [vmem:[%s0 + $0x6a0] sm:$0xff]
  %v264 = vld [vmem:[%s0 + $0x6a8] sm:$0xf]
  %v265 = vld [vmem:[%s0 + $0x6ac] sm:$0xff]
  %v266 = vld [vmem:[%s0 + $0x6b4] sm:$0xff]
  %v267 = vld [vmem:[%s0 + $0x6bc] sm:$0xff]
  %v268 = vld [vmem:[%s0 + $0x6c4] sm:$0xf]
  %v269 = vld [vmem:[%s0 + $0x6c8] sm:$0xff]
  %v270 = vld [vmem:[%s0 + $0x6d0] sm:$0xff]
  %v271 = vld [vmem:[%s0 + $0x6d8] sm:$0xff]
  %v272 = vld [vmem:[%s0 + $0x6e0] sm:$0xf]
  %v273 = vld [vmem:[%s0 + $0x6e4] sm:$0xff]
  %v274 = vld [vmem:[%s0 + $0x6ec] sm:$0xff]
  %v275 = vld [vmem:[%s0 + $0x6f4] sm:$0xff]
  %v276 = vld [vmem:[%s0 + $0x6fc] sm:$0xf]
  %v277 = vld [vmem:[%s1] sm:$0xff]
  %v278 = vld [vmem:[%s1 + $0x8] sm:$0xf]
  %v279 = vld [vmem:[%s1 + $0xc] sm:$0xff]
  %v280 = vld [vmem:[%s1 + $0x14] sm:$0xf]
  %v281 = vld [vmem:[%s1 + $0x18] sm:$0xff]
  %v282 = vld [vmem:[%s1 + $0x20] sm:$0xf]
  %v283 = vld [vmem:[%s1 + $0x24] sm:$0xff]
  %v284 = vld [vmem:[%s1 + $0x2c] sm:$0xf]
  %v285 = vld [vmem:[%s1 + $0x30] sm:$0xff]
  %v286 = vld [vmem:[%s1 + $0x38] sm:$0xf]
  %v287 = vld [vmem:[%s1 + $0x3c] sm:$0xff]
  %v288 = vld [vmem:[%s1 + $0x44] sm:$0xf]
  %v289 = vld [vmem:[%s1 + $0x48] sm:$0xff]
  %v290 = vld [vmem:[%s1 + $0x50] sm:$0xf]
  %v291 = vld [vmem:[%s1 + $0x54] sm:$0xff]
  %v292 = vld [vmem:[%s1 + $0x5c] sm:$0xf]
  %v293 = vld [vmem:[%s1 + $0x60] sm:$0xff]
  %v294 = vld [vmem:[%s1 + $0x68] sm:$0xf]
  %v295 = vld [vmem:[%s1 + $0x6c] sm:$0xff]
  %v296 = vld [vmem:[%s1 + $0x74] sm:$0xf]
  %v297 = vld [vmem:[%s1 + $0x78] sm:$0xff]
  %v298 = vld [vmem:[%s1 + $0x80] sm:$0xf]
  %v299 = vld [vmem:[%s1 + $0x84] sm:$0xff]
  %v300 = vld [vmem:[%s1 + $0x8c] sm:$0xf]
  %v301 = vld [vmem:[%s1 + $0x90] sm:$0xff]
  %v302 = vld [vmem:[%s1 + $0x98] sm:$0xf]
  %v303 = vld [vmem:[%s1 + $0x9c] sm:$0xff]
  %v304 = vld [vmem:[%s1 + $0xa4] sm:$0xf]
  %v305 = vld [vmem:[%s1 + $0xa8] sm:$0xff]
  %v306 = vld [vmem:[%s1 + $0xb0] sm:$0xf]
  %v307 = vld [vmem:[%s1 + $0xb4] sm:$0xff]
  %v308 = vld [vmem:[%s1 + $0xbc] sm:$0xf]
  %v309 = vld [vmem:[%s1 + $0xc0] sm:$0xff]
  %v310 = vld [vmem:[%s1 + $0xc8] sm:$0xf]
  %v311 = vld [vmem:[%s1 + $0xcc] sm:$0xff]
  %v312 = vld [vmem:[%s1 + $0xd4] sm:$0xf]
  %v313 = vld [vmem:[%s1 + $0xd8] sm:$0xff]
  %v314 = vld [vmem:[%s1 + $0xe0] sm:$0xf]
  %v315 = vld [vmem:[%s1 + $0xe4] sm:$0xff]
  %v316 = vld [vmem:[%s1 + $0xec] sm:$0xf]
  %v317 = vld [vmem:[%s1 + $0xf0] sm:$0xff]
  %v318 = vld [vmem:[%s1 + $0xf8] sm:$0xf]
  %v319 = vld [vmem:[%s1 + $0xfc] sm:$0xff]
  %v320 = vld [vmem:[%s1 + $0x104] sm:$0xf]
  %v321 = vld [vmem:[%s1 + $0x108] sm:$0xff]
  %v322 = vld [vmem:[%s1 + $0x110] sm:$0xf]
  %v323 = vld [vmem:[%s1 + $0x114] sm:$0xff]
  %v324 = vld [vmem:[%s1 + $0x11c] sm:$0xf]
  %v325 = vld [vmem:[%s1 + $0x120] sm:$0xff]
  %v326 = vld [vmem:[%s1 + $0x128] sm:$0xf]
  %v327 = vld [vmem:[%s1 + $0x12c] sm:$0xff]
  %v328 = vld [vmem:[%s1 + $0x134] sm:$0xf]
  %v329 = vld [vmem:[%s1 + $0x138] sm:$0xff]
  %v330 = vld [vmem:[%s1 + $0x140] sm:$0xf]
  %v331 = vld [vmem:[%s1 + $0x144] sm:$0xff]
  %v332 = vld [vmem:[%s1 + $0x14c] sm:$0xf]
  %v333 = vld [vmem:[%s1 + $0x150] sm:$0xff]
  %v334 = vld [vmem:[%s1 + $0x158] sm:$0xf]
  %v335 = vld [vmem:[%s1 + $0x15c] sm:$0xff]
  %v336 = vld [vmem:[%s1 + $0x164] sm:$0xf]
  %v337 = vld [vmem:[%s1 + $0x168] sm:$0xff]
  %v338 = vld [vmem:[%s1 + $0x170] sm:$0xf]
  %v339 = vld [vmem:[%s1 + $0x174] sm:$0xff]
  %v340 = vld [vmem:[%s1 + $0x17c] sm:$0xf]
  %v341 = vld [vmem:[%s1 + $0x180] sm:$0xff]
  %v342 = vld [vmem:[%s1 + $0x188] sm:$0xf]
  %v343 = vld [vmem:[%s1 + $0x18c] sm:$0xff]
  %v344 = vld [vmem:[%s1 + $0x194] sm:$0xf]
  %v345 = vld [vmem:[%s1 + $0x198] sm:$0xff]
  %v346 = vld [vmem:[%s1 + $0x1a0] sm:$0xf]
  %v347 = vld [vmem:[%s1 + $0x1a4] sm:$0xff]
  %v348 = vld [vmem:[%s1 + $0x1ac] sm:$0xf]
  %v349 = vld [vmem:[%s1 + $0x1b0] sm:$0xff]
  %v350 = vld [vmem:[%s1 + $0x1b8] sm:$0xf]
  %v351 = vld [vmem:[%s1 + $0x1bc] sm:$0xff]
  %v352 = vld [vmem:[%s1 + $0x1c4] sm:$0xf]
  %v353 = vld [vmem:[%s1 + $0x1c8] sm:$0xff]
  %v354 = vld [vmem:[%s1 + $0x1d0] sm:$0xf]
  %v355 = vld [vmem:[%s1 + $0x1d4] sm:$0xff]
  %v356 = vld [vmem:[%s1 + $0x1dc] sm:$0xf]
  %v357 = vld [vmem:[%s1 + $0x1e0] sm:$0xff]
  %v358 = vld [vmem:[%s1 + $0x1e8] sm:$0xf]
  %v359 = vld [vmem:[%s1 + $0x1ec] sm:$0xff]
  %v360 = vld [vmem:[%s1 + $0x1f4] sm:$0xf]
  %v361 = vld [vmem:[%s1 + $0x1f8] sm:$0xff]
  %v362 = vld [vmem:[%s1 + $0x200] sm:$0xf]
  %v363 = vld [vmem:[%s1 + $0x204] sm:$0xff]
  %v364 = vld [vmem:[%s1 + $0x20c] sm:$0xf]
  %v365 = vld [vmem:[%s1 + $0x210] sm:$0xff]
  %v366 = vld [vmem:[%s1 + $0x218] sm:$0xf]
  %v367 = vld [vmem:[%s1 + $0x21c] sm:$0xff]
  %v368 = vld [vmem:[%s1 + $0x224] sm:$0xf]
  %v369 = vld [vmem:[%s1 + $0x228] sm:$0xff]
  %v370 = vld [vmem:[%s1 + $0x230] sm:$0xf]
  %v371 = vld [vmem:[%s1 + $0x234] sm:$0xff]
  %v372 = vld [vmem:[%s1 + $0x23c] sm:$0xf]
  %v373 = vld [vmem:[%s1 + $0x240] sm:$0xff]
  %v374 = vld [vmem:[%s1 + $0x248] sm:$0xf]
  %v375 = vld [vmem:[%s1 + $0x24c] sm:$0xff]
  %v376 = vld [vmem:[%s1 + $0x254] sm:$0xf]
  %v377 = vld [vmem:[%s1 + $0x258] sm:$0xff]
  %v378 = vld [vmem:[%s1 + $0x260] sm:$0xf]
  %v379 = vld [vmem:[%s1 + $0x264] sm:$0xff]
  %v380 = vld [vmem:[%s1 + $0x26c] sm:$0xf]
  %v381 = vld [vmem:[%s1 + $0x270] sm:$0xff]
  %v382 = vld [vmem:[%s1 + $0x278] sm:$0xf]
  %v383 = vld [vmem:[%s1 + $0x27c] sm:$0xff]
  %v384 = vld [vmem:[%s1 + $0x284] sm:$0xf]
  %v385 = vld [vmem:[%s1 + $0x288] sm:$0xff]
  %v386 = vld [vmem:[%s1 + $0x290] sm:$0xf]
  %v387 = vld [vmem:[%s1 + $0x294] sm:$0xff]
  %v388 = vld [vmem:[%s1 + $0x29c] sm:$0xf]
  %v389 = vld [vmem:[%s1 + $0x2a0] sm:$0xff]
  %v390 = vld [vmem:[%s1 + $0x2a8] sm:$0xf]
  %v391 = vld [vmem:[%s1 + $0x2ac] sm:$0xff]
  %v392 = vld [vmem:[%s1 + $0x2b4] sm:$0xf]
  %v393 = vld [vmem:[%s1 + $0x2b8] sm:$0xff]
  %v394 = vld [vmem:[%s1 + $0x2c0] sm:$0xf]
  %v395 = vld [vmem:[%s1 + $0x2c4] sm:$0xff]
  %v396 = vld [vmem:[%s1 + $0x2cc] sm:$0xf]
  %v397 = vld [vmem:[%s1 + $0x2d0] sm:$0xff]
  %v398 = vld [vmem:[%s1 + $0x2d8] sm:$0xf]
  %v399 = vld [vmem:[%s1 + $0x2dc] sm:$0xff]
  %v400 = vld [vmem:[%s1 + $0x2e4] sm:$0xf]
  %v401 = vld [vmem:[%s1 + $0x2e8] sm:$0xff]
  %v402 = vld [vmem:[%s1 + $0x2f0] sm:$0xf]
  %v403 = vld [vmem:[%s1 + $0x2f4] sm:$0xff]
  %v404 = vld [vmem:[%s1 + $0x2fc] sm:$0xf]
  %v405 = vld [vmem:[%s1 + $0x300] sm:$0xff]
  %v406 = vld [vmem:[%s1 + $0x308] sm:$0xf]
  %v407 = vld [vmem:[%s1 + $0x30c] sm:$0xff]
  %v408 = vld [vmem:[%s1 + $0x314] sm:$0xf]
  %v409 = vld [vmem:[%s1 + $0x318] sm:$0xff]
  %v410 = vld [vmem:[%s1 + $0x320] sm:$0xf]
  %v411 = vld [vmem:[%s1 + $0x324] sm:$0xff]
  %v412 = vld [vmem:[%s1 + $0x32c] sm:$0xf]
  %v413 = vld [vmem:[%s1 + $0x330] sm:$0xff]
  %v414 = vld [vmem:[%s1 + $0x338] sm:$0xf]
  %v415 = vld [vmem:[%s1 + $0x33c] sm:$0xff]
  %v416 = vld [vmem:[%s1 + $0x344] sm:$0xf]
  %v417 = vld [vmem:[%s1 + $0x348] sm:$0xff]
  %v418 = vld [vmem:[%s1 + $0x350] sm:$0xf]
  %v419 = vld [vmem:[%s1 + $0x354] sm:$0xff]
  %v420 = vld [vmem:[%s1 + $0x35c] sm:$0xf]
  %v421 = vld [vmem:[%s1 + $0x360] sm:$0xff]
  %v422 = vld [vmem:[%s1 + $0x368] sm:$0xf]
  %v423 = vld [vmem:[%s1 + $0x36c] sm:$0xff]
  %v424 = vld [vmem:[%s1 + $0x374] sm:$0xf]
  %v425 = vld [vmem:[%s1 + $0x378] sm:$0xff]
  %v426 = vld [vmem:[%s1 + $0x380] sm:$0xf]
  %v427 = vld [vmem:[%s1 + $0x384] sm:$0xff]
  %v428 = vld [vmem:[%s1 + $0x38c] sm:$0xf]
  %v429 = vld [vmem:[%s1 + $0x390] sm:$0xff]
  %v430 = vld [vmem:[%s1 + $0x398] sm:$0xf]
  %v431 = vld [vmem:[%s1 + $0x39c] sm:$0xff]
  %v432 = vld [vmem:[%s1 + $0x3a4] sm:$0xf]
  %v433 = vld [vmem:[%s1 + $0x3a8] sm:$0xff]
  %v434 = vld [vmem:[%s1 + $0x3b0] sm:$0xf]
  %v435 = vld [vmem:[%s1 + $0x3b4] sm:$0xff]
  %v436 = vld [vmem:[%s1 + $0x3bc] sm:$0xf]
  %v437 = vld [vmem:[%s1 + $0x3c0] sm:$0xff]
  %v438 = vld [vmem:[%s1 + $0x3c8] sm:$0xf]
  %v439 = vld [vmem:[%s1 + $0x3cc] sm:$0xff]
  %v440 = vld [vmem:[%s1 + $0x3d4] sm:$0xf]
  %v441 = vld [vmem:[%s1 + $0x3d8] sm:$0xff]
  %v442 = vld [vmem:[%s1 + $0x3e0] sm:$0xf]
  %v443 = vld [vmem:[%s1 + $0x3e4] sm:$0xff]
  %v444 = vld [vmem:[%s1 + $0x3ec] sm:$0xf]
  %v445 = vld [vmem:[%s1 + $0x3f0] sm:$0xff]
  %v446 = vld [vmem:[%s1 + $0x3f8] sm:$0xf]
  %v447 = vld [vmem:[%s1 + $0x3fc] sm:$0xff]
  %v448 = vld [vmem:[%s1 + $0x404] sm:$0xf]
  %v449 = vld [vmem:[%s1 + $0x408] sm:$0xff]
  %v450 = vld [vmem:[%s1 + $0x410] sm:$0xf]
  %v451 = vld [vmem:[%s1 + $0x414] sm:$0xff]
  %v452 = vld [vmem:[%s1 + $0x41c] sm:$0xf]
  %v453 = vld [vmem:[%s1 + $0x420] sm:$0xff]
  %v454 = vld [vmem:[%s1 + $0x428] sm:$0xf]
  %v455 = vld [vmem:[%s1 + $0x42c] sm:$0xff]
  %v456 = vld [vmem:[%s1 + $0x434] sm:$0xf]
  %v457 = vld [vmem:[%s1 + $0x438] sm:$0xff]
  %v458 = vld [vmem:[%s1 + $0x440] sm:$0xf]
  %v459 = vld [vmem:[%s1 + $0x444] sm:$0xff]
  %v460 = vld [vmem:[%s1 + $0x44c] sm:$0xf]
  %v461 = vld [vmem:[%s1 + $0x450] sm:$0xff]
  %v462 = vld [vmem:[%s1 + $0x458] sm:$0xf]
  %v463 = vld [vmem:[%s1 + $0x45c] sm:$0xff]
  %v464 = vld [vmem:[%s1 + $0x464] sm:$0xf]
  %v465 = vld [vmem:[%s1 + $0x468] sm:$0xff]
  %v466 = vld [vmem:[%s1 + $0x470] sm:$0xf]
  %v467 = vld [vmem:[%s1 + $0x474] sm:$0xff]
  %v468 = vld [vmem:[%s1 + $0x47c] sm:$0xf]
  %v469 = vld [vmem:[%s1 + $0x480] sm:$0xff]
  %v470 = vld [vmem:[%s1 + $0x488] sm:$0xf]
  %v471 = vld [vmem:[%s1 + $0x48c] sm:$0xff]
  %v472 = vld [vmem:[%s1 + $0x494] sm:$0xf]
  %v473 = vld [vmem:[%s2] sm:$0x7]
  %v475 = vlaneseq
  %v476 = vshrl.u32 %v475, 7
  %v477 = vsub.s32 0, %v476
  %v478 = vrot.slane %v473, %v477
  %v479 = vlaneseq
  %v480 = vshrl.u32 %v479, 7
  %v481 = vsub.s32 1, %v480
  %v482 = vrot.slane %v473, %v481
  %v483 = vlaneseq
  %v484 = vshrl.u32 %v483, 7
  %v485 = vsub.s32 2, %v484
  %v486 = vrot.slane %v473, %v485
  %v746 = vunpack.c.l.b16 %v21
  %v747 = vunpack.c.h.b16 %v21
  %v748 = vunpack.c.l.b16 %v22
  %v749 = vunpack.c.h.b16 %v22
  %v750 = vunpack.c.l.b16 %v23
  %v751 = vunpack.c.h.b16 %v23
  %v752 = vunpack.c.l.b16 %v24
  %v753 = vunpack.c.l.b16 %v25
  %v754 = vunpack.c.h.b16 %v25
  %v755 = vunpack.c.l.b16 %v26
  %v756 = vunpack.c.h.b16 %v26
  %v757 = vunpack.c.l.b16 %v27
  %v758 = vunpack.c.h.b16 %v27
  %v759 = vunpack.c.l.b16 %v28
  %v760 = vunpack.c.l.b16 %v29
  %v761 = vunpack.c.h.b16 %v29
  %v762 = vunpack.c.l.b16 %v30
  %v763 = vunpack.c.h.b16 %v30
  %v764 = vunpack.c.l.b16 %v31
  %v765 = vunpack.c.h.b16 %v31
  %v766 = vunpack.c.l.b16 %v32
  %v767 = vunpack.c.l.b16 %v33
  %v768 = vunpack.c.h.b16 %v33
  %v769 = vunpack.c.l.b16 %v34
  %v770 = vunpack.c.h.b16 %v34
  %v771 = vunpack.c.l.b16 %v35
  %v772 = vunpack.c.h.b16 %v35
  %v773 = vunpack.c.l.b16 %v36
  %v774 = vunpack.c.l.b16 %v37
  %v775 = vunpack.c.h.b16 %v37
  %v776 = vunpack.c.l.b16 %v38
  %v777 = vunpack.c.h.b16 %v38
  %v778 = vunpack.c.l.b16 %v39
  %v779 = vunpack.c.h.b16 %v39
  %v780 = vunpack.c.l.b16 %v40
  %v781 = vunpack.c.l.b16 %v41
  %v782 = vunpack.c.h.b16 %v41
  %v783 = vunpack.c.l.b16 %v42
  %v784 = vunpack.c.h.b16 %v42
  %v785 = vunpack.c.l.b16 %v43
  %v786 = vunpack.c.h.b16 %v43
  %v787 = vunpack.c.l.b16 %v44
  %v788 = vunpack.c.l.b16 %v45
  %v789 = vunpack.c.h.b16 %v45
  %v790 = vunpack.c.l.b16 %v46
  %v791 = vunpack.c.h.b16 %v46
  %v792 = vunpack.c.l.b16 %v47
  %v793 = vunpack.c.h.b16 %v47
  %v794 = vunpack.c.l.b16 %v48
  %v795 = vunpack.c.l.b16 %v49
  %v796 = vunpack.c.h.b16 %v49
  %v797 = vunpack.c.l.b16 %v50
  %v798 = vunpack.c.h.b16 %v50
  %v799 = vunpack.c.l.b16 %v51
  %v800 = vunpack.c.h.b16 %v51
  %v801 = vunpack.c.l.b16 %v52
  %v802 = vunpack.c.l.b16 %v53
  %v803 = vunpack.c.h.b16 %v53
  %v804 = vunpack.c.l.b16 %v54
  %v805 = vunpack.c.h.b16 %v54
  %v806 = vunpack.c.l.b16 %v55
  %v807 = vunpack.c.h.b16 %v55
  %v808 = vunpack.c.l.b16 %v56
  %v809 = vunpack.c.l.b16 %v57
  %v810 = vunpack.c.h.b16 %v57
  %v811 = vunpack.c.l.b16 %v58
  %v812 = vunpack.c.h.b16 %v58
  %v813 = vunpack.c.l.b16 %v59
  %v814 = vunpack.c.h.b16 %v59
  %v815 = vunpack.c.l.b16 %v60
  %v816 = vunpack.c.l.b16 %v61
  %v817 = vunpack.c.h.b16 %v61
  %v818 = vunpack.c.l.b16 %v62
  %v819 = vunpack.c.h.b16 %v62
  %v820 = vunpack.c.l.b16 %v63
  %v821 = vunpack.c.h.b16 %v63
  %v822 = vunpack.c.l.b16 %v64
  %v823 = vunpack.c.l.b16 %v65
  %v824 = vunpack.c.h.b16 %v65
  %v825 = vunpack.c.l.b16 %v66
  %v826 = vunpack.c.h.b16 %v66
  %v827 = vunpack.c.l.b16 %v67
  %v828 = vunpack.c.h.b16 %v67
  %v829 = vunpack.c.l.b16 %v68
  %v830 = vunpack.c.l.b16 %v69
  %v831 = vunpack.c.h.b16 %v69
  %v832 = vunpack.c.l.b16 %v70
  %v833 = vunpack.c.h.b16 %v70
  %v834 = vunpack.c.l.b16 %v71
  %v835 = vunpack.c.h.b16 %v71
  %v836 = vunpack.c.l.b16 %v72
  %v837 = vunpack.c.l.b16 %v73
  %v838 = vunpack.c.h.b16 %v73
  %v839 = vunpack.c.l.b16 %v74
  %v840 = vunpack.c.h.b16 %v74
  %v841 = vunpack.c.l.b16 %v75
  %v842 = vunpack.c.h.b16 %v75
  %v843 = vunpack.c.l.b16 %v76
  %v844 = vunpack.c.l.b16 %v77
  %v845 = vunpack.c.h.b16 %v77
  %v846 = vunpack.c.l.b16 %v78
  %v847 = vunpack.c.h.b16 %v78
  %v848 = vunpack.c.l.b16 %v79
  %v849 = vunpack.c.h.b16 %v79
  %v850 = vunpack.c.l.b16 %v80
  %v851 = vunpack.c.l.b16 %v81
  %v852 = vunpack.c.h.b16 %v81
  %v853 = vunpack.c.l.b16 %v82
  %v854 = vunpack.c.h.b16 %v82
  %v855 = vunpack.c.l.b16 %v83
  %v856 = vunpack.c.h.b16 %v83
  %v857 = vunpack.c.l.b16 %v84
  %v858 = vunpack.c.l.b16 %v85
  %v859 = vunpack.c.h.b16 %v85
  %v860 = vunpack.c.l.b16 %v86
  %v861 = vunpack.c.h.b16 %v86
  %v862 = vunpack.c.l.b16 %v87
  %v863 = vunpack.c.h.b16 %v87
  %v864 = vunpack.c.l.b16 %v88
  %v865 = vunpack.c.l.b16 %v89
  %v866 = vunpack.c.h.b16 %v89
  %v867 = vunpack.c.l.b16 %v90
  %v868 = vunpack.c.h.b16 %v90
  %v869 = vunpack.c.l.b16 %v91
  %v870 = vunpack.c.h.b16 %v91
  %v871 = vunpack.c.l.b16 %v92
  %v872 = vunpack.c.l.b16 %v93
  %v873 = vunpack.c.h.b16 %v93
  %v874 = vunpack.c.l.b16 %v94
  %v875 = vunpack.c.h.b16 %v94
  %v876 = vunpack.c.l.b16 %v95
  %v877 = vunpack.c.h.b16 %v95
  %v878 = vunpack.c.l.b16 %v96
  %v879 = vunpack.c.l.b16 %v97
  %v880 = vunpack.c.h.b16 %v97
  %v881 = vunpack.c.l.b16 %v98
  %v882 = vunpack.c.h.b16 %v98
  %v883 = vunpack.c.l.b16 %v99
  %v884 = vunpack.c.h.b16 %v99
  %v885 = vunpack.c.l.b16 %v100
  %v886 = vunpack.c.l.b16 %v101
  %v887 = vunpack.c.h.b16 %v101
  %v888 = vunpack.c.l.b16 %v102
  %v889 = vunpack.c.h.b16 %v102
  %v890 = vunpack.c.l.b16 %v103
  %v891 = vunpack.c.h.b16 %v103
  %v892 = vunpack.c.l.b16 %v104
  %v893 = vunpack.c.l.b16 %v105
  %v894 = vunpack.c.h.b16 %v105
  %v895 = vunpack.c.l.b16 %v106
  %v896 = vunpack.c.h.b16 %v106
  %v897 = vunpack.c.l.b16 %v107
  %v898 = vunpack.c.h.b16 %v107
  %v899 = vunpack.c.l.b16 %v108
  %v900 = vunpack.c.l.b16 %v109
  %v901 = vunpack.c.h.b16 %v109
  %v902 = vunpack.c.l.b16 %v110
  %v903 = vunpack.c.h.b16 %v110
  %v904 = vunpack.c.l.b16 %v111
  %v905 = vunpack.c.h.b16 %v111
  %v906 = vunpack.c.l.b16 %v112
  %v907 = vunpack.c.l.b16 %v113
  %v908 = vunpack.c.h.b16 %v113
  %v909 = vunpack.c.l.b16 %v114
  %v910 = vunpack.c.h.b16 %v114
  %v911 = vunpack.c.l.b16 %v115
  %v912 = vunpack.c.h.b16 %v115
  %v913 = vunpack.c.l.b16 %v116
  %v914 = vunpack.c.l.b16 %v117
  %v915 = vunpack.c.h.b16 %v117
  %v916 = vunpack.c.l.b16 %v118
  %v917 = vunpack.c.h.b16 %v118
  %v918 = vunpack.c.l.b16 %v119
  %v919 = vunpack.c.h.b16 %v119
  %v920 = vunpack.c.l.b16 %v120
  %v921 = vunpack.c.l.b16 %v121
  %v922 = vunpack.c.h.b16 %v121
  %v923 = vunpack.c.l.b16 %v122
  %v924 = vunpack.c.h.b16 %v122
  %v925 = vunpack.c.l.b16 %v123
  %v926 = vunpack.c.h.b16 %v123
  %v927 = vunpack.c.l.b16 %v124
  %v928 = vunpack.c.l.b16 %v125
  %v929 = vunpack.c.h.b16 %v125
  %v930 = vunpack.c.l.b16 %v126
  %v931 = vunpack.c.h.b16 %v126
  %v932 = vunpack.c.l.b16 %v127
  %v933 = vunpack.c.h.b16 %v127
  %v934 = vunpack.c.l.b16 %v128
  %v935 = vunpack.c.l.b16 %v129
  %v936 = vunpack.c.h.b16 %v129
  %v937 = vunpack.c.l.b16 %v130
  %v938 = vunpack.c.h.b16 %v130
  %v939 = vunpack.c.l.b16 %v131
  %v940 = vunpack.c.h.b16 %v131
  %v941 = vunpack.c.l.b16 %v132
  %v942 = vunpack.c.l.b16 %v133
  %v943 = vunpack.c.h.b16 %v133
  %v944 = vunpack.c.l.b16 %v134
  %v945 = vunpack.c.h.b16 %v134
  %v946 = vunpack.c.l.b16 %v135
  %v947 = vunpack.c.h.b16 %v135
  %v948 = vunpack.c.l.b16 %v136
  %v949 = vunpack.c.l.b16 %v137
  %v950 = vunpack.c.h.b16 %v137
  %v951 = vunpack.c.l.b16 %v138
  %v952 = vunpack.c.h.b16 %v138
  %v953 = vunpack.c.l.b16 %v139
  %v954 = vunpack.c.h.b16 %v139
  %v955 = vunpack.c.l.b16 %v140
  %v956 = vunpack.c.l.b16 %v141
  %v957 = vunpack.c.h.b16 %v141
  %v958 = vunpack.c.l.b16 %v142
  %v959 = vunpack.c.h.b16 %v142
  %v960 = vunpack.c.l.b16 %v143
  %v961 = vunpack.c.h.b16 %v143
  %v962 = vunpack.c.l.b16 %v144
  %v963 = vunpack.c.l.b16 %v145
  %v964 = vunpack.c.h.b16 %v145
  %v965 = vunpack.c.l.b16 %v146
  %v966 = vunpack.c.h.b16 %v146
  %v967 = vunpack.c.l.b16 %v147
  %v968 = vunpack.c.h.b16 %v147
  %v969 = vunpack.c.l.b16 %v148
  %v970 = vunpack.c.l.b16 %v149
  %v971 = vunpack.c.h.b16 %v149
  %v972 = vunpack.c.l.b16 %v150
  %v973 = vunpack.c.h.b16 %v150
  %v974 = vunpack.c.l.b16 %v151
  %v975 = vunpack.c.h.b16 %v151
  %v976 = vunpack.c.l.b16 %v152
  %v977 = vunpack.c.l.b16 %v153
  %v978 = vunpack.c.h.b16 %v153
  %v979 = vunpack.c.l.b16 %v154
  %v980 = vunpack.c.h.b16 %v154
  %v981 = vunpack.c.l.b16 %v155
  %v982 = vunpack.c.h.b16 %v155
  %v983 = vunpack.c.l.b16 %v156
  %v984 = vunpack.c.l.b16 %v157
  %v985 = vunpack.c.h.b16 %v157
  %v986 = vunpack.c.l.b16 %v158
  %v987 = vunpack.c.h.b16 %v158
  %v988 = vunpack.c.l.b16 %v159
  %v989 = vunpack.c.h.b16 %v159
  %v990 = vunpack.c.l.b16 %v160
  %v991 = vunpack.c.l.b16 %v161
  %v992 = vunpack.c.h.b16 %v161
  %v993 = vunpack.c.l.b16 %v162
  %v994 = vunpack.c.h.b16 %v162
  %v995 = vunpack.c.l.b16 %v163
  %v996 = vunpack.c.h.b16 %v163
  %v997 = vunpack.c.l.b16 %v164
  %v998 = vunpack.c.l.b16 %v165
  %v999 = vunpack.c.h.b16 %v165
  %v1000 = vunpack.c.l.b16 %v166
  %v1001 = vunpack.c.h.b16 %v166
  %v1002 = vunpack.c.l.b16 %v167
  %v1003 = vunpack.c.h.b16 %v167
  %v1004 = vunpack.c.l.b16 %v168
  %v1005 = vunpack.c.l.b16 %v169
  %v1006 = vunpack.c.h.b16 %v169
  %v1007 = vunpack.c.l.b16 %v170
  %v1008 = vunpack.c.h.b16 %v170
  %v1009 = vunpack.c.l.b16 %v171
  %v1010 = vunpack.c.h.b16 %v171
  %v1011 = vunpack.c.l.b16 %v172
  %v1012 = vunpack.c.l.b16 %v173
  %v1013 = vunpack.c.h.b16 %v173
  %v1014 = vunpack.c.l.b16 %v174
  %v1015 = vunpack.c.h.b16 %v174
  %v1016 = vunpack.c.l.b16 %v175
  %v1017 = vunpack.c.h.b16 %v175
  %v1018 = vunpack.c.l.b16 %v176
  %v1019 = vunpack.c.l.b16 %v177
  %v1020 = vunpack.c.h.b16 %v177
  %v1021 = vunpack.c.l.b16 %v178
  %v1022 = vunpack.c.h.b16 %v178
  %v1023 = vunpack.c.l.b16 %v179
  %v1024 = vunpack.c.h.b16 %v179
  %v1025 = vunpack.c.l.b16 %v180
  %v1026 = vunpack.c.l.b16 %v181
  %v1027 = vunpack.c.h.b16 %v181
  %v1028 = vunpack.c.l.b16 %v182
  %v1029 = vunpack.c.h.b16 %v182
  %v1030 = vunpack.c.l.b16 %v183
  %v1031 = vunpack.c.h.b16 %v183
  %v1032 = vunpack.c.l.b16 %v184
  %v1033 = vunpack.c.l.b16 %v185
  %v1034 = vunpack.c.h.b16 %v185
  %v1035 = vunpack.c.l.b16 %v186
  %v1036 = vunpack.c.h.b16 %v186
  %v1037 = vunpack.c.l.b16 %v187
  %v1038 = vunpack.c.h.b16 %v187
  %v1039 = vunpack.c.l.b16 %v188
  %v1040 = vunpack.c.l.b16 %v189
  %v1041 = vunpack.c.h.b16 %v189
  %v1042 = vunpack.c.l.b16 %v190
  %v1043 = vunpack.c.h.b16 %v190
  %v1044 = vunpack.c.l.b16 %v191
  %v1045 = vunpack.c.h.b16 %v191
  %v1046 = vunpack.c.l.b16 %v192
  %v1047 = vunpack.c.l.b16 %v193
  %v1048 = vunpack.c.h.b16 %v193
  %v1049 = vunpack.c.l.b16 %v194
  %v1050 = vunpack.c.h.b16 %v194
  %v1051 = vunpack.c.l.b16 %v195
  %v1052 = vunpack.c.h.b16 %v195
  %v1053 = vunpack.c.l.b16 %v196
  %v1054 = vunpack.c.l.b16 %v197
  %v1055 = vunpack.c.h.b16 %v197
  %v1056 = vunpack.c.l.b16 %v198
  %v1057 = vunpack.c.h.b16 %v198
  %v1058 = vunpack.c.l.b16 %v199
  %v1059 = vunpack.c.h.b16 %v199
  %v1060 = vunpack.c.l.b16 %v200
  %v1061 = vunpack.c.l.b16 %v201
  %v1062 = vunpack.c.h.b16 %v201
  %v1063 = vunpack.c.l.b16 %v202
  %v1064 = vunpack.c.h.b16 %v202
  %v1065 = vunpack.c.l.b16 %v203
  %v1066 = vunpack.c.h.b16 %v203
  %v1067 = vunpack.c.l.b16 %v204
  %v1068 = vunpack.c.l.b16 %v205
  %v1069 = vunpack.c.h.b16 %v205
  %v1070 = vunpack.c.l.b16 %v206
  %v1071 = vunpack.c.h.b16 %v206
  %v1072 = vunpack.c.l.b16 %v207
  %v1073 = vunpack.c.h.b16 %v207
  %v1074 = vunpack.c.l.b16 %v208
  %v1075 = vunpack.c.l.b16 %v209
  %v1076 = vunpack.c.h.b16 %v209
  %v1077 = vunpack.c.l.b16 %v210
  %v1078 = vunpack.c.h.b16 %v210
  %v1079 = vunpack.c.l.b16 %v211
  %v1080 = vunpack.c.h.b16 %v211
  %v1081 = vunpack.c.l.b16 %v212
  %v1082 = vunpack.c.l.b16 %v213
  %v1083 = vunpack.c.h.b16 %v213
  %v1084 = vunpack.c.l.b16 %v214
  %v1085 = vunpack.c.h.b16 %v214
  %v1086 = vunpack.c.l.b16 %v215
  %v1087 = vunpack.c.h.b16 %v215
  %v1088 = vunpack.c.l.b16 %v216
  %v1089 = vunpack.c.l.b16 %v217
  %v1090 = vunpack.c.h.b16 %v217
  %v1091 = vunpack.c.l.b16 %v218
  %v1092 = vunpack.c.h.b16 %v218
  %v1093 = vunpack.c.l.b16 %v219
  %v1094 = vunpack.c.h.b16 %v219
  %v1095 = vunpack.c.l.b16 %v220
  %v1096 = vunpack.c.l.b16 %v221
  %v1097 = vunpack.c.h.b16 %v221
  %v1098 = vunpack.c.l.b16 %v222
  %v1099 = vunpack.c.h.b16 %v222
  %v1100 = vunpack.c.l.b16 %v223
  %v1101 = vunpack.c.h.b16 %v223
  %v1102 = vunpack.c.l.b16 %v224
  %v1103 = vunpack.c.l.b16 %v225
  %v1104 = vunpack.c.h.b16 %v225
  %v1105 = vunpack.c.l.b16 %v226
  %v1106 = vunpack.c.h.b16 %v226
  %v1107 = vunpack.c.l.b16 %v227
  %v1108 = vunpack.c.h.b16 %v227
  %v1109 = vunpack.c.l.b16 %v228
  %v1110 = vunpack.c.l.b16 %v229
  %v1111 = vunpack.c.h.b16 %v229
  %v1112 = vunpack.c.l.b16 %v230
  %v1113 = vunpack.c.h.b16 %v230
  %v1114 = vunpack.c.l.b16 %v231
  %v1115 = vunpack.c.h.b16 %v231
  %v1116 = vunpack.c.l.b16 %v232
  %v1117 = vunpack.c.l.b16 %v233
  %v1118 = vunpack.c.h.b16 %v233
  %v1119 = vunpack.c.l.b16 %v234
  %v1120 = vunpack.c.h.b16 %v234
  %v1121 = vunpack.c.l.b16 %v235
  %v1122 = vunpack.c.h.b16 %v235
  %v1123 = vunpack.c.l.b16 %v236
  %v1124 = vunpack.c.l.b16 %v237
  %v1125 = vunpack.c.h.b16 %v237
  %v1126 = vunpack.c.l.b16 %v238
  %v1127 = vunpack.c.h.b16 %v238
  %v1128 = vunpack.c.l.b16 %v239
  %v1129 = vunpack.c.h.b16 %v239
  %v1130 = vunpack.c.l.b16 %v240
  %v1131 = vunpack.c.l.b16 %v241
  %v1132 = vunpack.c.h.b16 %v241
  %v1133 = vunpack.c.l.b16 %v242
  %v1134 = vunpack.c.h.b16 %v242
  %v1135 = vunpack.c.l.b16 %v243
  %v1136 = vunpack.c.h.b16 %v243
  %v1137 = vunpack.c.l.b16 %v244
  %v1138 = vunpack.c.l.b16 %v245
  %v1139 = vunpack.c.h.b16 %v245
  %v1140 = vunpack.c.l.b16 %v246
  %v1141 = vunpack.c.h.b16 %v246
  %v1142 = vunpack.c.l.b16 %v247
  %v1143 = vunpack.c.h.b16 %v247
  %v1144 = vunpack.c.l.b16 %v248
  %v1145 = vunpack.c.l.b16 %v249
  %v1146 = vunpack.c.h.b16 %v249
  %v1147 = vunpack.c.l.b16 %v250
  %v1148 = vunpack.c.h.b16 %v250
  %v1149 = vunpack.c.l.b16 %v251
  %v1150 = vunpack.c.h.b16 %v251
  %v1151 = vunpack.c.l.b16 %v252
  %v1152 = vunpack.c.l.b16 %v253
  %v1153 = vunpack.c.h.b16 %v253
  %v1154 = vunpack.c.l.b16 %v254
  %v1155 = vunpack.c.h.b16 %v254
  %v1156 = vunpack.c.l.b16 %v255
  %v1157 = vunpack.c.h.b16 %v255
  %v1158 = vunpack.c.l.b16 %v256
  %v1159 = vunpack.c.l.b16 %v257
  %v1160 = vunpack.c.h.b16 %v257
  %v1161 = vunpack.c.l.b16 %v258
  %v1162 = vunpack.c.h.b16 %v258
  %v1163 = vunpack.c.l.b16 %v259
  %v1164 = vunpack.c.h.b16 %v259
  %v1165 = vunpack.c.l.b16 %v260
  %v1166 = vunpack.c.l.b16 %v261
  %v1167 = vunpack.c.h.b16 %v261
  %v1168 = vunpack.c.l.b16 %v262
  %v1169 = vunpack.c.h.b16 %v262
  %v1170 = vunpack.c.l.b16 %v263
  %v1171 = vunpack.c.h.b16 %v263
  %v1172 = vunpack.c.l.b16 %v264
  %v1173 = vunpack.c.l.b16 %v265
  %v1174 = vunpack.c.h.b16 %v265
  %v1175 = vunpack.c.l.b16 %v266
  %v1176 = vunpack.c.h.b16 %v266
  %v1177 = vunpack.c.l.b16 %v267
  %v1178 = vunpack.c.h.b16 %v267
  %v1179 = vunpack.c.l.b16 %v268
  %v1180 = vunpack.c.l.b16 %v269
  %v1181 = vunpack.c.h.b16 %v269
  %v1182 = vunpack.c.l.b16 %v270
  %v1183 = vunpack.c.h.b16 %v270
  %v1184 = vunpack.c.l.b16 %v271
  %v1185 = vunpack.c.h.b16 %v271
  %v1186 = vunpack.c.l.b16 %v272
  %v1187 = vunpack.c.l.b16 %v273
  %v1188 = vunpack.c.h.b16 %v273
  %v1189 = vunpack.c.l.b16 %v274
  %v1190 = vunpack.c.h.b16 %v274
  %v1191 = vunpack.c.l.b16 %v275
  %v1192 = vunpack.c.h.b16 %v275
  %v1193 = vunpack.c.l.b16 %v276
  %v1194 = vpack.c.b16 %v753, %v746
  %v1195 = vpack.c.b16 %v754, %v747
  %v1196 = vpack.c.b16 %v755, %v748
  %v1197 = vpack.c.b16 %v756, %v749
  %v1198 = vpack.c.b16 %v757, %v750
  %v1199 = vpack.c.b16 %v758, %v751
  %v1200 = vpack.c.b16 %v759, %v752
  %v1201 = vpack.c.b16 %v767, %v760
  %v1202 = vpack.c.b16 %v768, %v761
  %v1203 = vpack.c.b16 %v769, %v762
  %v1204 = vpack.c.b16 %v770, %v763
  %v1205 = vpack.c.b16 %v771, %v764
  %v1206 = vpack.c.b16 %v772, %v765
  %v1207 = vpack.c.b16 %v773, %v766
  %v1208 = vpack.c.b16 %v781, %v774
  %v1209 = vpack.c.b16 %v782, %v775
  %v1210 = vpack.c.b16 %v783, %v776
  %v1211 = vpack.c.b16 %v784, %v777
  %v1212 = vpack.c.b16 %v785, %v778
  %v1213 = vpack.c.b16 %v786, %v779
  %v1214 = vpack.c.b16 %v787, %v780
  %v1215 = vpack.c.b16 %v795, %v788
  %v1216 = vpack.c.b16 %v796, %v789
  %v1217 = vpack.c.b16 %v797, %v790
  %v1218 = vpack.c.b16 %v798, %v791
  %v1219 = vpack.c.b16 %v799, %v792
  %v1220 = vpack.c.b16 %v800, %v793
  %v1221 = vpack.c.b16 %v801, %v794
  %v1222 = vpack.c.b16 %v809, %v802
  %v1223 = vpack.c.b16 %v810, %v803
  %v1224 = vpack.c.b16 %v811, %v804
  %v1225 = vpack.c.b16 %v812, %v805
  %v1226 = vpack.c.b16 %v813, %v806
  %v1227 = vpack.c.b16 %v814, %v807
  %v1228 = vpack.c.b16 %v815, %v808
  %v1229 = vpack.c.b16 %v823, %v816
  %v1230 = vpack.c.b16 %v824, %v817
  %v1231 = vpack.c.b16 %v825, %v818
  %v1232 = vpack.c.b16 %v826, %v819
  %v1233 = vpack.c.b16 %v827, %v820
  %v1234 = vpack.c.b16 %v828, %v821
  %v1235 = vpack.c.b16 %v829, %v822
  %v1236 = vpack.c.b16 %v837, %v830
  %v1237 = vpack.c.b16 %v838, %v831
  %v1238 = vpack.c.b16 %v839, %v832
  %v1239 = vpack.c.b16 %v840, %v833
  %v1240 = vpack.c.b16 %v841, %v834
  %v1241 = vpack.c.b16 %v842, %v835
  %v1242 = vpack.c.b16 %v843, %v836
  %v1243 = vpack.c.b16 %v851, %v844
  %v1244 = vpack.c.b16 %v852, %v845
  %v1245 = vpack.c.b16 %v853, %v846
  %v1246 = vpack.c.b16 %v854, %v847
  %v1247 = vpack.c.b16 %v855, %v848
  %v1248 = vpack.c.b16 %v856, %v849
  %v1249 = vpack.c.b16 %v857, %v850
  %v1250 = vpack.c.b16 %v865, %v858
  %v1251 = vpack.c.b16 %v866, %v859
  %v1252 = vpack.c.b16 %v867, %v860
  %v1253 = vpack.c.b16 %v868, %v861
  %v1254 = vpack.c.b16 %v869, %v862
  %v1255 = vpack.c.b16 %v870, %v863
  %v1256 = vpack.c.b16 %v871, %v864
  %v1257 = vpack.c.b16 %v879, %v872
  %v1258 = vpack.c.b16 %v880, %v873
  %v1259 = vpack.c.b16 %v881, %v874
  %v1260 = vpack.c.b16 %v882, %v875
  %v1261 = vpack.c.b16 %v883, %v876
  %v1262 = vpack.c.b16 %v884, %v877
  %v1263 = vpack.c.b16 %v885, %v878
  %v1264 = vpack.c.b16 %v893, %v886
  %v1265 = vpack.c.b16 %v894, %v887
  %v1266 = vpack.c.b16 %v895, %v888
  %v1267 = vpack.c.b16 %v896, %v889
  %v1268 = vpack.c.b16 %v897, %v890
  %v1269 = vpack.c.b16 %v898, %v891
  %v1270 = vpack.c.b16 %v899, %v892
  %v1271 = vpack.c.b16 %v907, %v900
  %v1272 = vpack.c.b16 %v908, %v901
  %v1273 = vpack.c.b16 %v909, %v902
  %v1274 = vpack.c.b16 %v910, %v903
  %v1275 = vpack.c.b16 %v911, %v904
  %v1276 = vpack.c.b16 %v912, %v905
  %v1277 = vpack.c.b16 %v913, %v906
  %v1278 = vpack.c.b16 %v921, %v914
  %v1279 = vpack.c.b16 %v922, %v915
  %v1280 = vpack.c.b16 %v923, %v916
  %v1281 = vpack.c.b16 %v924, %v917
  %v1282 = vpack.c.b16 %v925, %v918
  %v1283 = vpack.c.b16 %v926, %v919
  %v1284 = vpack.c.b16 %v927, %v920
  %v1285 = vpack.c.b16 %v935, %v928
  %v1286 = vpack.c.b16 %v936, %v929
  %v1287 = vpack.c.b16 %v937, %v930
  %v1288 = vpack.c.b16 %v938, %v931
  %v1289 = vpack.c.b16 %v939, %v932
  %v1290 = vpack.c.b16 %v940, %v933
  %v1291 = vpack.c.b16 %v941, %v934
  %v1292 = vpack.c.b16 %v949, %v942
  %v1293 = vpack.c.b16 %v950, %v943
  %v1294 = vpack.c.b16 %v951, %v944
  %v1295 = vpack.c.b16 %v952, %v945
  %v1296 = vpack.c.b16 %v953, %v946
  %v1297 = vpack.c.b16 %v954, %v947
  %v1298 = vpack.c.b16 %v955, %v948
  %v1299 = vpack.c.b16 %v963, %v956
  %v1300 = vpack.c.b16 %v964, %v957
  %v1301 = vpack.c.b16 %v965, %v958
  %v1302 = vpack.c.b16 %v966, %v959
  %v1303 = vpack.c.b16 %v967, %v960
  %v1304 = vpack.c.b16 %v968, %v961
  %v1305 = vpack.c.b16 %v969, %v962
  %v1306 = vpack.c.b16 %v977, %v970
  %v1307 = vpack.c.b16 %v978, %v971
  %v1308 = vpack.c.b16 %v979, %v972
  %v1309 = vpack.c.b16 %v980, %v973
  %v1310 = vpack.c.b16 %v981, %v974
  %v1311 = vpack.c.b16 %v982, %v975
  %v1312 = vpack.c.b16 %v983, %v976
  %v1313 = vpack.c.b16 %v991, %v984
  %v1314 = vpack.c.b16 %v992, %v985
  %v1315 = vpack.c.b16 %v993, %v986
  %v1316 = vpack.c.b16 %v994, %v987
  %v1317 = vpack.c.b16 %v995, %v988
  %v1318 = vpack.c.b16 %v996, %v989
  %v1319 = vpack.c.b16 %v997, %v990
  %v1320 = vpack.c.b16 %v1005, %v998
  %v1321 = vpack.c.b16 %v1006, %v999
  %v1322 = vpack.c.b16 %v1007, %v1000
  %v1323 = vpack.c.b16 %v1008, %v1001
  %v1324 = vpack.c.b16 %v1009, %v1002
  %v1325 = vpack.c.b16 %v1010, %v1003
  %v1326 = vpack.c.b16 %v1011, %v1004
  %v1327 = vpack.c.b16 %v1019, %v1012
  %v1328 = vpack.c.b16 %v1020, %v1013
  %v1329 = vpack.c.b16 %v1021, %v1014
  %v1330 = vpack.c.b16 %v1022, %v1015
  %v1331 = vpack.c.b16 %v1023, %v1016
  %v1332 = vpack.c.b16 %v1024, %v1017
  %v1333 = vpack.c.b16 %v1025, %v1018
  %v1334 = vpack.c.b16 %v1033, %v1026
  %v1335 = vpack.c.b16 %v1034, %v1027
  %v1336 = vpack.c.b16 %v1035, %v1028
  %v1337 = vpack.c.b16 %v1036, %v1029
  %v1338 = vpack.c.b16 %v1037, %v1030
  %v1339 = vpack.c.b16 %v1038, %v1031
  %v1340 = vpack.c.b16 %v1039, %v1032
  %v1341 = vpack.c.b16 %v1047, %v1040
  %v1342 = vpack.c.b16 %v1048, %v1041
  %v1343 = vpack.c.b16 %v1049, %v1042
  %v1344 = vpack.c.b16 %v1050, %v1043
  %v1345 = vpack.c.b16 %v1051, %v1044
  %v1346 = vpack.c.b16 %v1052, %v1045
  %v1347 = vpack.c.b16 %v1053, %v1046
  %v1348 = vpack.c.b16 %v1061, %v1054
  %v1349 = vpack.c.b16 %v1062, %v1055
  %v1350 = vpack.c.b16 %v1063, %v1056
  %v1351 = vpack.c.b16 %v1064, %v1057
  %v1352 = vpack.c.b16 %v1065, %v1058
  %v1353 = vpack.c.b16 %v1066, %v1059
  %v1354 = vpack.c.b16 %v1067, %v1060
  %v1355 = vpack.c.b16 %v1075, %v1068
  %v1356 = vpack.c.b16 %v1076, %v1069
  %v1357 = vpack.c.b16 %v1077, %v1070
  %v1358 = vpack.c.b16 %v1078, %v1071
  %v1359 = vpack.c.b16 %v1079, %v1072
  %v1360 = vpack.c.b16 %v1080, %v1073
  %v1361 = vpack.c.b16 %v1081, %v1074
  %v1362 = vpack.c.b16 %v1089, %v1082
  %v1363 = vpack.c.b16 %v1090, %v1083
  %v1364 = vpack.c.b16 %v1091, %v1084
  %v1365 = vpack.c.b16 %v1092, %v1085
  %v1366 = vpack.c.b16 %v1093, %v1086
  %v1367 = vpack.c.b16 %v1094, %v1087
  %v1368 = vpack.c.b16 %v1095, %v1088
  %v1369 = vpack.c.b16 %v1103, %v1096
  %v1370 = vpack.c.b16 %v1104, %v1097
  %v1371 = vpack.c.b16 %v1105, %v1098
  %v1372 = vpack.c.b16 %v1106, %v1099
  %v1373 = vpack.c.b16 %v1107, %v1100
  %v1374 = vpack.c.b16 %v1108, %v1101
  %v1375 = vpack.c.b16 %v1109, %v1102
  %v1376 = vpack.c.b16 %v1117, %v1110
  %v1377 = vpack.c.b16 %v1118, %v1111
  %v1378 = vpack.c.b16 %v1119, %v1112
  %v1379 = vpack.c.b16 %v1120, %v1113
  %v1380 = vpack.c.b16 %v1121, %v1114
  %v1381 = vpack.c.b16 %v1122, %v1115
  %v1382 = vpack.c.b16 %v1123, %v1116
  %v1383 = vpack.c.b16 %v1131, %v1124
  %v1384 = vpack.c.b16 %v1132, %v1125
  %v1385 = vpack.c.b16 %v1133, %v1126
  %v1386 = vpack.c.b16 %v1134, %v1127
  %v1387 = vpack.c.b16 %v1135, %v1128
  %v1388 = vpack.c.b16 %v1136, %v1129
  %v1389 = vpack.c.b16 %v1137, %v1130
  %v1390 = vpack.c.b16 %v1145, %v1138
  %v1391 = vpack.c.b16 %v1146, %v1139
  %v1392 = vpack.c.b16 %v1147, %v1140
  %v1393 = vpack.c.b16 %v1148, %v1141
  %v1394 = vpack.c.b16 %v1149, %v1142
  %v1395 = vpack.c.b16 %v1150, %v1143
  %v1396 = vpack.c.b16 %v1151, %v1144
  %v1397 = vpack.c.b16 %v1159, %v1152
  %v1398 = vpack.c.b16 %v1160, %v1153
  %v1399 = vpack.c.b16 %v1161, %v1154
  %v1400 = vpack.c.b16 %v1162, %v1155
  %v1401 = vpack.c.b16 %v1163, %v1156
  %v1402 = vpack.c.b16 %v1164, %v1157
  %v1403 = vpack.c.b16 %v1165, %v1158
  %v1404 = vpack.c.b16 %v1173, %v1166
  %v1405 = vpack.c.b16 %v1174, %v1167
  %v1406 = vpack.c.b16 %v1175, %v1168
  %v1407 = vpack.c.b16 %v1176, %v1169
  %v1408 = vpack.c.b16 %v1177, %v1170
  %v1409 = vpack.c.b16 %v1178, %v1171
  %v1410 = vpack.c.b16 %v1179, %v1172
  %v1411 = vpack.c.b16 %v1187, %v1180
  %v1412 = vpack.c.b16 %v1188, %v1181
  %v1413 = vpack.c.b16 %v1189, %v1182
  %v1414 = vpack.c.b16 %v1190, %v1183
  %v1415 = vpack.c.b16 %v1191, %v1184
  %v1416 = vpack.c.b16 %v1192, %v1185
  %v1417 = vpack.c.b16 %v1193, %v1186
  %v1806 = vunpack.c.l.b16 %v277
  %v1807 = vunpack.c.h.b16 %v277
  %v1808 = vunpack.c.l.b16 %v278
  %v1809 = vunpack.c.l.b16 %v279
  %v1810 = vunpack.c.h.b16 %v279
  %v1811 = vunpack.c.l.b16 %v280
  %v1812 = vunpack.c.l.b16 %v281
  %v1813 = vunpack.c.h.b16 %v281
  %v1814 = vunpack.c.l.b16 %v282
  %v1815 = vunpack.c.l.b16 %v283
  %v1816 = vunpack.c.h.b16 %v283
  %v1817 = vunpack.c.l.b16 %v284
  %v1818 = vunpack.c.l.b16 %v285
  %v1819 = vunpack.c.h.b16 %v285
  %v1820 = vunpack.c.l.b16 %v286
  %v1821 = vunpack.c.l.b16 %v287
  %v1822 = vunpack.c.h.b16 %v287
  %v1823 = vunpack.c.l.b16 %v288
  %v1824 = vunpack.c.l.b16 %v289
  %v1825 = vunpack.c.h.b16 %v289
  %v1826 = vunpack.c.l.b16 %v290
  %v1827 = vunpack.c.l.b16 %v291
  %v1828 = vunpack.c.h.b16 %v291
  %v1829 = vunpack.c.l.b16 %v292
  %v1830 = vunpack.c.l.b16 %v293
  %v1831 = vunpack.c.h.b16 %v293
  %v1832 = vunpack.c.l.b16 %v294
  %v1833 = vunpack.c.l.b16 %v295
  %v1834 = vunpack.c.h.b16 %v295
  %v1835 = vunpack.c.l.b16 %v296
  %v1836 = vunpack.c.l.b16 %v297
  %v1837 = vunpack.c.h.b16 %v297
  %v1838 = vunpack.c.l.b16 %v298
  %v1839 = vunpack.c.l.b16 %v299
  %v1840 = vunpack.c.h.b16 %v299
  %v1841 = vunpack.c.l.b16 %v300
  %v1842 = vunpack.c.l.b16 %v301
  %v1843 = vunpack.c.h.b16 %v301
  %v1844 = vunpack.c.l.b16 %v302
  %v1845 = vunpack.c.l.b16 %v303
  %v1846 = vunpack.c.h.b16 %v303
  %v1847 = vunpack.c.l.b16 %v304
  %v1848 = vunpack.c.l.b16 %v305
  %v1849 = vunpack.c.h.b16 %v305
  %v1850 = vunpack.c.l.b16 %v306
  %v1851 = vunpack.c.l.b16 %v307
  %v1852 = vunpack.c.h.b16 %v307
  %v1853 = vunpack.c.l.b16 %v308
  %v1854 = vunpack.c.l.b16 %v309
  %v1855 = vunpack.c.h.b16 %v309
  %v1856 = vunpack.c.l.b16 %v310
  %v1857 = vunpack.c.l.b16 %v311
  %v1858 = vunpack.c.h.b16 %v311
  %v1859 = vunpack.c.l.b16 %v312
  %v1860 = vunpack.c.l.b16 %v313
  %v1861 = vunpack.c.h.b16 %v313
  %v1862 = vunpack.c.l.b16 %v314
  %v1863 = vunpack.c.l.b16 %v315
  %v1864 = vunpack.c.h.b16 %v315
  %v1865 = vunpack.c.l.b16 %v316
  %v1866 = vunpack.c.l.b16 %v317
  %v1867 = vunpack.c.h.b16 %v317
  %v1868 = vunpack.c.l.b16 %v318
  %v1869 = vunpack.c.l.b16 %v319
  %v1870 = vunpack.c.h.b16 %v319
  %v1871 = vunpack.c.l.b16 %v320
  %v1872 = vunpack.c.l.b16 %v321
  %v1873 = vunpack.c.h.b16 %v321
  %v1874 = vunpack.c.l.b16 %v322
  %v1875 = vunpack.c.l.b16 %v323
  %v1876 = vunpack.c.h.b16 %v323
  %v1877 = vunpack.c.l.b16 %v324
  %v1878 = vunpack.c.l.b16 %v325
  %v1879 = vunpack.c.h.b16 %v325
  %v1880 = vunpack.c.l.b16 %v326
  %v1881 = vunpack.c.l.b16 %v327
  %v1882 = vunpack.c.h.b16 %v327
  %v1883 = vunpack.c.l.b16 %v328
  %v1884 = vunpack.c.l.b16 %v329
  %v1885 = vunpack.c.h.b16 %v329
  %v1886 = vunpack.c.l.b16 %v330
  %v1887 = vunpack.c.l.b16 %v331
  %v1888 = vunpack.c.h.b16 %v331
  %v1889 = vunpack.c.l.b16 %v332
  %v1890 = vunpack.c.l.b16 %v333
  %v1891 = vunpack.c.h.b16 %v333
  %v1892 = vunpack.c.l.b16 %v334
  %v1893 = vunpack.c.l.b16 %v335
  %v1894 = vunpack.c.h.b16 %v335
  %v1895 = vunpack.c.l.b16 %v336
  %v1896 = vunpack.c.l.b16 %v337
  %v1897 = vunpack.c.h.b16 %v337
  %v1898 = vunpack.c.l.b16 %v338
  %v1899 = vunpack.c.l.b16 %v339
  %v1900 = vunpack.c.h.b16 %v339
  %v1901 = vunpack.c.l.b16 %v340
  %v1902 = vunpack.c.l.b16 %v341
  %v1903 = vunpack.c.h.b16 %v341
  %v1904 = vunpack.c.l.b16 %v342
  %v1905 = vunpack.c.l.b16 %v343
  %v1906 = vunpack.c.h.b16 %v343
  %v1907 = vunpack.c.l.b16 %v344
  %v1908 = vunpack.c.l.b16 %v345
  %v1909 = vunpack.c.h.b16 %v345
  %v1910 = vunpack.c.l.b16 %v346
  %v1911 = vunpack.c.l.b16 %v347
  %v1912 = vunpack.c.h.b16 %v347
  %v1913 = vunpack.c.l.b16 %v348
  %v1914 = vunpack.c.l.b16 %v349
  %v1915 = vunpack.c.h.b16 %v349
  %v1916 = vunpack.c.l.b16 %v350
  %v1917 = vunpack.c.l.b16 %v351
  %v1918 = vunpack.c.h.b16 %v351
  %v1919 = vunpack.c.l.b16 %v352
  %v1920 = vunpack.c.l.b16 %v353
  %v1921 = vunpack.c.h.b16 %v353
  %v1922 = vunpack.c.l.b16 %v354
  %v1923 = vunpack.c.l.b16 %v355
  %v1924 = vunpack.c.h.b16 %v355
  %v1925 = vunpack.c.l.b16 %v356
  %v1926 = vunpack.c.l.b16 %v357
  %v1927 = vunpack.c.h.b16 %v357
  %v1928 = vunpack.c.l.b16 %v358
  %v1929 = vunpack.c.l.b16 %v359
  %v1930 = vunpack.c.h.b16 %v359
  %v1931 = vunpack.c.l.b16 %v360
  %v1932 = vunpack.c.l.b16 %v361
  %v1933 = vunpack.c.h.b16 %v361
  %v1934 = vunpack.c.l.b16 %v362
  %v1935 = vunpack.c.l.b16 %v363
  %v1936 = vunpack.c.h.b16 %v363
  %v1937 = vunpack.c.l.b16 %v364
  %v1938 = vunpack.c.l.b16 %v365
  %v1939 = vunpack.c.h.b16 %v365
  %v1940 = vunpack.c.l.b16 %v366
  %v1941 = vunpack.c.l.b16 %v367
  %v1942 = vunpack.c.h.b16 %v367
  %v1943 = vunpack.c.l.b16 %v368
  %v1944 = vunpack.c.l.b16 %v369
  %v1945 = vunpack.c.h.b16 %v369
  %v1946 = vunpack.c.l.b16 %v370
  %v1947 = vunpack.c.l.b16 %v371
  %v1948 = vunpack.c.h.b16 %v371
  %v1949 = vunpack.c.l.b16 %v372
  %v1950 = vunpack.c.l.b16 %v373
  %v1951 = vunpack.c.h.b16 %v373
  %v1952 = vunpack.c.l.b16 %v374
  %v1953 = vunpack.c.l.b16 %v375
  %v1954 = vunpack.c.h.b16 %v375
  %v1955 = vunpack.c.l.b16 %v376
  %v1956 = vunpack.c.l.b16 %v377
  %v1957 = vunpack.c.h.b16 %v377
  %v1958 = vunpack.c.l.b16 %v378
  %v1959 = vunpack.c.l.b16 %v379
  %v1960 = vunpack.c.h.b16 %v379
  %v1961 = vunpack.c.l.b16 %v380
  %v1962 = vunpack.c.l.b16 %v381
  %v1963 = vunpack.c.h.b16 %v381
  %v1964 = vunpack.c.l.b16 %v382
  %v1965 = vunpack.c.l.b16 %v383
  %v1966 = vunpack.c.h.b16 %v383
  %v1967 = vunpack.c.l.b16 %v384
  %v1968 = vunpack.c.l.b16 %v385
  %v1969 = vunpack.c.h.b16 %v385
  %v1970 = vunpack.c.l.b16 %v386
  %v1971 = vunpack.c.l.b16 %v387
  %v1972 = vunpack.c.h.b16 %v387
  %v1973 = vunpack.c.l.b16 %v388
  %v1974 = vunpack.c.l.b16 %v389
  %v1975 = vunpack.c.h.b16 %v389
  %v1976 = vunpack.c.l.b16 %v390
  %v1977 = vunpack.c.l.b16 %v391
  %v1978 = vunpack.c.h.b16 %v391
  %v1979 = vunpack.c.l.b16 %v392
  %v1980 = vunpack.c.l.b16 %v393
  %v1981 = vunpack.c.h.b16 %v393
  %v1982 = vunpack.c.l.b16 %v394
  %v1983 = vunpack.c.l.b16 %v395
  %v1984 = vunpack.c.h.b16 %v395
  %v1985 = vunpack.c.l.b16 %v396
  %v1986 = vunpack.c.l.b16 %v397
  %v1987 = vunpack.c.h.b16 %v397
  %v1988 = vunpack.c.l.b16 %v398
  %v1989 = vunpack.c.l.b16 %v399
  %v1990 = vunpack.c.h.b16 %v399
  %v1991 = vunpack.c.l.b16 %v400
  %v1992 = vunpack.c.l.b16 %v401
  %v1993 = vunpack.c.h.b16 %v401
  %v1994 = vunpack.c.l.b16 %v402
  %v1995 = vunpack.c.l.b16 %v403
  %v1996 = vunpack.c.h.b16 %v403
  %v1997 = vunpack.c.l.b16 %v404
  %v1998 = vunpack.c.l.b16 %v405
  %v1999 = vunpack.c.h.b16 %v405
  %v2000 = vunpack.c.l.b16 %v406
  %v2001 = vunpack.c.l.b16 %v407
  %v2002 = vunpack.c.h.b16 %v407
  %v2003 = vunpack.c.l.b16 %v408
  %v2004 = vunpack.c.l.b16 %v409
  %v2005 = vunpack.c.h.b16 %v409
  %v2006 = vunpack.c.l.b16 %v410
  %v2007 = vunpack.c.l.b16 %v411
  %v2008 = vunpack.c.h.b16 %v411
  %v2009 = vunpack.c.l.b16 %v412
  %v2010 = vunpack.c.l.b16 %v413
  %v2011 = vunpack.c.h.b16 %v413
  %v2012 = vunpack.c.l.b16 %v414
  %v2013 = vunpack.c.l.b16 %v415
  %v2014 = vunpack.c.h.b16 %v415
  %v2015 = vunpack.c.l.b16 %v416
  %v2016 = vunpack.c.l.b16 %v417
  %v2017 = vunpack.c.h.b16 %v417
  %v2018 = vunpack.c.l.b16 %v418
  %v2019 = vunpack.c.l.b16 %v419
  %v2020 = vunpack.c.h.b16 %v419
  %v2021 = vunpack.c.l.b16 %v420
  %v2022 = vunpack.c.l.b16 %v421
  %v2023 = vunpack.c.h.b16 %v421
  %v2024 = vunpack.c.l.b16 %v422
  %v2025 = vunpack.c.l.b16 %v423
  %v2026 = vunpack.c.h.b16 %v423
  %v2027 = vunpack.c.l.b16 %v424
  %v2028 = vunpack.c.l.b16 %v425
  %v2029 = vunpack.c.h.b16 %v425
  %v2030 = vunpack.c.l.b16 %v426
  %v2031 = vunpack.c.l.b16 %v427
  %v2032 = vunpack.c.h.b16 %v427
  %v2033 = vunpack.c.l.b16 %v428
  %v2034 = vunpack.c.l.b16 %v429
  %v2035 = vunpack.c.h.b16 %v429
  %v2036 = vunpack.c.l.b16 %v430
  %v2037 = vunpack.c.l.b16 %v431
  %v2038 = vunpack.c.h.b16 %v431
  %v2039 = vunpack.c.l.b16 %v432
  %v2040 = vunpack.c.l.b16 %v433
  %v2041 = vunpack.c.h.b16 %v433
  %v2042 = vunpack.c.l.b16 %v434
  %v2043 = vunpack.c.l.b16 %v435
  %v2044 = vunpack.c.h.b16 %v435
  %v2045 = vunpack.c.l.b16 %v436
  %v2046 = vunpack.c.l.b16 %v437
  %v2047 = vunpack.c.h.b16 %v437
  %v2048 = vunpack.c.l.b16 %v438
  %v2049 = vunpack.c.l.b16 %v439
  %v2050 = vunpack.c.h.b16 %v439
  %v2051 = vunpack.c.l.b16 %v440
  %v2052 = vunpack.c.l.b16 %v441
  %v2053 = vunpack.c.h.b16 %v441
  %v2054 = vunpack.c.l.b16 %v442
  %v2055 = vunpack.c.l.b16 %v443
  %v2056 = vunpack.c.h.b16 %v443
  %v2057 = vunpack.c.l.b16 %v444
  %v2058 = vunpack.c.l.b16 %v445
  %v2059 = vunpack.c.h.b16 %v445
  %v2060 = vunpack.c.l.b16 %v446
  %v2061 = vunpack.c.l.b16 %v447
  %v2062 = vunpack.c.h.b16 %v447
  %v2063 = vunpack.c.l.b16 %v448
  %v2064 = vunpack.c.l.b16 %v449
  %v2065 = vunpack.c.h.b16 %v449
  %v2066 = vunpack.c.l.b16 %v450
  %v2067 = vunpack.c.l.b16 %v451
  %v2068 = vunpack.c.h.b16 %v451
  %v2069 = vunpack.c.l.b16 %v452
  %v2070 = vunpack.c.l.b16 %v453
  %v2071 = vunpack.c.h.b16 %v453
  %v2072 = vunpack.c.l.b16 %v454
  %v2073 = vunpack.c.l.b16 %v455
  %v2074 = vunpack.c.h.b16 %v455
  %v2075 = vunpack.c.l.b16 %v456
  %v2076 = vunpack.c.l.b16 %v457
  %v2077 = vunpack.c.h.b16 %v457
  %v2078 = vunpack.c.l.b16 %v458
  %v2079 = vunpack.c.l.b16 %v459
  %v2080 = vunpack.c.h.b16 %v459
  %v2081 = vunpack.c.l.b16 %v460
  %v2082 = vunpack.c.l.b16 %v461
  %v2083 = vunpack.c.h.b16 %v461
  %v2084 = vunpack.c.l.b16 %v462
  %v2085 = vunpack.c.l.b16 %v463
  %v2086 = vunpack.c.h.b16 %v463
  %v2087 = vunpack.c.l.b16 %v464
  %v2088 = vunpack.c.l.b16 %v465
  %v2089 = vunpack.c.h.b16 %v465
  %v2090 = vunpack.c.l.b16 %v466
  %v2091 = vunpack.c.l.b16 %v467
  %v2092 = vunpack.c.h.b16 %v467
  %v2093 = vunpack.c.l.b16 %v468
  %v2094 = vunpack.c.l.b16 %v469
  %v2095 = vunpack.c.h.b16 %v469
  %v2096 = vunpack.c.l.b16 %v470
  %v2097 = vunpack.c.l.b16 %v471
  %v2098 = vunpack.c.h.b16 %v471
  %v2099 = vunpack.c.l.b16 %v472
  %v2100 = vpack.c.b16 %v1809, %v1806
  %v2101 = vpack.c.b16 %v1810, %v1807
  %v2102 = vpack.c.b16 %v1811, %v1808
  %v2103 = vpack.c.b16 %v1815, %v1812
  %v2104 = vpack.c.b16 %v1816, %v1813
  %v2105 = vpack.c.b16 %v1817, %v1814
  %v2106 = vpack.c.b16 %v1821, %v1818
  %v2107 = vpack.c.b16 %v1822, %v1819
  %v2108 = vpack.c.b16 %v1823, %v1820
  %v2109 = vpack.c.b16 %v1827, %v1824
  %v2110 = vpack.c.b16 %v1828, %v1825
  %v2111 = vpack.c.b16 %v1829, %v1826
  %v2112 = vpack.c.b16 %v1833, %v1830
  %v2113 = vpack.c.b16 %v1834, %v1831
  %v2114 = vpack.c.b16 %v1835, %v1832
  %v2115 = vpack.c.b16 %v1839, %v1836
  %v2116 = vpack.c.b16 %v1840, %v1837
  %v2117 = vpack.c.b16 %v1841, %v1838
  %v2118 = vpack.c.b16 %v1845, %v1842
  %v2119 = vpack.c.b16 %v1846, %v1843
  %v2120 = vpack.c.b16 %v1847, %v1844
  %v2121 = vpack.c.b16 %v1851, %v1848
  %v2122 = vpack.c.b16 %v1852, %v1849
  %v2123 = vpack.c.b16 %v1853, %v1850
  %v2124 = vpack.c.b16 %v1857, %v1854
  %v2125 = vpack.c.b16 %v1858, %v1855
  %v2126 = vpack.c.b16 %v1859, %v1856
  %v2127 = vpack.c.b16 %v1863, %v1860
  %v2128 = vpack.c.b16 %v1864, %v1861
  %v2129 = vpack.c.b16 %v1865, %v1862
  %v2130 = vpack.c.b16 %v1869, %v1866
  %v2131 = vpack.c.b16 %v1870, %v1867
  %v2132 = vpack.c.b16 %v1871, %v1868
  %v2133 = vpack.c.b16 %v1875, %v1872
  %v2134 = vpack.c.b16 %v1876, %v1873
  %v2135 = vpack.c.b16 %v1877, %v1874
  %v2136 = vpack.c.b16 %v1881, %v1878
  %v2137 = vpack.c.b16 %v1882, %v1879
  %v2138 = vpack.c.b16 %v1883, %v1880
  %v2139 = vpack.c.b16 %v1887, %v1884
  %v2140 = vpack.c.b16 %v1888, %v1885
  %v2141 = vpack.c.b16 %v1889, %v1886
  %v2142 = vpack.c.b16 %v1893, %v1890
  %v2143 = vpack.c.b16 %v1894, %v1891
  %v2144 = vpack.c.b16 %v1895, %v1892
  %v2145 = vpack.c.b16 %v1899, %v1896
  %v2146 = vpack.c.b16 %v1900, %v1897
  %v2147 = vpack.c.b16 %v1901, %v1898
  %v2148 = vpack.c.b16 %v1905, %v1902
  %v2149 = vpack.c.b16 %v1906, %v1903
  %v2150 = vpack.c.b16 %v1907, %v1904
  %v2151 = vpack.c.b16 %v1911, %v1908
  %v2152 = vpack.c.b16 %v1912, %v1909
  %v2153 = vpack.c.b16 %v1913, %v1910
  %v2154 = vpack.c.b16 %v1917, %v1914
  %v2155 = vpack.c.b16 %v1918, %v1915
  %v2156 = vpack.c.b16 %v1919, %v1916
  %v2157 = vpack.c.b16 %v1923, %v1920
  %v2158 = vpack.c.b16 %v1924, %v1921
  %v2159 = vpack.c.b16 %v1925, %v1922
  %v2160 = vpack.c.b16 %v1929, %v1926
  %v2161 = vpack.c.b16 %v1930, %v1927
  %v2162 = vpack.c.b16 %v1931, %v1928
  %v2163 = vpack.c.b16 %v1935, %v1932
  %v2164 = vpack.c.b16 %v1936, %v1933
  %v2165 = vpack.c.b16 %v1937, %v1934
  %v2166 = vpack.c.b16 %v1941, %v1938
  %v2167 = vpack.c.b16 %v1942, %v1939
  %v2168 = vpack.c.b16 %v1943, %v1940
  %v2169 = vpack.c.b16 %v1947, %v1944
  %v2170 = vpack.c.b16 %v1948, %v1945
  %v2171 = vpack.c.b16 %v1949, %v1946
  %v2172 = vpack.c.b16 %v1953, %v1950
  %v2173 = vpack.c.b16 %v1954, %v1951
  %v2174 = vpack.c.b16 %v1955, %v1952
  %v2175 = vpack.c.b16 %v1959, %v1956
  %v2176 = vpack.c.b16 %v1960, %v1957
  %v2177 = vpack.c.b16 %v1961, %v1958
  %v2178 = vpack.c.b16 %v1965, %v1962
  %v2179 = vpack.c.b16 %v1966, %v1963
  %v2180 = vpack.c.b16 %v1967, %v1964
  %v2181 = vpack.c.b16 %v1971, %v1968
  %v2182 = vpack.c.b16 %v1972, %v1969
  %v2183 = vpack.c.b16 %v1973, %v1970
  %v2184 = vpack.c.b16 %v1977, %v1974
  %v2185 = vpack.c.b16 %v1978, %v1975
  %v2186 = vpack.c.b16 %v1979, %v1976
  %v2187 = vpack.c.b16 %v1983, %v1980
  %v2188 = vpack.c.b16 %v1984, %v1981
  %v2189 = vpack.c.b16 %v1985, %v1982
  %v2190 = vpack.c.b16 %v1989, %v1986
  %v2191 = vpack.c.b16 %v1990, %v1987
  %v2192 = vpack.c.b16 %v1991, %v1988
  %v2193 = vpack.c.b16 %v1995, %v1992
  %v2194 = vpack.c.b16 %v1996, %v1993
  %v2195 = vpack.c.b16 %v1997, %v1994
  %v2196 = vpack.c.b16 %v2001, %v1998
  %v2197 = vpack.c.b16 %v2002, %v1999
  %v2198 = vpack.c.b16 %v2003, %v2000
  %v2199 = vpack.c.b16 %v2007, %v2004
  %v2200 = vpack.c.b16 %v2008, %v2005
  %v2201 = vpack.c.b16 %v2009, %v2006
  %v2202 = vpack.c.b16 %v2013, %v2010
  %v2203 = vpack.c.b16 %v2014, %v2011
  %v2204 = vpack.c.b16 %v2015, %v2012
  %v2205 = vpack.c.b16 %v2019, %v2016
  %v2206 = vpack.c.b16 %v2020, %v2017
  %v2207 = vpack.c.b16 %v2021, %v2018
  %v2208 = vpack.c.b16 %v2025, %v2022
  %v2209 = vpack.c.b16 %v2026, %v2023
  %v2210 = vpack.c.b16 %v2027, %v2024
  %v2211 = vpack.c.b16 %v2031, %v2028
  %v2212 = vpack.c.b16 %v2032, %v2029
  %v2213 = vpack.c.b16 %v2033, %v2030
  %v2214 = vpack.c.b16 %v2037, %v2034
  %v2215 = vpack.c.b16 %v2038, %v2035
  %v2216 = vpack.c.b16 %v2039, %v2036
  %v2217 = vpack.c.b16 %v2043, %v2040
  %v2218 = vpack.c.b16 %v2044, %v2041
  %v2219 = vpack.c.b16 %v2045, %v2042
  %v2220 = vpack.c.b16 %v2049, %v2046
  %v2221 = vpack.c.b16 %v2050, %v2047
  %v2222 = vpack.c.b16 %v2051, %v2048
  %v2223 = vpack.c.b16 %v2055, %v2052
  %v2224 = vpack.c.b16 %v2056, %v2053
  %v2225 = vpack.c.b16 %v2057, %v2054
  %v2226 = vpack.c.b16 %v2061, %v2058
  %v2227 = vpack.c.b16 %v2062, %v2059
  %v2228 = vpack.c.b16 %v2063, %v2060
  %v2229 = vpack.c.b16 %v2067, %v2064
  %v2230 = vpack.c.b16 %v2068, %v2065
  %v2231 = vpack.c.b16 %v2069, %v2066
  %v2232 = vpack.c.b16 %v2073, %v2070
  %v2233 = vpack.c.b16 %v2074, %v2071
  %v2234 = vpack.c.b16 %v2075, %v2072
  %v2235 = vpack.c.b16 %v2079, %v2076
  %v2236 = vpack.c.b16 %v2080, %v2077
  %v2237 = vpack.c.b16 %v2081, %v2078
  %v2238 = vpack.c.b16 %v2085, %v2082
  %v2239 = vpack.c.b16 %v2086, %v2083
  %v2240 = vpack.c.b16 %v2087, %v2084
  %v2241 = vpack.c.b16 %v2091, %v2088
  %v2242 = vpack.c.b16 %v2092, %v2089
  %v2243 = vpack.c.b16 %v2093, %v2090
  %v2244 = vpack.c.b16 %v2097, %v2094
  %v2245 = vpack.c.b16 %v2098, %v2095
  %v2246 = vpack.c.b16 %v2099, %v2096
  %vm2394 = vcmask 130048
  %v2396 = vsel %vm2394, %v1200, 0
  %v2399 = vsel %vm2394, %v1207, 0
  %v2402 = vsel %vm2394, %v1214, 0
  %v2405 = vsel %vm2394, %v1221, 0
  %v2408 = vsel %vm2394, %v1228, 0
  %v2411 = vsel %vm2394, %v1235, 0
  %v2414 = vsel %vm2394, %v1242, 0
  %v2417 = vsel %vm2394, %v1249, 0
  %v2420 = vsel %vm2394, %v1256, 0
  %v2423 = vsel %vm2394, %v1263, 0
  %v2426 = vsel %vm2394, %v1270, 0
  %v2429 = vsel %vm2394, %v1277, 0
  %v2432 = vsel %vm2394, %v1284, 0
  %v2435 = vsel %vm2394, %v1291, 0
  %v2438 = vsel %vm2394, %v1298, 0
  %v2441 = vsel %vm2394, %v1305, 0
  %v2444 = vsel %vm2394, %v1312, 0
  %v2447 = vsel %vm2394, %v1319, 0
  %v2450 = vsel %vm2394, %v1326, 0
  %v2453 = vsel %vm2394, %v1333, 0
  %v2456 = vsel %vm2394, %v1340, 0
  %v2459 = vsel %vm2394, %v1347, 0
  %v2462 = vsel %vm2394, %v1354, 0
  %v2465 = vsel %vm2394, %v1361, 0
  %v2468 = vsel %vm2394, %v1368, 0
  %v2471 = vsel %vm2394, %v1375, 0
  %v2474 = vsel %vm2394, %v1382, 0
  %v2477 = vsel %vm2394, %v1389, 0
  %v2480 = vsel %vm2394, %v1396, 0
  %v2483 = vsel %vm2394, %v1403, 0
  %v2486 = vsel %vm2394, %v1410, 0
  %v2489 = vsel %vm2394, %v1417, 0
  %2491 = vmatprep.subr.bf16.mxu0 %v2101
  %2492 = vmatpush1.bf16.msra.mxu0 %v2100
  %2493 = vmatprep.subr.bf16.mxu0 %v2104
  %2494 = vmatpush1.bf16.msra.mxu0 %v2103
  %2495 = vmatprep.subr.bf16.mxu0 %v2107
  %2496 = vmatpush1.bf16.msra.mxu0 %v2106
  %2497 = vmatprep.subr.bf16.mxu0 %v2110
  %2498 = vmatpush1.bf16.msra.mxu0 %v2109
  %2499 = vmatprep.subr.bf16.mxu0 %v2113
  %2500 = vmatpush1.bf16.msra.mxu0 %v2112
  %2501 = vmatprep.subr.bf16.mxu0 %v2116
  %2502 = vmatpush1.bf16.msra.mxu0 %v2115
  %2503 = vmatprep.subr.bf16.mxu0 %v2119
  %2504 = vmatpush1.bf16.msra.mxu0 %v2118
  %2505 = vmatprep.subr.bf16.mxu0 %v2122
  %2506 = vmatpush1.bf16.msra.mxu0 %v2121
  %2507 = vmatprep.subr.bf16.mxu0 %v2125
  %2508 = vmatpush1.bf16.msra.mxu0 %v2124
  %2509 = vmatprep.subr.bf16.mxu0 %v2128
  %2510 = vmatpush1.bf16.msra.mxu0 %v2127
  %2511 = vmatprep.subr.bf16.mxu0 %v2131
  %2512 = vmatpush1.bf16.msra.mxu0 %v2130
  %2513 = vmatprep.subr.bf16.mxu0 %v2134
  %2514 = vmatpush1.bf16.msra.mxu0 %v2133
  %2515 = vmatprep.subr.bf16.mxu0 %v2137
  %2516 = vmatpush1.bf16.msra.mxu0 %v2136
  %2517 = vmatprep.subr.bf16.mxu0 %v2140
  %2518 = vmatpush1.bf16.msra.mxu0 %v2139
  %2519 = vmatprep.subr.bf16.mxu0 %v2143
  %2520 = vmatpush1.bf16.msra.mxu0 %v2142
  %2521 = vmatprep.subr.bf16.mxu0 %v2146
  %2522 = vmatpush1.bf16.msra.mxu0 %v2145
  %2523 = vmatprep.mubr.bf16.mxu0 %v1195
  %2524 = vmatmul.mubr.bf16.gmra.mrb[0].mxu0 %v1194
  %v2525 = vpop.f32.mrb[0].mxu0
  %v2526 = vadd.f32 %v478, %v2525
  %v2527 = vpop.f32.mrb[0].mxu0
  %v2528 = vadd.f32 %v482, %v2527
  %v2529 = vpop.f32.mrb[0].mxu0
  %v2530 = vadd.f32 %v478, %v2529
  %v2531 = vpop.f32.mrb[0].mxu0
  %v2532 = vadd.f32 %v482, %v2531
  %2533 = vmatprep.mubr.bf16.mxu0 %v1202
  %2534 = vmatmul.mubr.bf16.gmra.mrb[0].mxu0 %v1201
  %v2535 = vpop.f32.mrb[0].mxu0
  %v2536 = vadd.f32 %v478, %v2535
  %v2537 = vpop.f32.mrb[0].mxu0
  %v2538 = vadd.f32 %v482, %v2537
  %v2539 = vpop.f32.mrb[0].mxu0
  %v2540 = vadd.f32 %v478, %v2539
  %v2541 = vpop.f32.mrb[0].mxu0
  %v2542 = vadd.f32 %v482, %v2541
  %2543 = vmatprep.mubr.bf16.mxu0 %v1209
  %2544 = vmatmul.mubr.bf16.gmra.mrb[0].mxu0 %v1208
  %v2545 = vpop.f32.mrb[0].mxu0
  %v2546 = vadd.f32 %v478, %v2545
  %v2547 = vpop.f32.mrb[0].mxu0
  %v2548 = vadd.f32 %v482, %v2547
  %v2549 = vpop.f32.mrb[0].mxu0
  %v2550 = vadd.f32 %v478, %v2549
  %v2551 = vpop.f32.mrb[0].mxu0
  %v2552 = vadd.f32 %v482, %v2551
  %2553 = vmatprep.mubr.bf16.mxu0 %v1216
  %2554 = vmatmul.mubr.bf16.gmra.mrb[0].mxu0 %v1215
  %v2555 = vpop.f32.mrb[0].mxu0
  %v2556 = vadd.f32 %v478, %v2555
  %v2557 = vpop.f32.mrb[0].mxu0
  %v2558 = vadd.f32 %v482, %v2557
  %v2559 = vpop.f32.mrb[0].mxu0
  %v2560 = vadd.f32 %v478, %v2559
  %v2561 = vpop.f32.mrb[0].mxu0
  %v2562 = vadd.f32 %v482, %v2561
  %2563 = vmatprep.mubr.bf16.mxu0 %v1223
  %2564 = vmatmul.mubr.bf16.gmra.mrb[0].mxu0 %v1222
  %v2565 = vpop.f32.mrb[0].mxu0
  %v2566 = vadd.f32 %v478, %v2565
  %v2567 = vpop.f32.mrb[0].mxu0
  %v2568 = vadd.f32 %v482, %v2567
  %v2569 = vpop.f32.mrb[0].mxu0
  %v2570 = vadd.f32 %v478, %v2569
  %v2571 = vpop.f32.mrb[0].mxu0
  %v2572 = vadd.f32 %v482, %v2571
  %2573 = vmatprep.mubr.bf16.mxu0 %v1230
  %2574 = vmatmul.mubr.bf16.gmra.mrb[0].mxu0 %v1229
  %v2575 = vpop.f32.mrb[0].mxu0
  %v2576 = vadd.f32 %v478, %v2575
  %v2577 = vpop.f32.mrb[0].mxu0
  %v2578 = vadd.f32 %v482, %v2577
  %v2579 = vpop.f32.mrb[0].mxu0
  %v2580 = vadd.f32 %v478, %v2579
  %v2581 = vpop.f32.mrb[0].mxu0
  %v2582 = vadd.f32 %v482, %v2581
  %2583 = vmatprep.mubr.bf16.mxu0 %v1237
  %2584 = vmatmul.mubr.bf16.gmra.mrb[0].mxu0 %v1236
  %v2585 = vpop.f32.mrb[0].mxu0
  %v2586 = vadd.f32 %v478, %v2585
  %v2587 = vpop.f32.mrb[0].mxu0
  %v2588 = vadd.f32 %v482, %v2587
  %v2589 = vpop.f32.mrb[0].mxu0
  %v2590 = vadd.f32 %v478, %v2589
  %v2591 = vpop.f32.mrb[0].mxu0
  %v2592 = vadd.f32 %v482, %v2591
  %2593 = vmatprep.mubr.bf16.mxu0 %v1244
  %2594 = vmatmul.mubr.bf16.gmra.mrb[0].mxu0 %v1243
  %v2595 = vpop.f32.mrb[0].mxu0
  %v2596 = vadd.f32 %v478, %v2595
  %v2597 = vpop.f32.mrb[0].mxu0
  %v2598 = vadd.f32 %v482, %v2597
  %v2599 = vpop.f32.mrb[0].mxu0
  %v2600 = vadd.f32 %v478, %v2599
  %v2601 = vpop.f32.mrb[0].mxu0
  %v2602 = vadd.f32 %v482, %v2601
  %2603 = vmatprep.mubr.bf16.mxu0 %v1251
  %2604 = vmatmul.mubr.bf16.gmra.mrb[0].mxu0 %v1250
  %v2605 = vpop.f32.mrb[0].mxu0
  %v2606 = vadd.f32 %v478, %v2605
  %v2607 = vpop.f32.mrb[0].mxu0
  %v2608 = vadd.f32 %v482, %v2607
  %v2609 = vpop.f32.mrb[0].mxu0
  %v2610 = vadd.f32 %v478, %v2609
  %v2611 = vpop.f32.mrb[0].mxu0
  %v2612 = vadd.f32 %v482, %v2611
  %2613 = vmatprep.mubr.bf16.mxu0 %v1258
  %2614 = vmatmul.mubr.bf16.gmra.mrb[0].mxu0 %v1257
  %v2615 = vpop.f32.mrb[0].mxu0
  %v2616 = vadd.f32 %v478, %v2615
  %v2617 = vpop.f32.mrb[0].mxu0
  %v2618 = vadd.f32 %v482, %v2617
  %v2619 = vpop.f32.mrb[0].mxu0
  %v2620 = vadd.f32 %v478, %v2619
  %v2621 = vpop.f32.mrb[0].mxu0
  %v2622 = vadd.f32 %v482, %v2621
  %2623 = vmatprep.mubr.bf16.mxu0 %v1265
  %2624 = vmatmul.mubr.bf16.gmra.mrb[0].mxu0 %v1264
  %v2625 = vpop.f32.mrb[0].mxu0
  %v2626 = vadd.f32 %v478, %v2625
  %v2627 = vpop.f32.mrb[0].mxu0
  %v2628 = vadd.f32 %v482, %v2627
  %v2629 = vpop.f32.mrb[0].mxu0
  %v2630 = vadd.f32 %v478, %v2629
  %v2631 = vpop.f32.mrb[0].mxu0
  %v2632 = vadd.f32 %v482, %v2631
  %2633 = vmatprep.mubr.bf16.mxu0 %v1272
  %2634 = vmatmul.mubr.bf16.gmra.mrb[0].mxu0 %v1271
  %v2635 = vpop.f32.mrb[0].mxu0
  %v2636 = vadd.f32 %v478, %v2635
  %v2637 = vpop.f32.mrb[0].mxu0
  %v2638 = vadd.f32 %v482, %v2637
  %v2639 = vpop.f32.mrb[0].mxu0
  %v2640 = vadd.f32 %v478, %v2639
  %v2641 = vpop.f32.mrb[0].mxu0
  %v2642 = vadd.f32 %v482, %v2641
  %2643 = vmatprep.mubr.bf16.mxu0 %v1279
  %2644 = vmatmul.mubr.bf16.gmra.mrb[0].mxu0 %v1278
  %v2645 = vpop.f32.mrb[0].mxu0
  %v2646 = vadd.f32 %v478, %v2645
  %v2647 = vpop.f32.mrb[0].mxu0
  %v2648 = vadd.f32 %v482, %v2647
  %v2649 = vpop.f32.mrb[0].mxu0
  %v2650 = vadd.f32 %v478, %v2649
  %v2651 = vpop.f32.mrb[0].mxu0
  %v2652 = vadd.f32 %v482, %v2651
  %2653 = vmatprep.mubr.bf16.mxu0 %v1286
  %2654 = vmatmul.mubr.bf16.gmra.mrb[0].mxu0 %v1285
  %v2655 = vpop.f32.mrb[0].mxu0
  %v2656 = vadd.f32 %v478, %v2655
  %v2657 = vpop.f32.mrb[0].mxu0
  %v2658 = vadd.f32 %v482, %v2657
  %v2659 = vpop.f32.mrb[0].mxu0
  %v2660 = vadd.f32 %v478, %v2659
  %v2661 = vpop.f32.mrb[0].mxu0
  %v2662 = vadd.f32 %v482, %v2661
  %2663 = vmatprep.mubr.bf16.mxu0 %v1293
  %2664 = vmatmul.mubr.bf16.gmra.mrb[0].mxu0 %v1292
  %v2665 = vpop.f32.mrb[0].mxu0
  %v2666 = vadd.f32 %v478, %v2665
  %v2667 = vpop.f32.mrb[0].mxu0
  %v2668 = vadd.f32 %v482, %v2667
  %v2669 = vpop.f32.mrb[0].mxu0
  %v2670 = vadd.f32 %v478, %v2669
  %v2671 = vpop.f32.mrb[0].mxu0
  %v2672 = vadd.f32 %v482, %v2671
  %2673 = vmatprep.mubr.bf16.mxu0 %v1300
  %2674 = vmatmul.mubr.bf16.gmra.mrb[0].mxu0 %v1299
  %v2675 = vpop.f32.mrb[0].mxu0
  %v2676 = vadd.f32 %v478, %v2675
  %v2677 = vpop.f32.mrb[0].mxu0
  %v2678 = vadd.f32 %v482, %v2677
  %v2679 = vpop.f32.mrb[0].mxu0
  %v2680 = vadd.f32 %v478, %v2679
  %v2681 = vpop.f32.mrb[0].mxu0
  %v2682 = vadd.f32 %v482, %v2681
  %2683 = vmatprep.mubr.bf16.mxu0 %v1307
  %2684 = vmatmul.mubr.bf16.gmra.mrb[0].mxu0 %v1306
  %v2685 = vpop.f32.mrb[0].mxu0
  %v2686 = vadd.f32 %v478, %v2685
  %v2687 = vpop.f32.mrb[0].mxu0
  %v2688 = vadd.f32 %v482, %v2687
  %v2689 = vpop.f32.mrb[0].mxu0
  %v2690 = vadd.f32 %v478, %v2689
  %v2691 = vpop.f32.mrb[0].mxu0
  %v2692 = vadd.f32 %v482, %v2691
  %2693 = vmatprep.mubr.bf16.mxu0 %v1314
  %2694 = vmatmul.mubr.bf16.gmra.mrb[0].mxu0 %v1313
  %v2695 = vpop.f32.mrb[0].mxu0
  %v2696 = vadd.f32 %v478, %v2695
  %v2697 = vpop.f32.mrb[0].mxu0
  %v2698 = vadd.f32 %v482, %v2697
  %v2699 = vpop.f32.mrb[0].mxu0
  %v2700 = vadd.f32 %v478, %v2699
  %v2701 = vpop.f32.mrb[0].mxu0
  %v2702 = vadd.f32 %v482, %v2701
  %2703 = vmatprep.mubr.bf16.mxu0 %v1321
  %2704 = vmatmul.mubr.bf16.gmra.mrb[0].mxu0 %v1320
  %v2705 = vpop.f32.mrb[0].mxu0
  %v2706 = vadd.f32 %v478, %v2705
  %v2707 = vpop.f32.mrb[0].mxu0
  %v2708 = vadd.f32 %v482, %v2707
  %v2709 = vpop.f32.mrb[0].mxu0
  %v2710 = vadd.f32 %v478, %v2709
  %v2711 = vpop.f32.mrb[0].mxu0
  %v2712 = vadd.f32 %v482, %v2711
  %2713 = vmatprep.mubr.bf16.mxu0 %v1328
  %2714 = vmatmul.mubr.bf16.gmra.mrb[0].mxu0 %v1327
  %v2715 = vpop.f32.mrb[0].mxu0
  %v2716 = vadd.f32 %v478, %v2715
  %v2717 = vpop.f32.mrb[0].mxu0
  %v2718 = vadd.f32 %v482, %v2717
  %v2719 = vpop.f32.mrb[0].mxu0
  %v2720 = vadd.f32 %v478, %v2719
  %v2721 = vpop.f32.mrb[0].mxu0
  %v2722 = vadd.f32 %v482, %v2721
  %2723 = vmatprep.mubr.bf16.mxu0 %v1335
  %2724 = vmatmul.mubr.bf16.gmra.mrb[0].mxu0 %v1334
  %v2725 = vpop.f32.mrb[0].mxu0
  %v2726 = vadd.f32 %v478, %v2725
  %v2727 = vpop.f32.mrb[0].mxu0
  %v2728 = vadd.f32 %v482, %v2727
  %v2729 = vpop.f32.mrb[0].mxu0
  %v2730 = vadd.f32 %v478, %v2729
  %v2731 = vpop.f32.mrb[0].mxu0
  %v2732 = vadd.f32 %v482, %v2731
  %2733 = vmatprep.mubr.bf16.mxu0 %v1342
  %2734 = vmatmul.mubr.bf16.gmra.mrb[0].mxu0 %v1341
  %v2735 = vpop.f32.mrb[0].mxu0
  %v2736 = vadd.f32 %v478, %v2735
  %v2737 = vpop.f32.mrb[0].mxu0
  %v2738 = vadd.f32 %v482, %v2737
  %v2739 = vpop.f32.mrb[0].mxu0
  %v2740 = vadd.f32 %v478, %v2739
  %v2741 = vpop.f32.mrb[0].mxu0
  %v2742 = vadd.f32 %v482, %v2741
  %2743 = vmatprep.mubr.bf16.mxu0 %v1349
  %2744 = vmatmul.mubr.bf16.gmra.mrb[0].mxu0 %v1348
  %v2745 = vpop.f32.mrb[0].mxu0
  %v2746 = vadd.f32 %v478, %v2745
  %v2747 = vpop.f32.mrb[0].mxu0
  %v2748 = vadd.f32 %v482, %v2747
  %v2749 = vpop.f32.mrb[0].mxu0
  %v2750 = vadd.f32 %v478, %v2749
  %v2751 = vpop.f32.mrb[0].mxu0
  %v2752 = vadd.f32 %v482, %v2751
  %2753 = vmatprep.mubr.bf16.mxu0 %v1356
  %2754 = vmatmul.mubr.bf16.gmra.mrb[0].mxu0 %v1355
  %v2755 = vpop.f32.mrb[0].mxu0
  %v2756 = vadd.f32 %v478, %v2755
  %v2757 = vpop.f32.mrb[0].mxu0
  %v2758 = vadd.f32 %v482, %v2757
  %v2759 = vpop.f32.mrb[0].mxu0
  %v2760 = vadd.f32 %v478, %v2759
  %v2761 = vpop.f32.mrb[0].mxu0
  %v2762 = vadd.f32 %v482, %v2761
  %2763 = vmatprep.mubr.bf16.mxu0 %v1363
  %2764 = vmatmul.mubr.bf16.gmra.mrb[0].mxu0 %v1362
  %v2765 = vpop.f32.mrb[0].mxu0
  %v2766 = vadd.f32 %v478, %v2765
  %v2767 = vpop.f32.mrb[0].mxu0
  %v2768 = vadd.f32 %v482, %v2767
  %v2769 = vpop.f32.mrb[0].mxu0
  %v2770 = vadd.f32 %v478, %v2769
  %v2771 = vpop.f32.mrb[0].mxu0
  %v2772 = vadd.f32 %v482, %v2771
  %2773 = vmatprep.mubr.bf16.mxu0 %v1370
  %2774 = vmatmul.mubr.bf16.gmra.mrb[0].mxu0 %v1369
  %v2775 = vpop.f32.mrb[0].mxu0
  %v2776 = vadd.f32 %v478, %v2775
  %v2777 = vpop.f32.mrb[0].mxu0
  %v2778 = vadd.f32 %v482, %v2777
  %v2779 = vpop.f32.mrb[0].mxu0
  %v2780 = vadd.f32 %v478, %v2779
  %v2781 = vpop.f32.mrb[0].mxu0
  %v2782 = vadd.f32 %v482, %v2781
  %2783 = vmatprep.mubr.bf16.mxu0 %v1377
  %2784 = vmatmul.mubr.bf16.gmra.mrb[0].mxu0 %v1376
  %v2785 = vpop.f32.mrb[0].mxu0
  %v2786 = vadd.f32 %v478, %v2785
  %v2787 = vpop.f32.mrb[0].mxu0
  %v2788 = vadd.f32 %v482, %v2787
  %v2789 = vpop.f32.mrb[0].mxu0
  %v2790 = vadd.f32 %v478, %v2789
  %v2791 = vpop.f32.mrb[0].mxu0
  %v2792 = vadd.f32 %v482, %v2791
  %2793 = vmatprep.mubr.bf16.mxu0 %v1384
  %2794 = vmatmul.mubr.bf16.gmra.mrb[0].mxu0 %v1383
  %v2795 = vpop.f32.mrb[0].mxu0
  %v2796 = vadd.f32 %v478, %v2795
  %v2797 = vpop.f32.mrb[0].mxu0
  %v2798 = vadd.f32 %v482, %v2797
  %v2799 = vpop.f32.mrb[0].mxu0
  %v2800 = vadd.f32 %v478, %v2799
  %v2801 = vpop.f32.mrb[0].mxu0
  %v2802 = vadd.f32 %v482, %v2801
  %2803 = vmatprep.mubr.bf16.mxu0 %v1391
  %2804 = vmatmul.mubr.bf16.gmra.mrb[0].mxu0 %v1390
  %v2805 = vpop.f32.mrb[0].mxu0
  %v2806 = vadd.f32 %v478, %v2805
  %v2807 = vpop.f32.mrb[0].mxu0
  %v2808 = vadd.f32 %v482, %v2807
  %v2809 = vpop.f32.mrb[0].mxu0
  %v2810 = vadd.f32 %v478, %v2809
  %v2811 = vpop.f32.mrb[0].mxu0
  %v2812 = vadd.f32 %v482, %v2811
  %2813 = vmatprep.mubr.bf16.mxu0 %v1398
  %2814 = vmatmul.mubr.bf16.gmra.mrb[0].mxu0 %v1397
  %v2815 = vpop.f32.mrb[0].mxu0
  %v2816 = vadd.f32 %v478, %v2815
  %v2817 = vpop.f32.mrb[0].mxu0
  %v2818 = vadd.f32 %v482, %v2817
  %v2819 = vpop.f32.mrb[0].mxu0
  %v2820 = vadd.f32 %v478, %v2819
  %v2821 = vpop.f32.mrb[0].mxu0
  %v2822 = vadd.f32 %v482, %v2821
  %2823 = vmatprep.mubr.bf16.mxu0 %v1405
  %2824 = vmatmul.mubr.bf16.gmra.mrb[0].mxu0 %v1404
  %v2825 = vpop.f32.mrb[0].mxu0
  %v2826 = vadd.f32 %v478, %v2825
  %v2827 = vpop.f32.mrb[0].mxu0
  %v2828 = vadd.f32 %v482, %v2827
  %v2829 = vpop.f32.mrb[0].mxu0
  %v2830 = vadd.f32 %v478, %v2829
  %v2831 = vpop.f32.mrb[0].mxu0
  %v2832 = vadd.f32 %v482, %v2831
  %2833 = vmatprep.mubr.bf16.mxu0 %v1412
  %2834 = vmatmul.mubr.bf16.gmra.mrb[0].mxu0 %v1411
  %v2835 = vpop.f32.mrb[0].mxu0
  %v2836 = vadd.f32 %v478, %v2835
  %v2837 = vpop.f32.mrb[0].mxu0
  %v2838 = vadd.f32 %v482, %v2837
  %v2839 = vpop.f32.mrb[0].mxu0
  %v2840 = vadd.f32 %v478, %v2839
  %v2841 = vpop.f32.mrb[0].mxu0
  %v2842 = vadd.f32 %v482, %v2841
  %2843 = vdwg.mxu0
  %2844 = vmatprep.subr.bf16.mxu0 %v2149
  %2845 = vmatpush1.bf16.msra.mxu0 %v2148
  %2846 = vmatprep.subr.bf16.mxu0 %v2152
  %2847 = vmatpush1.bf16.msra.mxu0 %v2151
  %2848 = vmatprep.subr.bf16.mxu0 %v2155
  %2849 = vmatpush1.bf16.msra.mxu0 %v2154
  %2850 = vmatprep.subr.bf16.mxu0 %v2158
  %2851 = vmatpush1.bf16.msra.mxu0 %v2157
  %2852 = vmatprep.subr.bf16.mxu0 %v2161
  %2853 = vmatpush1.bf16.msra.mxu0 %v2160
  %2854 = vmatprep.subr.bf16.mxu0 %v2164
  %2855 = vmatpush1.bf16.msra.mxu0 %v2163
  %2856 = vmatprep.subr.bf16.mxu0 %v2167
  %2857 = vmatpush1.bf16.msra.mxu0 %v2166
  %2858 = vmatprep.subr.bf16.mxu0 %v2170
  %2859 = vmatpush1.bf16.msra.mxu0 %v2169
  %2860 = vmatprep.subr.bf16.mxu0 %v2173
  %2861 = vmatpush1.bf16.msra.mxu0 %v2172
  %2862 = vmatprep.subr.bf16.mxu0 %v2176
  %2863 = vmatpush1.bf16.msra.mxu0 %v2175
  %2864 = vmatprep.subr.bf16.mxu0 %v2179
  %2865 = vmatpush1.bf16.msra.mxu0 %v2178
  %2866 = vmatprep.subr.bf16.mxu0 %v2182
  %2867 = vmatpush1.bf16.msra.mxu0 %v2181
  %2868 = vmatprep.subr.bf16.mxu0 %v2185
  %2869 = vmatpush1.bf16.msra.mxu0 %v2184
  %2870 = vmatprep.subr.bf16.mxu0 %v2188
  %2871 = vmatpush1.bf16.msra.mxu0 %v2187
  %2872 = vmatprep.subr.bf16.mxu0 %v2191
  %2873 = vmatpush1.bf16.msra.mxu0 %v2190
  %2874 = vmatprep.subr.bf16.mxu0 %v2194
  %2875 = vmatpush1.bf16.msra.mxu0 %v2193
  %2876 = vmatprep.mubr.bf16.mxu0 %v1197
  %2877 = vmatmul.mubr.bf16.gmra.mrb[0].mxu0 %v1196
  %v2878 = vpop.f32.mrb[0].mxu0
  %v2879 = vadd.f32 %v2526, %v2878
  %v2880 = vpop.f32.mrb[0].mxu0
  %v2881 = vadd.f32 %v2528, %v2880
  %v2882 = vpop.f32.mrb[0].mxu0
  %v2883 = vadd.f32 %v2530, %v2882
  %v2884 = vpop.f32.mrb[0].mxu0
  %v2885 = vadd.f32 %v2532, %v2884
  %2886 = vmatprep.mubr.bf16.mxu0 %v1204
  %2887 = vmatmul.mubr.bf16.gmra.mrb[0].mxu0 %v1203
  %v2888 = vpop.f32.mrb[0].mxu0
  %v2889 = vadd.f32 %v2536, %v2888
  %v2890 = vpop.f32.mrb[0].mxu0
  %v2891 = vadd.f32 %v2538, %v2890
  %v2892 = vpop.f32.mrb[0].mxu0
  %v2893 = vadd.f32 %v2540, %v2892
  %v2894 = vpop.f32.mrb[0].mxu0
  %v2895 = vadd.f32 %v2542, %v2894
  %2896 = vmatprep.mubr.bf16.mxu0 %v1211
  %2897 = vmatmul.mubr.bf16.gmra.mrb[0].mxu0 %v1210
  %v2898 = vpop.f32.mrb[0].mxu0
  %v2899 = vadd.f32 %v2546, %v2898
  %v2900 = vpop.f32.mrb[0].mxu0
  %v2901 = vadd.f32 %v2548, %v2900
  %v2902 = vpop.f32.mrb[0].mxu0
  %v2903 = vadd.f32 %v2550, %v2902
  %v2904 = vpop.f32.mrb[0].mxu0
  %v2905 = vadd.f32 %v2552, %v2904
  %2906 = vmatprep.mubr.bf16.mxu0 %v1218
  %2907 = vmatmul.mubr.bf16.gmra.mrb[0].mxu0 %v1217
  %v2908 = vpop.f32.mrb[0].mxu0
  %v2909 = vadd.f32 %v2556, %v2908
  %v2910 = vpop.f32.mrb[0].mxu0
  %v2911 = vadd.f32 %v2558, %v2910
  %v2912 = vpop.f32.mrb[0].mxu0
  %v2913 = vadd.f32 %v2560, %v2912
  %v2914 = vpop.f32.mrb[0].mxu0
  %v2915 = vadd.f32 %v2562, %v2914
  %2916 = vmatprep.mubr.bf16.mxu0 %v1225
  %2917 = vmatmul.mubr.bf16.gmra.mrb[0].mxu0 %v1224
  %v2918 = vpop.f32.mrb[0].mxu0
  %v2919 = vadd.f32 %v2566, %v2918
  %v2920 = vpop.f32.mrb[0].mxu0
  %v2921 = vadd.f32 %v2568, %v2920
  %v2922 = vpop.f32.mrb[0].mxu0
  %v2923 = vadd.f32 %v2570, %v2922
  %v2924 = vpop.f32.mrb[0].mxu0
  %v2925 = vadd.f32 %v2572, %v2924
  %2926 = vmatprep.mubr.bf16.mxu0 %v1232
  %2927 = vmatmul.mubr.bf16.gmra.mrb[0].mxu0 %v1231
  %v2928 = vpop.f32.mrb[0].mxu0
  %v2929 = vadd.f32 %v2576, %v2928
  %v2930 = vpop.f32.mrb[0].mxu0
  %v2931 = vadd.f32 %v2578, %v2930
  %v2932 = vpop.f32.mrb[0].mxu0
  %v2933 = vadd.f32 %v2580, %v2932
  %v2934 = vpop.f32.mrb[0].mxu0
  %v2935 = vadd.f32 %v2582, %v2934
  %2936 = vmatprep.mubr.bf16.mxu0 %v1239
  %2937 = vmatmul.mubr.bf16.gmra.mrb[0].mxu0 %v1238
  %v2938 = vpop.f32.mrb[0].mxu0
  %v2939 = vadd.f32 %v2586, %v2938
  %v2940 = vpop.f32.mrb[0].mxu0
  %v2941 = vadd.f32 %v2588, %v2940
  %v2942 = vpop.f32.mrb[0].mxu0
  %v2943 = vadd.f32 %v2590, %v2942
  %v2944 = vpop.f32.mrb[0].mxu0
  %v2945 = vadd.f32 %v2592, %v2944
  %2946 = vmatprep.mubr.bf16.mxu0 %v1246
  %2947 = vmatmul.mubr.bf16.gmra.mrb[0].mxu0 %v1245
  %v2948 = vpop.f32.mrb[0].mxu0
  %v2949 = vadd.f32 %v2596, %v2948
  %v2950 = vpop.f32.mrb[0].mxu0
  %v2951 = vadd.f32 %v2598, %v2950
  %v2952 = vpop.f32.mrb[0].mxu0
  %v2953 = vadd.f32 %v2600, %v2952
  %v2954 = vpop.f32.mrb[0].mxu0
  %v2955 = vadd.f32 %v2602, %v2954
  %2956 = vmatprep.mubr.bf16.mxu0 %v1253
  %2957 = vmatmul.mubr.bf16.gmra.mrb[0].mxu0 %v1252
  %v2958 = vpop.f32.mrb[0].mxu0
  %v2959 = vadd.f32 %v2606, %v2958
  %v2960 = vpop.f32.mrb[0].mxu0
  %v2961 = vadd.f32 %v2608, %v2960
  %v2962 = vpop.f32.mrb[0].mxu0
  %v2963 = vadd.f32 %v2610, %v2962
  %v2964 = vpop.f32.mrb[0].mxu0
  %v2965 = vadd.f32 %v2612, %v2964
  %2966 = vmatprep.mubr.bf16.mxu0 %v1260
  %2967 = vmatmul.mubr.bf16.gmra.mrb[0].mxu0 %v1259
  %v2968 = vpop.f32.mrb[0].mxu0
  %v2969 = vadd.f32 %v2616, %v2968
  %v2970 = vpop.f32.mrb[0].mxu0
  %v2971 = vadd.f32 %v2618, %v2970
  %v2972 = vpop.f32.mrb[0].mxu0
  %v2973 = vadd.f32 %v2620, %v2972
  %v2974 = vpop.f32.mrb[0].mxu0
  %v2975 = vadd.f32 %v2622, %v2974
  %2976 = vmatprep.mubr.bf16.mxu0 %v1267
  %2977 = vmatmul.mubr.bf16.gmra.mrb[0].mxu0 %v1266
  %v2978 = vpop.f32.mrb[0].mxu0
  %v2979 = vadd.f32 %v2626, %v2978
  %v2980 = vpop.f32.mrb[0].mxu0
  %v2981 = vadd.f32 %v2628, %v2980
  %v2982 = vpop.f32.mrb[0].mxu0
  %v2983 = vadd.f32 %v2630, %v2982
  %v2984 = vpop.f32.mrb[0].mxu0
  %v2985 = vadd.f32 %v2632, %v2984
  %2986 = vmatprep.mubr.bf16.mxu0 %v1274
  %2987 = vmatmul.mubr.bf16.gmra.mrb[0].mxu0 %v1273
  %v2988 = vpop.f32.mrb[0].mxu0
  %v2989 = vadd.f32 %v2636, %v2988
  %v2990 = vpop.f32.mrb[0].mxu0
  %v2991 = vadd.f32 %v2638, %v2990
  %v2992 = vpop.f32.mrb[0].mxu0
  %v2993 = vadd.f32 %v2640, %v2992
  %v2994 = vpop.f32.mrb[0].mxu0
  %v2995 = vadd.f32 %v2642, %v2994
  %2996 = vmatprep.mubr.bf16.mxu0 %v1281
  %2997 = vmatmul.mubr.bf16.gmra.mrb[0].mxu0 %v1280
  %v2998 = vpop.f32.mrb[0].mxu0
  %v2999 = vadd.f32 %v2646, %v2998
  %v3000 = vpop.f32.mrb[0].mxu0
  %v3001 = vadd.f32 %v2648, %v3000
  %v3002 = vpop.f32.mrb[0].mxu0
  %v3003 = vadd.f32 %v2650, %v3002
  %v3004 = vpop.f32.mrb[0].mxu0
  %v3005 = vadd.f32 %v2652, %v3004
  %3006 = vmatprep.mubr.bf16.mxu0 %v1288
  %3007 = vmatmul.mubr.bf16.gmra.mrb[0].mxu0 %v1287
  %v3008 = vpop.f32.mrb[0].mxu0
  %v3009 = vadd.f32 %v2656, %v3008
  %v3010 = vpop.f32.mrb[0].mxu0
  %v3011 = vadd.f32 %v2658, %v3010
  %v3012 = vpop.f32.mrb[0].mxu0
  %v3013 = vadd.f32 %v2660, %v3012
  %v3014 = vpop.f32.mrb[0].mxu0
  %v3015 = vadd.f32 %v2662, %v3014
  %3016 = vmatprep.mubr.bf16.mxu0 %v1295
  %3017 = vmatmul.mubr.bf16.gmra.mrb[0].mxu0 %v1294
  %v3018 = vpop.f32.mrb[0].mxu0
  %v3019 = vadd.f32 %v2666, %v3018
  %v3020 = vpop.f32.mrb[0].mxu0
  %v3021 = vadd.f32 %v2668, %v3020
  %v3022 = vpop.f32.mrb[0].mxu0
  %v3023 = vadd.f32 %v2670, %v3022
  %v3024 = vpop.f32.mrb[0].mxu0
  %v3025 = vadd.f32 %v2672, %v3024
  %3026 = vmatprep.mubr.bf16.mxu0 %v1302
  %3027 = vmatmul.mubr.bf16.gmra.mrb[0].mxu0 %v1301
  %v3028 = vpop.f32.mrb[0].mxu0
  %v3029 = vadd.f32 %v2676, %v3028
  %v3030 = vpop.f32.mrb[0].mxu0
  %v3031 = vadd.f32 %v2678, %v3030
  %v3032 = vpop.f32.mrb[0].mxu0
  %v3033 = vadd.f32 %v2680, %v3032
  %v3034 = vpop.f32.mrb[0].mxu0
  %v3035 = vadd.f32 %v2682, %v3034
  %3036 = vmatprep.mubr.bf16.mxu0 %v1309
  %3037 = vmatmul.mubr.bf16.gmra.mrb[0].mxu0 %v1308
  %v3038 = vpop.f32.mrb[0].mxu0
  %v3039 = vadd.f32 %v2686, %v3038
  %v3040 = vpop.f32.mrb[0].mxu0
  %v3041 = vadd.f32 %v2688, %v3040
  %v3042 = vpop.f32.mrb[0].mxu0
  %v3043 = vadd.f32 %v2690, %v3042
  %v3044 = vpop.f32.mrb[0].mxu0
  %v3045 = vadd.f32 %v2692, %v3044
  %3046 = vmatprep.mubr.bf16.mxu0 %v1316
  %3047 = vmatmul.mubr.bf16.gmra.mrb[0].mxu0 %v1315
  %v3048 = vpop.f32.mrb[0].mxu0
  %v3049 = vadd.f32 %v2696, %v3048
  %v3050 = vpop.f32.mrb[0].mxu0
  %v3051 = vadd.f32 %v2698, %v3050
  %v3052 = vpop.f32.mrb[0].mxu0
  %v3053 = vadd.f32 %v2700, %v3052
  %v3054 = vpop.f32.mrb[0].mxu0
  %v3055 = vadd.f32 %v2702, %v3054
  %3056 = vmatprep.mubr.bf16.mxu0 %v1323
  %3057 = vmatmul.mubr.bf16.gmra.mrb[0].mxu0 %v1322
  %v3058 = vpop.f32.mrb[0].mxu0
  %v3059 = vadd.f32 %v2706, %v3058
  %v3060 = vpop.f32.mrb[0].mxu0
  %v3061 = vadd.f32 %v2708, %v3060
  %v3062 = vpop.f32.mrb[0].mxu0
  %v3063 = vadd.f32 %v2710, %v3062
  %v3064 = vpop.f32.mrb[0].mxu0
  %v3065 = vadd.f32 %v2712, %v3064
  %3066 = vmatprep.mubr.bf16.mxu0 %v1330
  %3067 = vmatmul.mubr.bf16.gmra.mrb[0].mxu0 %v1329
  %v3068 = vpop.f32.mrb[0].mxu0
  %v3069 = vadd.f32 %v2716, %v3068
  %v3070 = vpop.f32.mrb[0].mxu0
  %v3071 = vadd.f32 %v2718, %v3070
  %v3072 = vpop.f32.mrb[0].mxu0
  %v3073 = vadd.f32 %v2720, %v3072
  %v3074 = vpop.f32.mrb[0].mxu0
  %v3075 = vadd.f32 %v2722, %v3074
  %3076 = vmatprep.mubr.bf16.mxu0 %v1337
  %3077 = vmatmul.mubr.bf16.gmra.mrb[0].mxu0 %v1336
  %v3078 = vpop.f32.mrb[0].mxu0
  %v3079 = vadd.f32 %v2726, %v3078
  %v3080 = vpop.f32.mrb[0].mxu0
  %v3081 = vadd.f32 %v2728, %v3080
  %v3082 = vpop.f32.mrb[0].mxu0
  %v3083 = vadd.f32 %v2730, %v3082
  %v3084 = vpop.f32.mrb[0].mxu0
  %v3085 = vadd.f32 %v2732, %v3084
  %3086 = vmatprep.mubr.bf16.mxu0 %v1344
  %3087 = vmatmul.mubr.bf16.gmra.mrb[0].mxu0 %v1343
  %v3088 = vpop.f32.mrb[0].mxu0
  %v3089 = vadd.f32 %v2736, %v3088
  %v3090 = vpop.f32.mrb[0].mxu0
  %v3091 = vadd.f32 %v2738, %v3090
  %v3092 = vpop.f32.mrb[0].mxu0
  %v3093 = vadd.f32 %v2740, %v3092
  %v3094 = vpop.f32.mrb[0].mxu0
  %v3095 = vadd.f32 %v2742, %v3094
  %3096 = vmatprep.mubr.bf16.mxu0 %v1351
  %3097 = vmatmul.mubr.bf16.gmra.mrb[0].mxu0 %v1350
  %v3098 = vpop.f32.mrb[0].mxu0
  %v3099 = vadd.f32 %v2746, %v3098
  %v3100 = vpop.f32.mrb[0].mxu0
  %v3101 = vadd.f32 %v2748, %v3100
  %v3102 = vpop.f32.mrb[0].mxu0
  %v3103 = vadd.f32 %v2750, %v3102
  %v3104 = vpop.f32.mrb[0].mxu0
  %v3105 = vadd.f32 %v2752, %v3104
  %3106 = vmatprep.mubr.bf16.mxu0 %v1358
  %3107 = vmatmul.mubr.bf16.gmra.mrb[0].mxu0 %v1357
  %v3108 = vpop.f32.mrb[0].mxu0
  %v3109 = vadd.f32 %v2756, %v3108
  %v3110 = vpop.f32.mrb[0].mxu0
  %v3111 = vadd.f32 %v2758, %v3110
  %v3112 = vpop.f32.mrb[0].mxu0
  %v3113 = vadd.f32 %v2760, %v3112
  %v3114 = vpop.f32.mrb[0].mxu0
  %v3115 = vadd.f32 %v2762, %v3114
  %3116 = vmatprep.mubr.bf16.mxu0 %v1365
  %3117 = vmatmul.mubr.bf16.gmra.mrb[0].mxu0 %v1364
  %v3118 = vpop.f32.mrb[0].mxu0
  %v3119 = vadd.f32 %v2766, %v3118
  %v3120 = vpop.f32.mrb[0].mxu0
  %v3121 = vadd.f32 %v2768, %v3120
  %v3122 = vpop.f32.mrb[0].mxu0
  %v3123 = vadd.f32 %v2770, %v3122
  %v3124 = vpop.f32.mrb[0].mxu0
  %v3125 = vadd.f32 %v2772, %v3124
  %3126 = vmatprep.mubr.bf16.mxu0 %v1372
  %3127 = vmatmul.mubr.bf16.gmra.mrb[0].mxu0 %v1371
  %v3128 = vpop.f32.mrb[0].mxu0
  %v3129 = vadd.f32 %v2776, %v3128
  %v3130 = vpop.f32.mrb[0].mxu0
  %v3131 = vadd.f32 %v2778, %v3130
  %v3132 = vpop.f32.mrb[0].mxu0
  %v3133 = vadd.f32 %v2780, %v3132
  %v3134 = vpop.f32.mrb[0].mxu0
  %v3135 = vadd.f32 %v2782, %v3134
  %3136 = vmatprep.mubr.bf16.mxu0 %v1379
  %3137 = vmatmul.mubr.bf16.gmra.mrb[0].mxu0 %v1378
  %v3138 = vpop.f32.mrb[0].mxu0
  %v3139 = vadd.f32 %v2786, %v3138
  %v3140 = vpop.f32.mrb[0].mxu0
  %v3141 = vadd.f32 %v2788, %v3140
  %v3142 = vpop.f32.mrb[0].mxu0
  %v3143 = vadd.f32 %v2790, %v3142
  %v3144 = vpop.f32.mrb[0].mxu0
  %v3145 = vadd.f32 %v2792, %v3144
  %3146 = vmatprep.mubr.bf16.mxu0 %v1386
  %3147 = vmatmul.mubr.bf16.gmra.mrb[0].mxu0 %v1385
  %v3148 = vpop.f32.mrb[0].mxu0
  %v3149 = vadd.f32 %v2796, %v3148
  %v3150 = vpop.f32.mrb[0].mxu0
  %v3151 = vadd.f32 %v2798, %v3150
  %v3152 = vpop.f32.mrb[0].mxu0
  %v3153 = vadd.f32 %v2800, %v3152
  %v3154 = vpop.f32.mrb[0].mxu0
  %v3155 = vadd.f32 %v2802, %v3154
  %3156 = vmatprep.mubr.bf16.mxu0 %v1393
  %3157 = vmatmul.mubr.bf16.gmra.mrb[0].mxu0 %v1392
  %v3158 = vpop.f32.mrb[0].mxu0
  %v3159 = vadd.f32 %v2806, %v3158
  %v3160 = vpop.f32.mrb[0].mxu0
  %v3161 = vadd.f32 %v2808, %v3160
  %v3162 = vpop.f32.mrb[0].mxu0
  %v3163 = vadd.f32 %v2810, %v3162
  %v3164 = vpop.f32.mrb[0].mxu0
  %v3165 = vadd.f32 %v2812, %v3164
  %3166 = vmatprep.mubr.bf16.mxu0 %v1400
  %3167 = vmatmul.mubr.bf16.gmra.mrb[0].mxu0 %v1399
  %v3168 = vpop.f32.mrb[0].mxu0
  %v3169 = vadd.f32 %v2816, %v3168
  %v3170 = vpop.f32.mrb[0].mxu0
  %v3171 = vadd.f32 %v2818, %v3170
  %v3172 = vpop.f32.mrb[0].mxu0
  %v3173 = vadd.f32 %v2820, %v3172
  %v3174 = vpop.f32.mrb[0].mxu0
  %v3175 = vadd.f32 %v2822, %v3174
  %3176 = vmatprep.mubr.bf16.mxu0 %v1407
  %3177 = vmatmul.mubr.bf16.gmra.mrb[0].mxu0 %v1406
  %v3178 = vpop.f32.mrb[0].mxu0
  %v3179 = vadd.f32 %v2826, %v3178
  %v3180 = vpop.f32.mrb[0].mxu0
  %v3181 = vadd.f32 %v2828, %v3180
  %v3182 = vpop.f32.mrb[0].mxu0
  %v3183 = vadd.f32 %v2830, %v3182
  %v3184 = vpop.f32.mrb[0].mxu0
  %v3185 = vadd.f32 %v2832, %v3184
  %3186 = vmatprep.mubr.bf16.mxu0 %v1414
  %3187 = vmatmul.mubr.bf16.gmra.mrb[0].mxu0 %v1413
  %v3188 = vpop.f32.mrb[0].mxu0
  %v3189 = vadd.f32 %v2836, %v3188
  %v3190 = vpop.f32.mrb[0].mxu0
  %v3191 = vadd.f32 %v2838, %v3190
  %v3192 = vpop.f32.mrb[0].mxu0
  %v3193 = vadd.f32 %v2840, %v3192
  %v3194 = vpop.f32.mrb[0].mxu0
  %v3195 = vadd.f32 %v2842, %v3194
  %3196 = vdwg.mxu0
  %3197 = vmatprep.subr.bf16.mxu0 %v2197
  %3198 = vmatpush1.bf16.msra.mxu0 %v2196
  %3199 = vmatprep.subr.bf16.mxu0 %v2200
  %3200 = vmatpush1.bf16.msra.mxu0 %v2199
  %3201 = vmatprep.subr.bf16.mxu0 %v2203
  %3202 = vmatpush1.bf16.msra.mxu0 %v2202
  %3203 = vmatprep.subr.bf16.mxu0 %v2206
  %3204 = vmatpush1.bf16.msra.mxu0 %v2205
  %3205 = vmatprep.subr.bf16.mxu0 %v2209
  %3206 = vmatpush1.bf16.msra.mxu0 %v2208
  %3207 = vmatprep.subr.bf16.mxu0 %v2212
  %3208 = vmatpush1.bf16.msra.mxu0 %v2211
  %3209 = vmatprep.subr.bf16.mxu0 %v2215
  %3210 = vmatpush1.bf16.msra.mxu0 %v2214
  %3211 = vmatprep.subr.bf16.mxu0 %v2218
  %3212 = vmatpush1.bf16.msra.mxu0 %v2217
  %3213 = vmatprep.subr.bf16.mxu0 %v2221
  %3214 = vmatpush1.bf16.msra.mxu0 %v2220
  %3215 = vmatprep.subr.bf16.mxu0 %v2224
  %3216 = vmatpush1.bf16.msra.mxu0 %v2223
  %3217 = vmatprep.subr.bf16.mxu0 %v2227
  %3218 = vmatpush1.bf16.msra.mxu0 %v2226
  %3219 = vmatprep.subr.bf16.mxu0 %v2230
  %3220 = vmatpush1.bf16.msra.mxu0 %v2229
  %3221 = vmatprep.subr.bf16.mxu0 %v2233
  %3222 = vmatpush1.bf16.msra.mxu0 %v2232
  %3223 = vmatprep.subr.bf16.mxu0 %v2236
  %3224 = vmatpush1.bf16.msra.mxu0 %v2235
  %3225 = vmatprep.subr.bf16.mxu0 %v2239
  %3226 = vmatpush1.bf16.msra.mxu0 %v2238
  %3227 = vmatprep.subr.bf16.mxu0 %v2242
  %3228 = vmatpush1.bf16.msra.mxu0 %v2241
  %3229 = vmatprep.mubr.bf16.mxu0 %v1199
  %3230 = vmatmul.mubr.bf16.gmra.mrb[0].mxu0 %v1198
  %v3231 = vpop.f32.mrb[0].mxu0
  %v3232 = vadd.f32 %v2879, %v3231
  %v3233 = vpop.f32.mrb[0].mxu0
  %v3234 = vadd.f32 %v2881, %v3233
  %v3235 = vpop.f32.mrb[0].mxu0
  %v3236 = vadd.f32 %v2883, %v3235
  %v3237 = vpop.f32.mrb[0].mxu0
  %v3238 = vadd.f32 %v2885, %v3237
  %3239 = vmatprep.mubr.bf16.mxu0 %v1206
  %3240 = vmatmul.mubr.bf16.gmra.mrb[0].mxu0 %v1205
  %v3241 = vpop.f32.mrb[0].mxu0
  %v3242 = vadd.f32 %v2889, %v3241
  %v3243 = vpop.f32.mrb[0].mxu0
  %v3244 = vadd.f32 %v2891, %v3243
  %v3245 = vpop.f32.mrb[0].mxu0
  %v3246 = vadd.f32 %v2893, %v3245
  %v3247 = vpop.f32.mrb[0].mxu0
  %v3248 = vadd.f32 %v2895, %v3247
  %3249 = vmatprep.mubr.bf16.mxu0 %v1213
  %3250 = vmatmul.mubr.bf16.gmra.mrb[0].mxu0 %v1212
  %v3251 = vpop.f32.mrb[0].mxu0
  %v3252 = vadd.f32 %v2899, %v3251
  %v3253 = vpop.f32.mrb[0].mxu0
  %v3254 = vadd.f32 %v2901, %v3253
  %v3255 = vpop.f32.mrb[0].mxu0
  %v3256 = vadd.f32 %v2903, %v3255
  %v3257 = vpop.f32.mrb[0].mxu0
  %v3258 = vadd.f32 %v2905, %v3257
  %3259 = vmatprep.mubr.bf16.mxu0 %v1220
  %3260 = vmatmul.mubr.bf16.gmra.mrb[0].mxu0 %v1219
  %v3261 = vpop.f32.mrb[0].mxu0
  %v3262 = vadd.f32 %v2909, %v3261
  %v3263 = vpop.f32.mrb[0].mxu0
  %v3264 = vadd.f32 %v2911, %v3263
  %v3265 = vpop.f32.mrb[0].mxu0
  %v3266 = vadd.f32 %v2913, %v3265
  %v3267 = vpop.f32.mrb[0].mxu0
  %v3268 = vadd.f32 %v2915, %v3267
  %3269 = vmatprep.mubr.bf16.mxu0 %v1227
  %3270 = vmatmul.mubr.bf16.gmra.mrb[0].mxu0 %v1226
  %v3271 = vpop.f32.mrb[0].mxu0
  %v3272 = vadd.f32 %v2919, %v3271
  %v3273 = vpop.f32.mrb[0].mxu0
  %v3274 = vadd.f32 %v2921, %v3273
  %v3275 = vpop.f32.mrb[0].mxu0
  %v3276 = vadd.f32 %v2923, %v3275
  %v3277 = vpop.f32.mrb[0].mxu0
  %v3278 = vadd.f32 %v2925, %v3277
  %3279 = vmatprep.mubr.bf16.mxu0 %v1234
  %3280 = vmatmul.mubr.bf16.gmra.mrb[0].mxu0 %v1233
  %v3281 = vpop.f32.mrb[0].mxu0
  %v3282 = vadd.f32 %v2929, %v3281
  %v3283 = vpop.f32.mrb[0].mxu0
  %v3284 = vadd.f32 %v2931, %v3283
  %v3285 = vpop.f32.mrb[0].mxu0
  %v3286 = vadd.f32 %v2933, %v3285
  %v3287 = vpop.f32.mrb[0].mxu0
  %v3288 = vadd.f32 %v2935, %v3287
  %3289 = vmatprep.mubr.bf16.mxu0 %v1241
  %3290 = vmatmul.mubr.bf16.gmra.mrb[0].mxu0 %v1240
  %v3291 = vpop.f32.mrb[0].mxu0
  %v3292 = vadd.f32 %v2939, %v3291
  %v3293 = vpop.f32.mrb[0].mxu0
  %v3294 = vadd.f32 %v2941, %v3293
  %v3295 = vpop.f32.mrb[0].mxu0
  %v3296 = vadd.f32 %v2943, %v3295
  %v3297 = vpop.f32.mrb[0].mxu0
  %v3298 = vadd.f32 %v2945, %v3297
  %3299 = vmatprep.mubr.bf16.mxu0 %v1248
  %3300 = vmatmul.mubr.bf16.gmra.mrb[0].mxu0 %v1247
  %v3301 = vpop.f32.mrb[0].mxu0
  %v3302 = vadd.f32 %v2949, %v3301
  %v3303 = vpop.f32.mrb[0].mxu0
  %v3304 = vadd.f32 %v2951, %v3303
  %v3305 = vpop.f32.mrb[0].mxu0
  %v3306 = vadd.f32 %v2953, %v3305
  %v3307 = vpop.f32.mrb[0].mxu0
  %v3308 = vadd.f32 %v2955, %v3307
  %3309 = vmatprep.mubr.bf16.mxu0 %v1255
  %3310 = vmatmul.mubr.bf16.gmra.mrb[0].mxu0 %v1254
  %v3311 = vpop.f32.mrb[0].mxu0
  %v3312 = vadd.f32 %v2959, %v3311
  %v3313 = vpop.f32.mrb[0].mxu0
  %v3314 = vadd.f32 %v2961, %v3313
  %v3315 = vpop.f32.mrb[0].mxu0
  %v3316 = vadd.f32 %v2963, %v3315
  %v3317 = vpop.f32.mrb[0].mxu0
  %v3318 = vadd.f32 %v2965, %v3317
  %3319 = vmatprep.mubr.bf16.mxu0 %v1262
  %3320 = vmatmul.mubr.bf16.gmra.mrb[0].mxu0 %v1261
  %v3321 = vpop.f32.mrb[0].mxu0
  %v3322 = vadd.f32 %v2969, %v3321
  %v3323 = vpop.f32.mrb[0].mxu0
  %v3324 = vadd.f32 %v2971, %v3323
  %v3325 = vpop.f32.mrb[0].mxu0
  %v3326 = vadd.f32 %v2973, %v3325
  %v3327 = vpop.f32.mrb[0].mxu0
  %v3328 = vadd.f32 %v2975, %v3327
  %3329 = vmatprep.mubr.bf16.mxu0 %v1269
  %3330 = vmatmul.mubr.bf16.gmra.mrb[0].mxu0 %v1268
  %v3331 = vpop.f32.mrb[0].mxu0
  %v3332 = vadd.f32 %v2979, %v3331
  %v3333 = vpop.f32.mrb[0].mxu0
  %v3334 = vadd.f32 %v2981, %v3333
  %v3335 = vpop.f32.mrb[0].mxu0
  %v3336 = vadd.f32 %v2983, %v3335
  %v3337 = vpop.f32.mrb[0].mxu0
  %v3338 = vadd.f32 %v2985, %v3337
  %3339 = vmatprep.mubr.bf16.mxu0 %v1276
  %3340 = vmatmul.mubr.bf16.gmra.mrb[0].mxu0 %v1275
  %v3341 = vpop.f32.mrb[0].mxu0
  %v3342 = vadd.f32 %v2989, %v3341
  %v3343 = vpop.f32.mrb[0].mxu0
  %v3344 = vadd.f32 %v2991, %v3343
  %v3345 = vpop.f32.mrb[0].mxu0
  %v3346 = vadd.f32 %v2993, %v3345
  %v3347 = vpop.f32.mrb[0].mxu0
  %v3348 = vadd.f32 %v2995, %v3347
  %3349 = vmatprep.mubr.bf16.mxu0 %v1283
  %3350 = vmatmul.mubr.bf16.gmra.mrb[0].mxu0 %v1282
  %v3351 = vpop.f32.mrb[0].mxu0
  %v3352 = vadd.f32 %v2999, %v3351
  %v3353 = vpop.f32.mrb[0].mxu0
  %v3354 = vadd.f32 %v3001, %v3353
  %v3355 = vpop.f32.mrb[0].mxu0
  %v3356 = vadd.f32 %v3003, %v3355
  %v3357 = vpop.f32.mrb[0].mxu0
  %v3358 = vadd.f32 %v3005, %v3357
  %3359 = vmatprep.mubr.bf16.mxu0 %v1290
  %3360 = vmatmul.mubr.bf16.gmra.mrb[0].mxu0 %v1289
  %v3361 = vpop.f32.mrb[0].mxu0
  %v3362 = vadd.f32 %v3009, %v3361
  %v3363 = vpop.f32.mrb[0].mxu0
  %v3364 = vadd.f32 %v3011, %v3363
  %v3365 = vpop.f32.mrb[0].mxu0
  %v3366 = vadd.f32 %v3013, %v3365
  %v3367 = vpop.f32.mrb[0].mxu0
  %v3368 = vadd.f32 %v3015, %v3367
  %3369 = vmatprep.mubr.bf16.mxu0 %v1297
  %3370 = vmatmul.mubr.bf16.gmra.mrb[0].mxu0 %v1296
  %v3371 = vpop.f32.mrb[0].mxu0
  %v3372 = vadd.f32 %v3019, %v3371
  %v3373 = vpop.f32.mrb[0].mxu0
  %v3374 = vadd.f32 %v3021, %v3373
  %v3375 = vpop.f32.mrb[0].mxu0
  %v3376 = vadd.f32 %v3023, %v3375
  %v3377 = vpop.f32.mrb[0].mxu0
  %v3378 = vadd.f32 %v3025, %v3377
  %3379 = vmatprep.mubr.bf16.mxu0 %v1304
  %3380 = vmatmul.mubr.bf16.gmra.mrb[0].mxu0 %v1303
  %v3381 = vpop.f32.mrb[0].mxu0
  %v3382 = vadd.f32 %v3029, %v3381
  %v3383 = vpop.f32.mrb[0].mxu0
  %v3384 = vadd.f32 %v3031, %v3383
  %v3385 = vpop.f32.mrb[0].mxu0
  %v3386 = vadd.f32 %v3033, %v3385
  %v3387 = vpop.f32.mrb[0].mxu0
  %v3388 = vadd.f32 %v3035, %v3387
  %3389 = vmatprep.mubr.bf16.mxu0 %v1311
  %3390 = vmatmul.mubr.bf16.gmra.mrb[0].mxu0 %v1310
  %v3391 = vpop.f32.mrb[0].mxu0
  %v3392 = vadd.f32 %v3039, %v3391
  %v3393 = vpop.f32.mrb[0].mxu0
  %v3394 = vadd.f32 %v3041, %v3393
  %v3395 = vpop.f32.mrb[0].mxu0
  %v3396 = vadd.f32 %v3043, %v3395
  %v3397 = vpop.f32.mrb[0].mxu0
  %v3398 = vadd.f32 %v3045, %v3397
  %3399 = vmatprep.mubr.bf16.mxu0 %v1318
  %3400 = vmatmul.mubr.bf16.gmra.mrb[0].mxu0 %v1317
  %v3401 = vpop.f32.mrb[0].mxu0
  %v3402 = vadd.f32 %v3049, %v3401
  %v3403 = vpop.f32.mrb[0].mxu0
  %v3404 = vadd.f32 %v3051, %v3403
  %v3405 = vpop.f32.mrb[0].mxu0
  %v3406 = vadd.f32 %v3053, %v3405
  %v3407 = vpop.f32.mrb[0].mxu0
  %v3408 = vadd.f32 %v3055, %v3407
  %3409 = vmatprep.mubr.bf16.mxu0 %v1325
  %3410 = vmatmul.mubr.bf16.gmra.mrb[0].mxu0 %v1324
  %v3411 = vpop.f32.mrb[0].mxu0
  %v3412 = vadd.f32 %v3059, %v3411
  %v3413 = vpop.f32.mrb[0].mxu0
  %v3414 = vadd.f32 %v3061, %v3413
  %v3415 = vpop.f32.mrb[0].mxu0
  %v3416 = vadd.f32 %v3063, %v3415
  %v3417 = vpop.f32.mrb[0].mxu0
  %v3418 = vadd.f32 %v3065, %v3417
  %3419 = vmatprep.mubr.bf16.mxu0 %v1332
  %3420 = vmatmul.mubr.bf16.gmra.mrb[0].mxu0 %v1331
  %v3421 = vpop.f32.mrb[0].mxu0
  %v3422 = vadd.f32 %v3069, %v3421
  %v3423 = vpop.f32.mrb[0].mxu0
  %v3424 = vadd.f32 %v3071, %v3423
  %v3425 = vpop.f32.mrb[0].mxu0
  %v3426 = vadd.f32 %v3073, %v3425
  %v3427 = vpop.f32.mrb[0].mxu0
  %v3428 = vadd.f32 %v3075, %v3427
  %3429 = vmatprep.mubr.bf16.mxu0 %v1339
  %3430 = vmatmul.mubr.bf16.gmra.mrb[0].mxu0 %v1338
  %v3431 = vpop.f32.mrb[0].mxu0
  %v3432 = vadd.f32 %v3079, %v3431
  %v3433 = vpop.f32.mrb[0].mxu0
  %v3434 = vadd.f32 %v3081, %v3433
  %v3435 = vpop.f32.mrb[0].mxu0
  %v3436 = vadd.f32 %v3083, %v3435
  %v3437 = vpop.f32.mrb[0].mxu0
  %v3438 = vadd.f32 %v3085, %v3437
  %3439 = vmatprep.mubr.bf16.mxu0 %v1346
  %3440 = vmatmul.mubr.bf16.gmra.mrb[0].mxu0 %v1345
  %v3441 = vpop.f32.mrb[0].mxu0
  %v3442 = vadd.f32 %v3089, %v3441
  %v3443 = vpop.f32.mrb[0].mxu0
  %v3444 = vadd.f32 %v3091, %v3443
  %v3445 = vpop.f32.mrb[0].mxu0
  %v3446 = vadd.f32 %v3093, %v3445
  %v3447 = vpop.f32.mrb[0].mxu0
  %v3448 = vadd.f32 %v3095, %v3447
  %3449 = vmatprep.mubr.bf16.mxu0 %v1353
  %3450 = vmatmul.mubr.bf16.gmra.mrb[0].mxu0 %v1352
  %v3451 = vpop.f32.mrb[0].mxu0
  %v3452 = vadd.f32 %v3099, %v3451
  %v3453 = vpop.f32.mrb[0].mxu0
  %v3454 = vadd.f32 %v3101, %v3453
  %v3455 = vpop.f32.mrb[0].mxu0
  %v3456 = vadd.f32 %v3103, %v3455
  %v3457 = vpop.f32.mrb[0].mxu0
  %v3458 = vadd.f32 %v3105, %v3457
  %3459 = vmatprep.mubr.bf16.mxu0 %v1360
  %3460 = vmatmul.mubr.bf16.gmra.mrb[0].mxu0 %v1359
  %v3461 = vpop.f32.mrb[0].mxu0
  %v3462 = vadd.f32 %v3109, %v3461
  %v3463 = vpop.f32.mrb[0].mxu0
  %v3464 = vadd.f32 %v3111, %v3463
  %v3465 = vpop.f32.mrb[0].mxu0
  %v3466 = vadd.f32 %v3113, %v3465
  %v3467 = vpop.f32.mrb[0].mxu0
  %v3468 = vadd.f32 %v3115, %v3467
  %3469 = vmatprep.mubr.bf16.mxu0 %v1367
  %3470 = vmatmul.mubr.bf16.gmra.mrb[0].mxu0 %v1366
  %v3471 = vpop.f32.mrb[0].mxu0
  %v3472 = vadd.f32 %v3119, %v3471
  %v3473 = vpop.f32.mrb[0].mxu0
  %v3474 = vadd.f32 %v3121, %v3473
  %v3475 = vpop.f32.mrb[0].mxu0
  %v3476 = vadd.f32 %v3123, %v3475
  %v3477 = vpop.f32.mrb[0].mxu0
  %v3478 = vadd.f32 %v3125, %v3477
  %3479 = vmatprep.mubr.bf16.mxu0 %v1374
  %3480 = vmatmul.mubr.bf16.gmra.mrb[0].mxu0 %v1373
  %v3481 = vpop.f32.mrb[0].mxu0
  %v3482 = vadd.f32 %v3129, %v3481
  %v3483 = vpop.f32.mrb[0].mxu0
  %v3484 = vadd.f32 %v3131, %v3483
  %v3485 = vpop.f32.mrb[0].mxu0
  %v3486 = vadd.f32 %v3133, %v3485
  %v3487 = vpop.f32.mrb[0].mxu0
  %v3488 = vadd.f32 %v3135, %v3487
  %3489 = vmatprep.mubr.bf16.mxu0 %v1381
  %3490 = vmatmul.mubr.bf16.gmra.mrb[0].mxu0 %v1380
  %v3491 = vpop.f32.mrb[0].mxu0
  %v3492 = vadd.f32 %v3139, %v3491
  %v3493 = vpop.f32.mrb[0].mxu0
  %v3494 = vadd.f32 %v3141, %v3493
  %v3495 = vpop.f32.mrb[0].mxu0
  %v3496 = vadd.f32 %v3143, %v3495
  %v3497 = vpop.f32.mrb[0].mxu0
  %v3498 = vadd.f32 %v3145, %v3497
  %3499 = vmatprep.mubr.bf16.mxu0 %v1388
  %3500 = vmatmul.mubr.bf16.gmra.mrb[0].mxu0 %v1387
  %v3501 = vpop.f32.mrb[0].mxu0
  %v3502 = vadd.f32 %v3149, %v3501
  %v3503 = vpop.f32.mrb[0].mxu0
  %v3504 = vadd.f32 %v3151, %v3503
  %v3505 = vpop.f32.mrb[0].mxu0
  %v3506 = vadd.f32 %v3153, %v3505
  %v3507 = vpop.f32.mrb[0].mxu0
  %v3508 = vadd.f32 %v3155, %v3507
  %3509 = vmatprep.mubr.bf16.mxu0 %v1395
  %3510 = vmatmul.mubr.bf16.gmra.mrb[0].mxu0 %v1394
  %v3511 = vpop.f32.mrb[0].mxu0
  %v3512 = vadd.f32 %v3159, %v3511
  %v3513 = vpop.f32.mrb[0].mxu0
  %v3514 = vadd.f32 %v3161, %v3513
  %v3515 = vpop.f32.mrb[0].mxu0
  %v3516 = vadd.f32 %v3163, %v3515
  %v3517 = vpop.f32.mrb[0].mxu0
  %v3518 = vadd.f32 %v3165, %v3517
  %3519 = vmatprep.mubr.bf16.mxu0 %v1402
  %3520 = vmatmul.mubr.bf16.gmra.mrb[0].mxu0 %v1401
  %v3521 = vpop.f32.mrb[0].mxu0
  %v3522 = vadd.f32 %v3169, %v3521
  %v3523 = vpop.f32.mrb[0].mxu0
  %v3524 = vadd.f32 %v3171, %v3523
  %v3525 = vpop.f32.mrb[0].mxu0
  %v3526 = vadd.f32 %v3173, %v3525
  %v3527 = vpop.f32.mrb[0].mxu0
  %v3528 = vadd.f32 %v3175, %v3527
  %3529 = vmatprep.mubr.bf16.mxu0 %v1409
  %3530 = vmatmul.mubr.bf16.gmra.mrb[0].mxu0 %v1408
  %v3531 = vpop.f32.mrb[0].mxu0
  %v3532 = vadd.f32 %v3179, %v3531
  %v3533 = vpop.f32.mrb[0].mxu0
  %v3534 = vadd.f32 %v3181, %v3533
  %v3535 = vpop.f32.mrb[0].mxu0
  %v3536 = vadd.f32 %v3183, %v3535
  %v3537 = vpop.f32.mrb[0].mxu0
  %v3538 = vadd.f32 %v3185, %v3537
  %3539 = vmatprep.mubr.bf16.mxu0 %v1416
  %3540 = vmatmul.mubr.bf16.gmra.mrb[0].mxu0 %v1415
  %v3541 = vpop.f32.mrb[0].mxu0
  %v3542 = vadd.f32 %v3189, %v3541
  %v3543 = vpop.f32.mrb[0].mxu0
  %v3544 = vadd.f32 %v3191, %v3543
  %v3545 = vpop.f32.mrb[0].mxu0
  %v3546 = vadd.f32 %v3193, %v3545
  %v3547 = vpop.f32.mrb[0].mxu0
  %v3548 = vadd.f32 %v3195, %v3547
  %3549 = vdwg.mxu0
  %3550 = vmatprep.subr.bf16.mxu0 %v2245
  %3551 = vmatpush1.bf16.msra.mxu0 %v2244
  %3552 = vmatprep.subr.bf16.mxu0 0
  %3553 = vmatpush1.bf16.msra.mxu0 0
  %3554 = vmatprep.subr.bf16.mxu0 0
  %3555 = vmatpush1.bf16.msra.mxu0 0
  %3556 = vmatprep.subr.bf16.mxu0 0
  %3557 = vmatpush1.bf16.msra.mxu0 0
  %3558 = vmatprep.subr.bf16.mxu0 0
  %3559 = vmatpush1.bf16.msra.mxu0 0
  %3560 = vmatprep.subr.bf16.mxu0 0
  %3561 = vmatpush1.bf16.msra.mxu0 0
  %3562 = vmatprep.subr.bf16.mxu0 0
  %3563 = vmatpush1.bf16.msra.mxu0 0
  %3564 = vmatprep.subr.bf16.mxu0 0
  %3565 = vmatpush1.bf16.msra.mxu0 0
  %3566 = vmatprep.subr.bf16.mxu0 0
  %3567 = vmatpush1.bf16.msra.mxu0 0
  %3568 = vmatprep.subr.bf16.mxu0 0
  %3569 = vmatpush1.bf16.msra.mxu0 0
  %3570 = vmatprep.subr.bf16.mxu0 0
  %3571 = vmatpush1.bf16.msra.mxu0 0
  %3572 = vmatprep.subr.bf16.mxu0 0
  %3573 = vmatpush1.bf16.msra.mxu0 0
  %3574 = vmatprep.subr.bf16.mxu0 0
  %3575 = vmatpush1.bf16.msra.mxu0 0
  %3576 = vmatprep.subr.bf16.mxu0 0
  %3577 = vmatpush1.bf16.msra.mxu0 0
  %3578 = vmatprep.subr.bf16.mxu0 0
  %3579 = vmatpush1.bf16.msra.mxu0 0
  %3580 = vmatprep.subr.bf16.mxu0 0
  %3581 = vmatpush1.bf16.msra.mxu0 0
  %3582 = vmatprep.mubr.bf16.mxu0 0
  %3583 = vmatmul.mubr.bf16.gmra.mrb[0].mxu0 %v2396
  %v3584 = vpop.f32.mrb[0].mxu0
  %v3585 = vadd.f32 %v3232, %v3584
  %v3586 = vpop.f32.mrb[0].mxu0
  %v3587 = vadd.f32 %v3234, %v3586
  %v3588 = vpop.f32.mrb[0].mxu0
  %v3589 = vadd.f32 %v3236, %v3588
  %v3590 = vpop.f32.mrb[0].mxu0
  %v3591 = vadd.f32 %v3238, %v3590
  %3592 = vmatprep.mubr.bf16.mxu0 0
  %3593 = vmatmul.mubr.bf16.gmra.mrb[0].mxu0 %v2399
  %v3594 = vpop.f32.mrb[0].mxu0
  %v3595 = vadd.f32 %v3242, %v3594
  %v3596 = vpop.f32.mrb[0].mxu0
  %v3597 = vadd.f32 %v3244, %v3596
  %v3598 = vpop.f32.mrb[0].mxu0
  %v3599 = vadd.f32 %v3246, %v3598
  %v3600 = vpop.f32.mrb[0].mxu0
  %v3601 = vadd.f32 %v3248, %v3600
  %3602 = vmatprep.mubr.bf16.mxu0 0
  %3603 = vmatmul.mubr.bf16.gmra.mrb[0].mxu0 %v2402
  %v3604 = vpop.f32.mrb[0].mxu0
  %v3605 = vadd.f32 %v3252, %v3604
  %v3606 = vpop.f32.mrb[0].mxu0
  %v3607 = vadd.f32 %v3254, %v3606
  %v3608 = vpop.f32.mrb[0].mxu0
  %v3609 = vadd.f32 %v3256, %v3608
  %v3610 = vpop.f32.mrb[0].mxu0
  %v3611 = vadd.f32 %v3258, %v3610
  %3612 = vmatprep.mubr.bf16.mxu0 0
  %3613 = vmatmul.mubr.bf16.gmra.mrb[0].mxu0 %v2405
  %v3614 = vpop.f32.mrb[0].mxu0
  %v3615 = vadd.f32 %v3262, %v3614
  %v3616 = vpop.f32.mrb[0].mxu0
  %v3617 = vadd.f32 %v3264, %v3616
  %v3618 = vpop.f32.mrb[0].mxu0
  %v3619 = vadd.f32 %v3266, %v3618
  %v3620 = vpop.f32.mrb[0].mxu0
  %v3621 = vadd.f32 %v3268, %v3620
  %3622 = vmatprep.mubr.bf16.mxu0 0
  %3623 = vmatmul.mubr.bf16.gmra.mrb[0].mxu0 %v2408
  %v3624 = vpop.f32.mrb[0].mxu0
  %v3625 = vadd.f32 %v3272, %v3624
  %v3626 = vpop.f32.mrb[0].mxu0
  %v3627 = vadd.f32 %v3274, %v3626
  %v3628 = vpop.f32.mrb[0].mxu0
  %v3629 = vadd.f32 %v3276, %v3628
  %v3630 = vpop.f32.mrb[0].mxu0
  %v3631 = vadd.f32 %v3278, %v3630
  %3632 = vmatprep.mubr.bf16.mxu0 0
  %3633 = vmatmul.mubr.bf16.gmra.mrb[0].mxu0 %v2411
  %v3634 = vpop.f32.mrb[0].mxu0
  %v3635 = vadd.f32 %v3282, %v3634
  %v3636 = vpop.f32.mrb[0].mxu0
  %v3637 = vadd.f32 %v3284, %v3636
  %v3638 = vpop.f32.mrb[0].mxu0
  %v3639 = vadd.f32 %v3286, %v3638
  %v3640 = vpop.f32.mrb[0].mxu0
  %v3641 = vadd.f32 %v3288, %v3640
  %3642 = vmatprep.mubr.bf16.mxu0 0
  %3643 = vmatmul.mubr.bf16.gmra.mrb[0].mxu0 %v2414
  %v3644 = vpop.f32.mrb[0].mxu0
  %v3645 = vadd.f32 %v3292, %v3644
  %v3646 = vpop.f32.mrb[0].mxu0
  %v3647 = vadd.f32 %v3294, %v3646
  %v3648 = vpop.f32.mrb[0].mxu0
  %v3649 = vadd.f32 %v3296, %v3648
  %v3650 = vpop.f32.mrb[0].mxu0
  %v3651 = vadd.f32 %v3298, %v3650
  %3652 = vmatprep.mubr.bf16.mxu0 0
  %3653 = vmatmul.mubr.bf16.gmra.mrb[0].mxu0 %v2417
  %v3654 = vpop.f32.mrb[0].mxu0
  %v3655 = vadd.f32 %v3302, %v3654
  %v3656 = vpop.f32.mrb[0].mxu0
  %v3657 = vadd.f32 %v3304, %v3656
  %v3658 = vpop.f32.mrb[0].mxu0
  %v3659 = vadd.f32 %v3306, %v3658
  %v3660 = vpop.f32.mrb[0].mxu0
  %v3661 = vadd.f32 %v3308, %v3660
  %3662 = vmatprep.mubr.bf16.mxu0 0
  %3663 = vmatmul.mubr.bf16.gmra.mrb[0].mxu0 %v2420
  %v3664 = vpop.f32.mrb[0].mxu0
  %v3665 = vadd.f32 %v3312, %v3664
  %v3666 = vpop.f32.mrb[0].mxu0
  %v3667 = vadd.f32 %v3314, %v3666
  %v3668 = vpop.f32.mrb[0].mxu0
  %v3669 = vadd.f32 %v3316, %v3668
  %v3670 = vpop.f32.mrb[0].mxu0
  %v3671 = vadd.f32 %v3318, %v3670
  %3672 = vmatprep.mubr.bf16.mxu0 0
  %3673 = vmatmul.mubr.bf16.gmra.mrb[0].mxu0 %v2423
  %v3674 = vpop.f32.mrb[0].mxu0
  %v3675 = vadd.f32 %v3322, %v3674
  %v3676 = vpop.f32.mrb[0].mxu0
  %v3677 = vadd.f32 %v3324, %v3676
  %v3678 = vpop.f32.mrb[0].mxu0
  %v3679 = vadd.f32 %v3326, %v3678
  %v3680 = vpop.f32.mrb[0].mxu0
  %v3681 = vadd.f32 %v3328, %v3680
  %3682 = vmatprep.mubr.bf16.mxu0 0
  %3683 = vmatmul.mubr.bf16.gmra.mrb[0].mxu0 %v2426
  %v3684 = vpop.f32.mrb[0].mxu0
  %v3685 = vadd.f32 %v3332, %v3684
  %v3686 = vpop.f32.mrb[0].mxu0
  %v3687 = vadd.f32 %v3334, %v3686
  %v3688 = vpop.f32.mrb[0].mxu0
  %v3689 = vadd.f32 %v3336, %v3688
  %v3690 = vpop.f32.mrb[0].mxu0
  %v3691 = vadd.f32 %v3338, %v3690
  %3692 = vmatprep.mubr.bf16.mxu0 0
  %3693 = vmatmul.mubr.bf16.gmra.mrb[0].mxu0 %v2429
  %v3694 = vpop.f32.mrb[0].mxu0
  %v3695 = vadd.f32 %v3342, %v3694
  %v3696 = vpop.f32.mrb[0].mxu0
  %v3697 = vadd.f32 %v3344, %v3696
  %v3698 = vpop.f32.mrb[0].mxu0
  %v3699 = vadd.f32 %v3346, %v3698
  %v3700 = vpop.f32.mrb[0].mxu0
  %v3701 = vadd.f32 %v3348, %v3700
  %3702 = vmatprep.mubr.bf16.mxu0 0
  %3703 = vmatmul.mubr.bf16.gmra.mrb[0].mxu0 %v2432
  %v3704 = vpop.f32.mrb[0].mxu0
  %v3705 = vadd.f32 %v3352, %v3704
  %v3706 = vpop.f32.mrb[0].mxu0
  %v3707 = vadd.f32 %v3354, %v3706
  %v3708 = vpop.f32.mrb[0].mxu0
  %v3709 = vadd.f32 %v3356, %v3708
  %v3710 = vpop.f32.mrb[0].mxu0
  %v3711 = vadd.f32 %v3358, %v3710
  %3712 = vmatprep.mubr.bf16.mxu0 0
  %3713 = vmatmul.mubr.bf16.gmra.mrb[0].mxu0 %v2435
  %v3714 = vpop.f32.mrb[0].mxu0
  %v3715 = vadd.f32 %v3362, %v3714
  %v3716 = vpop.f32.mrb[0].mxu0
  %v3717 = vadd.f32 %v3364, %v3716
  %v3718 = vpop.f32.mrb[0].mxu0
  %v3719 = vadd.f32 %v3366, %v3718
  %v3720 = vpop.f32.mrb[0].mxu0
  %v3721 = vadd.f32 %v3368, %v3720
  %3722 = vmatprep.mubr.bf16.mxu0 0
  %3723 = vmatmul.mubr.bf16.gmra.mrb[0].mxu0 %v2438
  %v3724 = vpop.f32.mrb[0].mxu0
  %v3725 = vadd.f32 %v3372, %v3724
  %v3726 = vpop.f32.mrb[0].mxu0
  %v3727 = vadd.f32 %v3374, %v3726
  %v3728 = vpop.f32.mrb[0].mxu0
  %v3729 = vadd.f32 %v3376, %v3728
  %v3730 = vpop.f32.mrb[0].mxu0
  %v3731 = vadd.f32 %v3378, %v3730
  %3732 = vmatprep.mubr.bf16.mxu0 0
  %3733 = vmatmul.mubr.bf16.gmra.mrb[0].mxu0 %v2441
  %v3734 = vpop.f32.mrb[0].mxu0
  %v3735 = vadd.f32 %v3382, %v3734
  %v3736 = vpop.f32.mrb[0].mxu0
  %v3737 = vadd.f32 %v3384, %v3736
  %v3738 = vpop.f32.mrb[0].mxu0
  %v3739 = vadd.f32 %v3386, %v3738
  %v3740 = vpop.f32.mrb[0].mxu0
  %v3741 = vadd.f32 %v3388, %v3740
  %3742 = vmatprep.mubr.bf16.mxu0 0
  %3743 = vmatmul.mubr.bf16.gmra.mrb[0].mxu0 %v2444
  %v3744 = vpop.f32.mrb[0].mxu0
  %v3745 = vadd.f32 %v3392, %v3744
  %v3746 = vpop.f32.mrb[0].mxu0
  %v3747 = vadd.f32 %v3394, %v3746
  %v3748 = vpop.f32.mrb[0].mxu0
  %v3749 = vadd.f32 %v3396, %v3748
  %v3750 = vpop.f32.mrb[0].mxu0
  %v3751 = vadd.f32 %v3398, %v3750
  %3752 = vmatprep.mubr.bf16.mxu0 0
  %3753 = vmatmul.mubr.bf16.gmra.mrb[0].mxu0 %v2447
  %v3754 = vpop.f32.mrb[0].mxu0
  %v3755 = vadd.f32 %v3402, %v3754
  %v3756 = vpop.f32.mrb[0].mxu0
  %v3757 = vadd.f32 %v3404, %v3756
  %v3758 = vpop.f32.mrb[0].mxu0
  %v3759 = vadd.f32 %v3406, %v3758
  %v3760 = vpop.f32.mrb[0].mxu0
  %v3761 = vadd.f32 %v3408, %v3760
  %3762 = vmatprep.mubr.bf16.mxu0 0
  %3763 = vmatmul.mubr.bf16.gmra.mrb[0].mxu0 %v2450
  %v3764 = vpop.f32.mrb[0].mxu0
  %v3765 = vadd.f32 %v3412, %v3764
  %v3766 = vpop.f32.mrb[0].mxu0
  %v3767 = vadd.f32 %v3414, %v3766
  %v3768 = vpop.f32.mrb[0].mxu0
  %v3769 = vadd.f32 %v3416, %v3768
  %v3770 = vpop.f32.mrb[0].mxu0
  %v3771 = vadd.f32 %v3418, %v3770
  %3772 = vmatprep.mubr.bf16.mxu0 0
  %3773 = vmatmul.mubr.bf16.gmra.mrb[0].mxu0 %v2453
  %v3774 = vpop.f32.mrb[0].mxu0
  %v3775 = vadd.f32 %v3422, %v3774
  %v3776 = vpop.f32.mrb[0].mxu0
  %v3777 = vadd.f32 %v3424, %v3776
  %v3778 = vpop.f32.mrb[0].mxu0
  %v3779 = vadd.f32 %v3426, %v3778
  %v3780 = vpop.f32.mrb[0].mxu0
  %v3781 = vadd.f32 %v3428, %v3780
  %3782 = vmatprep.mubr.bf16.mxu0 0
  %3783 = vmatmul.mubr.bf16.gmra.mrb[0].mxu0 %v2456
  %v3784 = vpop.f32.mrb[0].mxu0
  %v3785 = vadd.f32 %v3432, %v3784
  %v3786 = vpop.f32.mrb[0].mxu0
  %v3787 = vadd.f32 %v3434, %v3786
  %v3788 = vpop.f32.mrb[0].mxu0
  %v3789 = vadd.f32 %v3436, %v3788
  %v3790 = vpop.f32.mrb[0].mxu0
  %v3791 = vadd.f32 %v3438, %v3790
  %3792 = vmatprep.mubr.bf16.mxu0 0
  %3793 = vmatmul.mubr.bf16.gmra.mrb[0].mxu0 %v2459
  %v3794 = vpop.f32.mrb[0].mxu0
  %v3795 = vadd.f32 %v3442, %v3794
  %v3796 = vpop.f32.mrb[0].mxu0
  %v3797 = vadd.f32 %v3444, %v3796
  %v3798 = vpop.f32.mrb[0].mxu0
  %v3799 = vadd.f32 %v3446, %v3798
  %v3800 = vpop.f32.mrb[0].mxu0
  %v3801 = vadd.f32 %v3448, %v3800
  %3802 = vmatprep.mubr.bf16.mxu0 0
  %3803 = vmatmul.mubr.bf16.gmra.mrb[0].mxu0 %v2462
  %v3804 = vpop.f32.mrb[0].mxu0
  %v3805 = vadd.f32 %v3452, %v3804
  %v3806 = vpop.f32.mrb[0].mxu0
  %v3807 = vadd.f32 %v3454, %v3806
  %v3808 = vpop.f32.mrb[0].mxu0
  %v3809 = vadd.f32 %v3456, %v3808
  %v3810 = vpop.f32.mrb[0].mxu0
  %v3811 = vadd.f32 %v3458, %v3810
  %3812 = vmatprep.mubr.bf16.mxu0 0
  %3813 = vmatmul.mubr.bf16.gmra.mrb[0].mxu0 %v2465
  %v3814 = vpop.f32.mrb[0].mxu0
  %v3815 = vadd.f32 %v3462, %v3814
  %v3816 = vpop.f32.mrb[0].mxu0
  %v3817 = vadd.f32 %v3464, %v3816
  %v3818 = vpop.f32.mrb[0].mxu0
  %v3819 = vadd.f32 %v3466, %v3818
  %v3820 = vpop.f32.mrb[0].mxu0
  %v3821 = vadd.f32 %v3468, %v3820
  %3822 = vmatprep.mubr.bf16.mxu0 0
  %3823 = vmatmul.mubr.bf16.gmra.mrb[0].mxu0 %v2468
  %v3824 = vpop.f32.mrb[0].mxu0
  %v3825 = vadd.f32 %v3472, %v3824
  %v3826 = vpop.f32.mrb[0].mxu0
  %v3827 = vadd.f32 %v3474, %v3826
  %v3828 = vpop.f32.mrb[0].mxu0
  %v3829 = vadd.f32 %v3476, %v3828
  %v3830 = vpop.f32.mrb[0].mxu0
  %v3831 = vadd.f32 %v3478, %v3830
  %3832 = vmatprep.mubr.bf16.mxu0 0
  %3833 = vmatmul.mubr.bf16.gmra.mrb[0].mxu0 %v2471
  %v3834 = vpop.f32.mrb[0].mxu0
  %v3835 = vadd.f32 %v3482, %v3834
  %v3836 = vpop.f32.mrb[0].mxu0
  %v3837 = vadd.f32 %v3484, %v3836
  %v3838 = vpop.f32.mrb[0].mxu0
  %v3839 = vadd.f32 %v3486, %v3838
  %v3840 = vpop.f32.mrb[0].mxu0
  %v3841 = vadd.f32 %v3488, %v3840
  %3842 = vmatprep.mubr.bf16.mxu0 0
  %3843 = vmatmul.mubr.bf16.gmra.mrb[0].mxu0 %v2474
  %v3844 = vpop.f32.mrb[0].mxu0
  %v3845 = vadd.f32 %v3492, %v3844
  %v3846 = vpop.f32.mrb[0].mxu0
  %v3847 = vadd.f32 %v3494, %v3846
  %v3848 = vpop.f32.mrb[0].mxu0
  %v3849 = vadd.f32 %v3496, %v3848
  %v3850 = vpop.f32.mrb[0].mxu0
  %v3851 = vadd.f32 %v3498, %v3850
  %3852 = vmatprep.mubr.bf16.mxu0 0
  %3853 = vmatmul.mubr.bf16.gmra.mrb[0].mxu0 %v2477
  %v3854 = vpop.f32.mrb[0].mxu0
  %v3855 = vadd.f32 %v3502, %v3854
  %v3856 = vpop.f32.mrb[0].mxu0
  %v3857 = vadd.f32 %v3504, %v3856
  %v3858 = vpop.f32.mrb[0].mxu0
  %v3859 = vadd.f32 %v3506, %v3858
  %v3860 = vpop.f32.mrb[0].mxu0
  %v3861 = vadd.f32 %v3508, %v3860
  %3862 = vmatprep.mubr.bf16.mxu0 0
  %3863 = vmatmul.mubr.bf16.gmra.mrb[0].mxu0 %v2480
  %v3864 = vpop.f32.mrb[0].mxu0
  %v3865 = vadd.f32 %v3512, %v3864
  %v3866 = vpop.f32.mrb[0].mxu0
  %v3867 = vadd.f32 %v3514, %v3866
  %v3868 = vpop.f32.mrb[0].mxu0
  %v3869 = vadd.f32 %v3516, %v3868
  %v3870 = vpop.f32.mrb[0].mxu0
  %v3871 = vadd.f32 %v3518, %v3870
  %3872 = vmatprep.mubr.bf16.mxu0 0
  %3873 = vmatmul.mubr.bf16.gmra.mrb[0].mxu0 %v2483
  %v3874 = vpop.f32.mrb[0].mxu0
  %v3875 = vadd.f32 %v3522, %v3874
  %v3876 = vpop.f32.mrb[0].mxu0
  %v3877 = vadd.f32 %v3524, %v3876
  %v3878 = vpop.f32.mrb[0].mxu0
  %v3879 = vadd.f32 %v3526, %v3878
  %v3880 = vpop.f32.mrb[0].mxu0
  %v3881 = vadd.f32 %v3528, %v3880
  %3882 = vmatprep.mubr.bf16.mxu0 0
  %3883 = vmatmul.mubr.bf16.gmra.mrb[0].mxu0 %v2486
  %v3884 = vpop.f32.mrb[0].mxu0
  %v3885 = vadd.f32 %v3532, %v3884
  %v3886 = vpop.f32.mrb[0].mxu0
  %v3887 = vadd.f32 %v3534, %v3886
  %v3888 = vpop.f32.mrb[0].mxu0
  %v3889 = vadd.f32 %v3536, %v3888
  %v3890 = vpop.f32.mrb[0].mxu0
  %v3891 = vadd.f32 %v3538, %v3890
  %3892 = vmatprep.mubr.bf16.mxu0 0
  %3893 = vmatmul.mubr.bf16.gmra.mrb[0].mxu0 %v2489
  %v3894 = vpop.f32.mrb[0].mxu0
  %v3895 = vadd.f32 %v3542, %v3894
  %v3896 = vpop.f32.mrb[0].mxu0
  %v3897 = vadd.f32 %v3544, %v3896
  %v3898 = vpop.f32.mrb[0].mxu0
  %v3899 = vadd.f32 %v3546, %v3898
  %v3900 = vpop.f32.mrb[0].mxu0
  %v3901 = vadd.f32 %v3548, %v3900
  %3902 = vdwg.mxu0
  %3903 = vmatprep.subr.bf16.mxu0 0
  %3904 = vmatpush1.bf16.msra.mxu0 %v2102
  %3905 = vmatprep.subr.bf16.mxu0 0
  %3906 = vmatpush1.bf16.msra.mxu0 %v2105
  %3907 = vmatprep.subr.bf16.mxu0 0
  %3908 = vmatpush1.bf16.msra.mxu0 %v2108
  %3909 = vmatprep.subr.bf16.mxu0 0
  %3910 = vmatpush1.bf16.msra.mxu0 %v2111
  %3911 = vmatprep.subr.bf16.mxu0 0
  %3912 = vmatpush1.bf16.msra.mxu0 %v2114
  %3913 = vmatprep.subr.bf16.mxu0 0
  %3914 = vmatpush1.bf16.msra.mxu0 %v2117
  %3915 = vmatprep.subr.bf16.mxu0 0
  %3916 = vmatpush1.bf16.msra.mxu0 %v2120
  %3917 = vmatprep.subr.bf16.mxu0 0
  %3918 = vmatpush1.bf16.msra.mxu0 %v2123
  %3919 = vmatprep.subr.bf16.mxu0 0
  %3920 = vmatpush1.bf16.msra.mxu0 %v2126
  %3921 = vmatprep.subr.bf16.mxu0 0
  %3922 = vmatpush1.bf16.msra.mxu0 %v2129
  %3923 = vmatprep.subr.bf16.mxu0 0
  %3924 = vmatpush1.bf16.msra.mxu0 %v2132
  %3925 = vmatprep.subr.bf16.mxu0 0
  %3926 = vmatpush1.bf16.msra.mxu0 %v2135
  %3927 = vmatprep.subr.bf16.mxu0 0
  %3928 = vmatpush1.bf16.msra.mxu0 %v2138
  %3929 = vmatprep.subr.bf16.mxu0 0
  %3930 = vmatpush1.bf16.msra.mxu0 %v2141
  %3931 = vmatprep.subr.bf16.mxu0 0
  %3932 = vmatpush1.bf16.msra.mxu0 %v2144
  %3933 = vmatprep.subr.bf16.mxu0 0
  %3934 = vmatpush1.bf16.msra.mxu0 %v2147
  %3935 = vmatprep.mubr.bf16.mxu0 %v1195
  %3936 = vmatmul.mubr.bf16.gmra.mrb[0].mxu0 %v1194
  %v3937 = vpop.f32.mrb[0].mxu0
  %v3938 = vadd.f32 %v486, %v3937
  %v3939 = vpop.f32.mrb[0].mxu0
  %v3940 = vpop.f32.mrb[0].mxu0
  %v3941 = vadd.f32 %v486, %v3940
  %v3942 = vpop.f32.mrb[0].mxu0
  %3943 = vmatprep.mubr.bf16.mxu0 %v1202
  %3944 = vmatmul.mubr.bf16.gmra.mrb[0].mxu0 %v1201
  %v3945 = vpop.f32.mrb[0].mxu0
  %v3946 = vadd.f32 %v486, %v3945
  %v3947 = vpop.f32.mrb[0].mxu0
  %v3948 = vpop.f32.mrb[0].mxu0
  %v3949 = vadd.f32 %v486, %v3948
  %v3950 = vpop.f32.mrb[0].mxu0
  %3951 = vmatprep.mubr.bf16.mxu0 %v1209
  %3952 = vmatmul.mubr.bf16.gmra.mrb[0].mxu0 %v1208
  %v3953 = vpop.f32.mrb[0].mxu0
  %v3954 = vadd.f32 %v486, %v3953
  %v3955 = vpop.f32.mrb[0].mxu0
  %v3956 = vpop.f32.mrb[0].mxu0
  %v3957 = vadd.f32 %v486, %v3956
  %v3958 = vpop.f32.mrb[0].mxu0
  %3959 = vmatprep.mubr.bf16.mxu0 %v1216
  %3960 = vmatmul.mubr.bf16.gmra.mrb[0].mxu0 %v1215
  %v3961 = vpop.f32.mrb[0].mxu0
  %v3962 = vadd.f32 %v486, %v3961
  %v3963 = vpop.f32.mrb[0].mxu0
  %v3964 = vpop.f32.mrb[0].mxu0
  %v3965 = vadd.f32 %v486, %v3964
  %v3966 = vpop.f32.mrb[0].mxu0
  %3967 = vmatprep.mubr.bf16.mxu0 %v1223
  %3968 = vmatmul.mubr.bf16.gmra.mrb[0].mxu0 %v1222
  %v3969 = vpop.f32.mrb[0].mxu0
  %v3970 = vadd.f32 %v486, %v3969
  %v3971 = vpop.f32.mrb[0].mxu0
  %v3972 = vpop.f32.mrb[0].mxu0
  %v3973 = vadd.f32 %v486, %v3972
  %v3974 = vpop.f32.mrb[0].mxu0
  %3975 = vmatprep.mubr.bf16.mxu0 %v1230
  %3976 = vmatmul.mubr.bf16.gmra.mrb[0].mxu0 %v1229
  %v3977 = vpop.f32.mrb[0].mxu0
  %v3978 = vadd.f32 %v486, %v3977
  %v3979 = vpop.f32.mrb[0].mxu0
  %v3980 = vpop.f32.mrb[0].mxu0
  %v3981 = vadd.f32 %v486, %v3980
  %v3982 = vpop.f32.mrb[0].mxu0
  %3983 = vmatprep.mubr.bf16.mxu0 %v1237
  %3984 = vmatmul.mubr.bf16.gmra.mrb[0].mxu0 %v1236
  %v3985 = vpop.f32.mrb[0].mxu0
  %v3986 = vadd.f32 %v486, %v3985
  %v3987 = vpop.f32.mrb[0].mxu0
  %v3988 = vpop.f32.mrb[0].mxu0
  %v3989 = vadd.f32 %v486, %v3988
  %v3990 = vpop.f32.mrb[0].mxu0
  %3991 = vmatprep.mubr.bf16.mxu0 %v1244
  %3992 = vmatmul.mubr.bf16.gmra.mrb[0].mxu0 %v1243
  %v3993 = vpop.f32.mrb[0].mxu0
  %v3994 = vadd.f32 %v486, %v3993
  %v3995 = vpop.f32.mrb[0].mxu0
  %v3996 = vpop.f32.mrb[0].mxu0
  %v3997 = vadd.f32 %v486, %v3996
  %v3998 = vpop.f32.mrb[0].mxu0
  %3999 = vmatprep.mubr.bf16.mxu0 %v1251
  %4000 = vmatmul.mubr.bf16.gmra.mrb[0].mxu0 %v1250
  %v4001 = vpop.f32.mrb[0].mxu0
  %v4002 = vadd.f32 %v486, %v4001
  %v4003 = vpop.f32.mrb[0].mxu0
  %v4004 = vpop.f32.mrb[0].mxu0
  %v4005 = vadd.f32 %v486, %v4004
  %v4006 = vpop.f32.mrb[0].mxu0
  %4007 = vmatprep.mubr.bf16.mxu0 %v1258
  %4008 = vmatmul.mubr.bf16.gmra.mrb[0].mxu0 %v1257
  %v4009 = vpop.f32.mrb[0].mxu0
  %v4010 = vadd.f32 %v486, %v4009
  %v4011 = vpop.f32.mrb[0].mxu0
  %v4012 = vpop.f32.mrb[0].mxu0
  %v4013 = vadd.f32 %v486, %v4012
  %v4014 = vpop.f32.mrb[0].mxu0
  %4015 = vmatprep.mubr.bf16.mxu0 %v1265
  %4016 = vmatmul.mubr.bf16.gmra.mrb[0].mxu0 %v1264
  %v4017 = vpop.f32.mrb[0].mxu0
  %v4018 = vadd.f32 %v486, %v4017
  %v4019 = vpop.f32.mrb[0].mxu0
  %v4020 = vpop.f32.mrb[0].mxu0
  %v4021 = vadd.f32 %v486, %v4020
  %v4022 = vpop.f32.mrb[0].mxu0
  %4023 = vmatprep.mubr.bf16.mxu0 %v1272
  %4024 = vmatmul.mubr.bf16.gmra.mrb[0].mxu0 %v1271
  %v4025 = vpop.f32.mrb[0].mxu0
  %v4026 = vadd.f32 %v486, %v4025
  %v4027 = vpop.f32.mrb[0].mxu0
  %v4028 = vpop.f32.mrb[0].mxu0
  %v4029 = vadd.f32 %v486, %v4028
  %v4030 = vpop.f32.mrb[0].mxu0
  %4031 = vmatprep.mubr.bf16.mxu0 %v1279
  %4032 = vmatmul.mubr.bf16.gmra.mrb[0].mxu0 %v1278
  %v4033 = vpop.f32.mrb[0].mxu0
  %v4034 = vadd.f32 %v486, %v4033
  %v4035 = vpop.f32.mrb[0].mxu0
  %v4036 = vpop.f32.mrb[0].mxu0
  %v4037 = vadd.f32 %v486, %v4036
  %v4038 = vpop.f32.mrb[0].mxu0
  %4039 = vmatprep.mubr.bf16.mxu0 %v1286
  %4040 = vmatmul.mubr.bf16.gmra.mrb[0].mxu0 %v1285
  %v4041 = vpop.f32.mrb[0].mxu0
  %v4042 = vadd.f32 %v486, %v4041
  %v4043 = vpop.f32.mrb[0].mxu0
  %v4044 = vpop.f32.mrb[0].mxu0
  %v4045 = vadd.f32 %v486, %v4044
  %v4046 = vpop.f32.mrb[0].mxu0
  %4047 = vmatprep.mubr.bf16.mxu0 %v1293
  %4048 = vmatmul.mubr.bf16.gmra.mrb[0].mxu0 %v1292
  %v4049 = vpop.f32.mrb[0].mxu0
  %v4050 = vadd.f32 %v486, %v4049
  %v4051 = vpop.f32.mrb[0].mxu0
  %v4052 = vpop.f32.mrb[0].mxu0
  %v4053 = vadd.f32 %v486, %v4052
  %v4054 = vpop.f32.mrb[0].mxu0
  %4055 = vmatprep.mubr.bf16.mxu0 %v1300
  %4056 = vmatmul.mubr.bf16.gmra.mrb[0].mxu0 %v1299
  %v4057 = vpop.f32.mrb[0].mxu0
  %v4058 = vadd.f32 %v486, %v4057
  %v4059 = vpop.f32.mrb[0].mxu0
  %v4060 = vpop.f32.mrb[0].mxu0
  %v4061 = vadd.f32 %v486, %v4060
  %v4062 = vpop.f32.mrb[0].mxu0
  %4063 = vmatprep.mubr.bf16.mxu0 %v1307
  %4064 = vmatmul.mubr.bf16.gmra.mrb[0].mxu0 %v1306
  %v4065 = vpop.f32.mrb[0].mxu0
  %v4066 = vadd.f32 %v486, %v4065
  %v4067 = vpop.f32.mrb[0].mxu0
  %v4068 = vpop.f32.mrb[0].mxu0
  %v4069 = vadd.f32 %v486, %v4068
  %v4070 = vpop.f32.mrb[0].mxu0
  %4071 = vmatprep.mubr.bf16.mxu0 %v1314
  %4072 = vmatmul.mubr.bf16.gmra.mrb[0].mxu0 %v1313
  %v4073 = vpop.f32.mrb[0].mxu0
  %v4074 = vadd.f32 %v486, %v4073
  %v4075 = vpop.f32.mrb[0].mxu0
  %v4076 = vpop.f32.mrb[0].mxu0
  %v4077 = vadd.f32 %v486, %v4076
  %v4078 = vpop.f32.mrb[0].mxu0
  %4079 = vmatprep.mubr.bf16.mxu0 %v1321
  %4080 = vmatmul.mubr.bf16.gmra.mrb[0].mxu0 %v1320
  %v4081 = vpop.f32.mrb[0].mxu0
  %v4082 = vadd.f32 %v486, %v4081
  %v4083 = vpop.f32.mrb[0].mxu0
  %v4084 = vpop.f32.mrb[0].mxu0
  %v4085 = vadd.f32 %v486, %v4084
  %v4086 = vpop.f32.mrb[0].mxu0
  %4087 = vmatprep.mubr.bf16.mxu0 %v1328
  %4088 = vmatmul.mubr.bf16.gmra.mrb[0].mxu0 %v1327
  %v4089 = vpop.f32.mrb[0].mxu0
  %v4090 = vadd.f32 %v486, %v4089
  %v4091 = vpop.f32.mrb[0].mxu0
  %v4092 = vpop.f32.mrb[0].mxu0
  %v4093 = vadd.f32 %v486, %v4092
  %v4094 = vpop.f32.mrb[0].mxu0
  %4095 = vmatprep.mubr.bf16.mxu0 %v1335
  %4096 = vmatmul.mubr.bf16.gmra.mrb[0].mxu0 %v1334
  %v4097 = vpop.f32.mrb[0].mxu0
  %v4098 = vadd.f32 %v486, %v4097
  %v4099 = vpop.f32.mrb[0].mxu0
  %v4100 = vpop.f32.mrb[0].mxu0
  %v4101 = vadd.f32 %v486, %v4100
  %v4102 = vpop.f32.mrb[0].mxu0
  %4103 = vmatprep.mubr.bf16.mxu0 %v1342
  %4104 = vmatmul.mubr.bf16.gmra.mrb[0].mxu0 %v1341
  %v4105 = vpop.f32.mrb[0].mxu0
  %v4106 = vadd.f32 %v486, %v4105
  %v4107 = vpop.f32.mrb[0].mxu0
  %v4108 = vpop.f32.mrb[0].mxu0
  %v4109 = vadd.f32 %v486, %v4108
  %v4110 = vpop.f32.mrb[0].mxu0
  %4111 = vmatprep.mubr.bf16.mxu0 %v1349
  %4112 = vmatmul.mubr.bf16.gmra.mrb[0].mxu0 %v1348
  %v4113 = vpop.f32.mrb[0].mxu0
  %v4114 = vadd.f32 %v486, %v4113
  %v4115 = vpop.f32.mrb[0].mxu0
  %v4116 = vpop.f32.mrb[0].mxu0
  %v4117 = vadd.f32 %v486, %v4116
  %v4118 = vpop.f32.mrb[0].mxu0
  %4119 = vmatprep.mubr.bf16.mxu0 %v1356
  %4120 = vmatmul.mubr.bf16.gmra.mrb[0].mxu0 %v1355
  %v4121 = vpop.f32.mrb[0].mxu0
  %v4122 = vadd.f32 %v486, %v4121
  %v4123 = vpop.f32.mrb[0].mxu0
  %v4124 = vpop.f32.mrb[0].mxu0
  %v4125 = vadd.f32 %v486, %v4124
  %v4126 = vpop.f32.mrb[0].mxu0
  %4127 = vmatprep.mubr.bf16.mxu0 %v1363
  %4128 = vmatmul.mubr.bf16.gmra.mrb[0].mxu0 %v1362
  %v4129 = vpop.f32.mrb[0].mxu0
  %v4130 = vadd.f32 %v486, %v4129
  %v4131 = vpop.f32.mrb[0].mxu0
  %v4132 = vpop.f32.mrb[0].mxu0
  %v4133 = vadd.f32 %v486, %v4132
  %v4134 = vpop.f32.mrb[0].mxu0
  %4135 = vmatprep.mubr.bf16.mxu0 %v1370
  %4136 = vmatmul.mubr.bf16.gmra.mrb[0].mxu0 %v1369
  %v4137 = vpop.f32.mrb[0].mxu0
  %v4138 = vadd.f32 %v486, %v4137
  %v4139 = vpop.f32.mrb[0].mxu0
  %v4140 = vpop.f32.mrb[0].mxu0
  %v4141 = vadd.f32 %v486, %v4140
  %v4142 = vpop.f32.mrb[0].mxu0
  %4143 = vmatprep.mubr.bf16.mxu0 %v1377
  %4144 = vmatmul.mubr.bf16.gmra.mrb[0].mxu0 %v1376
  %v4145 = vpop.f32.mrb[0].mxu0
  %v4146 = vadd.f32 %v486, %v4145
  %v4147 = vpop.f32.mrb[0].mxu0
  %v4148 = vpop.f32.mrb[0].mxu0
  %v4149 = vadd.f32 %v486, %v4148
  %v4150 = vpop.f32.mrb[0].mxu0
  %4151 = vmatprep.mubr.bf16.mxu0 %v1384
  %4152 = vmatmul.mubr.bf16.gmra.mrb[0].mxu0 %v1383
  %v4153 = vpop.f32.mrb[0].mxu0
  %v4154 = vadd.f32 %v486, %v4153
  %v4155 = vpop.f32.mrb[0].mxu0
  %v4156 = vpop.f32.mrb[0].mxu0
  %v4157 = vadd.f32 %v486, %v4156
  %v4158 = vpop.f32.mrb[0].mxu0
  %4159 = vmatprep.mubr.bf16.mxu0 %v1391
  %4160 = vmatmul.mubr.bf16.gmra.mrb[0].mxu0 %v1390
  %v4161 = vpop.f32.mrb[0].mxu0
  %v4162 = vadd.f32 %v486, %v4161
  %v4163 = vpop.f32.mrb[0].mxu0
  %v4164 = vpop.f32.mrb[0].mxu0
  %v4165 = vadd.f32 %v486, %v4164
  %v4166 = vpop.f32.mrb[0].mxu0
  %4167 = vmatprep.mubr.bf16.mxu0 %v1398
  %4168 = vmatmul.mubr.bf16.gmra.mrb[0].mxu0 %v1397
  %v4169 = vpop.f32.mrb[0].mxu0
  %v4170 = vadd.f32 %v486, %v4169
  %v4171 = vpop.f32.mrb[0].mxu0
  %v4172 = vpop.f32.mrb[0].mxu0
  %v4173 = vadd.f32 %v486, %v4172
  %v4174 = vpop.f32.mrb[0].mxu0
  %4175 = vmatprep.mubr.bf16.mxu0 %v1405
  %4176 = vmatmul.mubr.bf16.gmra.mrb[0].mxu0 %v1404
  %v4177 = vpop.f32.mrb[0].mxu0
  %v4178 = vadd.f32 %v486, %v4177
  %v4179 = vpop.f32.mrb[0].mxu0
  %v4180 = vpop.f32.mrb[0].mxu0
  %v4181 = vadd.f32 %v486, %v4180
  %v4182 = vpop.f32.mrb[0].mxu0
  %4183 = vmatprep.mubr.bf16.mxu0 %v1412
  %4184 = vmatmul.mubr.bf16.gmra.mrb[0].mxu0 %v1411
  %v4185 = vpop.f32.mrb[0].mxu0
  %v4186 = vadd.f32 %v486, %v4185
  %v4187 = vpop.f32.mrb[0].mxu0
  %v4188 = vpop.f32.mrb[0].mxu0
  %v4189 = vadd.f32 %v486, %v4188
  %v4190 = vpop.f32.mrb[0].mxu0
  %4191 = vdwg.mxu0
  %4192 = vmatprep.subr.bf16.mxu0 0
  %4193 = vmatpush1.bf16.msra.mxu0 %v2150
  %4194 = vmatprep.subr.bf16.mxu0 0
  %4195 = vmatpush1.bf16.msra.mxu0 %v2153
  %4196 = vmatprep.subr.bf16.mxu0 0
  %4197 = vmatpush1.bf16.msra.mxu0 %v2156
  %4198 = vmatprep.subr.bf16.mxu0 0
  %4199 = vmatpush1.bf16.msra.mxu0 %v2159
  %4200 = vmatprep.subr.bf16.mxu0 0
  %4201 = vmatpush1.bf16.msra.mxu0 %v2162
  %4202 = vmatprep.subr.bf16.mxu0 0
  %4203 = vmatpush1.bf16.msra.mxu0 %v2165
  %4204 = vmatprep.subr.bf16.mxu0 0
  %4205 = vmatpush1.bf16.msra.mxu0 %v2168
  %4206 = vmatprep.subr.bf16.mxu0 0
  %4207 = vmatpush1.bf16.msra.mxu0 %v2171
  %4208 = vmatprep.subr.bf16.mxu0 0
  %4209 = vmatpush1.bf16.msra.mxu0 %v2174
  %4210 = vmatprep.subr.bf16.mxu0 0
  %4211 = vmatpush1.bf16.msra.mxu0 %v2177
  %4212 = vmatprep.subr.bf16.mxu0 0
  %4213 = vmatpush1.bf16.msra.mxu0 %v2180
  %4214 = vmatprep.subr.bf16.mxu0 0
  %4215 = vmatpush1.bf16.msra.mxu0 %v2183
  %4216 = vmatprep.subr.bf16.mxu0 0
  %4217 = vmatpush1.bf16.msra.mxu0 %v2186
  %4218 = vmatprep.subr.bf16.mxu0 0
  %4219 = vmatpush1.bf16.msra.mxu0 %v2189
  %4220 = vmatprep.subr.bf16.mxu0 0
  %4221 = vmatpush1.bf16.msra.mxu0 %v2192
  %4222 = vmatprep.subr.bf16.mxu0 0
  %4223 = vmatpush1.bf16.msra.mxu0 %v2195
  %4224 = vmatprep.mubr.bf16.mxu0 %v1197
  %4225 = vmatmul.mubr.bf16.gmra.mrb[0].mxu0 %v1196
  %v4226 = vpop.f32.mrb[0].mxu0
  %v4227 = vadd.f32 %v3938, %v4226
  %v4228 = vpop.f32.mrb[0].mxu0
  %v4229 = vpop.f32.mrb[0].mxu0
  %v4230 = vadd.f32 %v3941, %v4229
  %v4231 = vpop.f32.mrb[0].mxu0
  %4232 = vmatprep.mubr.bf16.mxu0 %v1204
  %4233 = vmatmul.mubr.bf16.gmra.mrb[0].mxu0 %v1203
  %v4234 = vpop.f32.mrb[0].mxu0
  %v4235 = vadd.f32 %v3946, %v4234
  %v4236 = vpop.f32.mrb[0].mxu0
  %v4237 = vpop.f32.mrb[0].mxu0
  %v4238 = vadd.f32 %v3949, %v4237
  %v4239 = vpop.f32.mrb[0].mxu0
  %4240 = vmatprep.mubr.bf16.mxu0 %v1211
  %4241 = vmatmul.mubr.bf16.gmra.mrb[0].mxu0 %v1210
  %v4242 = vpop.f32.mrb[0].mxu0
  %v4243 = vadd.f32 %v3954, %v4242
  %v4244 = vpop.f32.mrb[0].mxu0
  %v4245 = vpop.f32.mrb[0].mxu0
  %v4246 = vadd.f32 %v3957, %v4245
  %v4247 = vpop.f32.mrb[0].mxu0
  %4248 = vmatprep.mubr.bf16.mxu0 %v1218
  %4249 = vmatmul.mubr.bf16.gmra.mrb[0].mxu0 %v1217
  %v4250 = vpop.f32.mrb[0].mxu0
  %v4251 = vadd.f32 %v3962, %v4250
  %v4252 = vpop.f32.mrb[0].mxu0
  %v4253 = vpop.f32.mrb[0].mxu0
  %v4254 = vadd.f32 %v3965, %v4253
  %v4255 = vpop.f32.mrb[0].mxu0
  %4256 = vmatprep.mubr.bf16.mxu0 %v1225
  %4257 = vmatmul.mubr.bf16.gmra.mrb[0].mxu0 %v1224
  %v4258 = vpop.f32.mrb[0].mxu0
  %v4259 = vadd.f32 %v3970, %v4258
  %v4260 = vpop.f32.mrb[0].mxu0
  %v4261 = vpop.f32.mrb[0].mxu0
  %v4262 = vadd.f32 %v3973, %v4261
  %v4263 = vpop.f32.mrb[0].mxu0
  %4264 = vmatprep.mubr.bf16.mxu0 %v1232
  %4265 = vmatmul.mubr.bf16.gmra.mrb[0].mxu0 %v1231
  %v4266 = vpop.f32.mrb[0].mxu0
  %v4267 = vadd.f32 %v3978, %v4266
  %v4268 = vpop.f32.mrb[0].mxu0
  %v4269 = vpop.f32.mrb[0].mxu0
  %v4270 = vadd.f32 %v3981, %v4269
  %v4271 = vpop.f32.mrb[0].mxu0
  %4272 = vmatprep.mubr.bf16.mxu0 %v1239
  %4273 = vmatmul.mubr.bf16.gmra.mrb[0].mxu0 %v1238
  %v4274 = vpop.f32.mrb[0].mxu0
  %v4275 = vadd.f32 %v3986, %v4274
  %v4276 = vpop.f32.mrb[0].mxu0
  %v4277 = vpop.f32.mrb[0].mxu0
  %v4278 = vadd.f32 %v3989, %v4277
  %v4279 = vpop.f32.mrb[0].mxu0
  %4280 = vmatprep.mubr.bf16.mxu0 %v1246
  %4281 = vmatmul.mubr.bf16.gmra.mrb[0].mxu0 %v1245
  %v4282 = vpop.f32.mrb[0].mxu0
  %v4283 = vadd.f32 %v3994, %v4282
  %v4284 = vpop.f32.mrb[0].mxu0
  %v4285 = vpop.f32.mrb[0].mxu0
  %v4286 = vadd.f32 %v3997, %v4285
  %v4287 = vpop.f32.mrb[0].mxu0
  %4288 = vmatprep.mubr.bf16.mxu0 %v1253
  %4289 = vmatmul.mubr.bf16.gmra.mrb[0].mxu0 %v1252
  %v4290 = vpop.f32.mrb[0].mxu0
  %v4291 = vadd.f32 %v4002, %v4290
  %v4292 = vpop.f32.mrb[0].mxu0
  %v4293 = vpop.f32.mrb[0].mxu0
  %v4294 = vadd.f32 %v4005, %v4293
  %v4295 = vpop.f32.mrb[0].mxu0
  %4296 = vmatprep.mubr.bf16.mxu0 %v1260
  %4297 = vmatmul.mubr.bf16.gmra.mrb[0].mxu0 %v1259
  %v4298 = vpop.f32.mrb[0].mxu0
  %v4299 = vadd.f32 %v4010, %v4298
  %v4300 = vpop.f32.mrb[0].mxu0
  %v4301 = vpop.f32.mrb[0].mxu0
  %v4302 = vadd.f32 %v4013, %v4301
  %v4303 = vpop.f32.mrb[0].mxu0
  %4304 = vmatprep.mubr.bf16.mxu0 %v1267
  %4305 = vmatmul.mubr.bf16.gmra.mrb[0].mxu0 %v1266
  %v4306 = vpop.f32.mrb[0].mxu0
  %v4307 = vadd.f32 %v4018, %v4306
  %v4308 = vpop.f32.mrb[0].mxu0
  %v4309 = vpop.f32.mrb[0].mxu0
  %v4310 = vadd.f32 %v4021, %v4309
  %v4311 = vpop.f32.mrb[0].mxu0
  %4312 = vmatprep.mubr.bf16.mxu0 %v1274
  %4313 = vmatmul.mubr.bf16.gmra.mrb[0].mxu0 %v1273
  %v4314 = vpop.f32.mrb[0].mxu0
  %v4315 = vadd.f32 %v4026, %v4314
  %v4316 = vpop.f32.mrb[0].mxu0
  %v4317 = vpop.f32.mrb[0].mxu0
  %v4318 = vadd.f32 %v4029, %v4317
  %v4319 = vpop.f32.mrb[0].mxu0
  %4320 = vmatprep.mubr.bf16.mxu0 %v1281
  %4321 = vmatmul.mubr.bf16.gmra.mrb[0].mxu0 %v1280
  %v4322 = vpop.f32.mrb[0].mxu0
  %v4323 = vadd.f32 %v4034, %v4322
  %v4324 = vpop.f32.mrb[0].mxu0
  %v4325 = vpop.f32.mrb[0].mxu0
  %v4326 = vadd.f32 %v4037, %v4325
  %v4327 = vpop.f32.mrb[0].mxu0
  %4328 = vmatprep.mubr.bf16.mxu0 %v1288
  %4329 = vmatmul.mubr.bf16.gmra.mrb[0].mxu0 %v1287
  %v4330 = vpop.f32.mrb[0].mxu0
  %v4331 = vadd.f32 %v4042, %v4330
  %v4332 = vpop.f32.mrb[0].mxu0
  %v4333 = vpop.f32.mrb[0].mxu0
  %v4334 = vadd.f32 %v4045, %v4333
  %v4335 = vpop.f32.mrb[0].mxu0
  %4336 = vmatprep.mubr.bf16.mxu0 %v1295
  %4337 = vmatmul.mubr.bf16.gmra.mrb[0].mxu0 %v1294
  %v4338 = vpop.f32.mrb[0].mxu0
  %v4339 = vadd.f32 %v4050, %v4338
  %v4340 = vpop.f32.mrb[0].mxu0
  %v4341 = vpop.f32.mrb[0].mxu0
  %v4342 = vadd.f32 %v4053, %v4341
  %v4343 = vpop.f32.mrb[0].mxu0
  %4344 = vmatprep.mubr.bf16.mxu0 %v1302
  %4345 = vmatmul.mubr.bf16.gmra.mrb[0].mxu0 %v1301
  %v4346 = vpop.f32.mrb[0].mxu0
  %v4347 = vadd.f32 %v4058, %v4346
  %v4348 = vpop.f32.mrb[0].mxu0
  %v4349 = vpop.f32.mrb[0].mxu0
  %v4350 = vadd.f32 %v4061, %v4349
  %v4351 = vpop.f32.mrb[0].mxu0
  %4352 = vmatprep.mubr.bf16.mxu0 %v1309
  %4353 = vmatmul.mubr.bf16.gmra.mrb[0].mxu0 %v1308
  %v4354 = vpop.f32.mrb[0].mxu0
  %v4355 = vadd.f32 %v4066, %v4354
  %v4356 = vpop.f32.mrb[0].mxu0
  %v4357 = vpop.f32.mrb[0].mxu0
  %v4358 = vadd.f32 %v4069, %v4357
  %v4359 = vpop.f32.mrb[0].mxu0
  %4360 = vmatprep.mubr.bf16.mxu0 %v1316
  %4361 = vmatmul.mubr.bf16.gmra.mrb[0].mxu0 %v1315
  %v4362 = vpop.f32.mrb[0].mxu0
  %v4363 = vadd.f32 %v4074, %v4362
  %v4364 = vpop.f32.mrb[0].mxu0
  %v4365 = vpop.f32.mrb[0].mxu0
  %v4366 = vadd.f32 %v4077, %v4365
  %v4367 = vpop.f32.mrb[0].mxu0
  %4368 = vmatprep.mubr.bf16.mxu0 %v1323
  %4369 = vmatmul.mubr.bf16.gmra.mrb[0].mxu0 %v1322
  %v4370 = vpop.f32.mrb[0].mxu0
  %v4371 = vadd.f32 %v4082, %v4370
  %v4372 = vpop.f32.mrb[0].mxu0
  %v4373 = vpop.f32.mrb[0].mxu0
  %v4374 = vadd.f32 %v4085, %v4373
  %v4375 = vpop.f32.mrb[0].mxu0
  %4376 = vmatprep.mubr.bf16.mxu0 %v1330
  %4377 = vmatmul.mubr.bf16.gmra.mrb[0].mxu0 %v1329
  %v4378 = vpop.f32.mrb[0].mxu0
  %v4379 = vadd.f32 %v4090, %v4378
  %v4380 = vpop.f32.mrb[0].mxu0
  %v4381 = vpop.f32.mrb[0].mxu0
  %v4382 = vadd.f32 %v4093, %v4381
  %v4383 = vpop.f32.mrb[0].mxu0
  %4384 = vmatprep.mubr.bf16.mxu0 %v1337
  %4385 = vmatmul.mubr.bf16.gmra.mrb[0].mxu0 %v1336
  %v4386 = vpop.f32.mrb[0].mxu0
  %v4387 = vadd.f32 %v4098, %v4386
  %v4388 = vpop.f32.mrb[0].mxu0
  %v4389 = vpop.f32.mrb[0].mxu0
  %v4390 = vadd.f32 %v4101, %v4389
  %v4391 = vpop.f32.mrb[0].mxu0
  %4392 = vmatprep.mubr.bf16.mxu0 %v1344
  %4393 = vmatmul.mubr.bf16.gmra.mrb[0].mxu0 %v1343
  %v4394 = vpop.f32.mrb[0].mxu0
  %v4395 = vadd.f32 %v4106, %v4394
  %v4396 = vpop.f32.mrb[0].mxu0
  %v4397 = vpop.f32.mrb[0].mxu0
  %v4398 = vadd.f32 %v4109, %v4397
  %v4399 = vpop.f32.mrb[0].mxu0
  %4400 = vmatprep.mubr.bf16.mxu0 %v1351
  %4401 = vmatmul.mubr.bf16.gmra.mrb[0].mxu0 %v1350
  %v4402 = vpop.f32.mrb[0].mxu0
  %v4403 = vadd.f32 %v4114, %v4402
  %v4404 = vpop.f32.mrb[0].mxu0
  %v4405 = vpop.f32.mrb[0].mxu0
  %v4406 = vadd.f32 %v4117, %v4405
  %v4407 = vpop.f32.mrb[0].mxu0
  %4408 = vmatprep.mubr.bf16.mxu0 %v1358
  %4409 = vmatmul.mubr.bf16.gmra.mrb[0].mxu0 %v1357
  %v4410 = vpop.f32.mrb[0].mxu0
  %v4411 = vadd.f32 %v4122, %v4410
  %v4412 = vpop.f32.mrb[0].mxu0
  %v4413 = vpop.f32.mrb[0].mxu0
  %v4414 = vadd.f32 %v4125, %v4413
  %v4415 = vpop.f32.mrb[0].mxu0
  %4416 = vmatprep.mubr.bf16.mxu0 %v1365
  %4417 = vmatmul.mubr.bf16.gmra.mrb[0].mxu0 %v1364
  %v4418 = vpop.f32.mrb[0].mxu0
  %v4419 = vadd.f32 %v4130, %v4418
  %v4420 = vpop.f32.mrb[0].mxu0
  %v4421 = vpop.f32.mrb[0].mxu0
  %v4422 = vadd.f32 %v4133, %v4421
  %v4423 = vpop.f32.mrb[0].mxu0
  %4424 = vmatprep.mubr.bf16.mxu0 %v1372
  %4425 = vmatmul.mubr.bf16.gmra.mrb[0].mxu0 %v1371
  %v4426 = vpop.f32.mrb[0].mxu0
  %v4427 = vadd.f32 %v4138, %v4426
  %v4428 = vpop.f32.mrb[0].mxu0
  %v4429 = vpop.f32.mrb[0].mxu0
  %v4430 = vadd.f32 %v4141, %v4429
  %v4431 = vpop.f32.mrb[0].mxu0
  %4432 = vmatprep.mubr.bf16.mxu0 %v1379
  %4433 = vmatmul.mubr.bf16.gmra.mrb[0].mxu0 %v1378
  %v4434 = vpop.f32.mrb[0].mxu0
  %v4435 = vadd.f32 %v4146, %v4434
  %v4436 = vpop.f32.mrb[0].mxu0
  %v4437 = vpop.f32.mrb[0].mxu0
  %v4438 = vadd.f32 %v4149, %v4437
  %v4439 = vpop.f32.mrb[0].mxu0
  %4440 = vmatprep.mubr.bf16.mxu0 %v1386
  %4441 = vmatmul.mubr.bf16.gmra.mrb[0].mxu0 %v1385
  %v4442 = vpop.f32.mrb[0].mxu0
  %v4443 = vadd.f32 %v4154, %v4442
  %v4444 = vpop.f32.mrb[0].mxu0
  %v4445 = vpop.f32.mrb[0].mxu0
  %v4446 = vadd.f32 %v4157, %v4445
  %v4447 = vpop.f32.mrb[0].mxu0
  %4448 = vmatprep.mubr.bf16.mxu0 %v1393
  %4449 = vmatmul.mubr.bf16.gmra.mrb[0].mxu0 %v1392
  %v4450 = vpop.f32.mrb[0].mxu0
  %v4451 = vadd.f32 %v4162, %v4450
  %v4452 = vpop.f32.mrb[0].mxu0
  %v4453 = vpop.f32.mrb[0].mxu0
  %v4454 = vadd.f32 %v4165, %v4453
  %v4455 = vpop.f32.mrb[0].mxu0
  %4456 = vmatprep.mubr.bf16.mxu0 %v1400
  %4457 = vmatmul.mubr.bf16.gmra.mrb[0].mxu0 %v1399
  %v4458 = vpop.f32.mrb[0].mxu0
  %v4459 = vadd.f32 %v4170, %v4458
  %v4460 = vpop.f32.mrb[0].mxu0
  %v4461 = vpop.f32.mrb[0].mxu0
  %v4462 = vadd.f32 %v4173, %v4461
  %v4463 = vpop.f32.mrb[0].mxu0
  %4464 = vmatprep.mubr.bf16.mxu0 %v1407
  %4465 = vmatmul.mubr.bf16.gmra.mrb[0].mxu0 %v1406
  %v4466 = vpop.f32.mrb[0].mxu0
  %v4467 = vadd.f32 %v4178, %v4466
  %v4468 = vpop.f32.mrb[0].mxu0
  %v4469 = vpop.f32.mrb[0].mxu0
  %v4470 = vadd.f32 %v4181, %v4469
  %v4471 = vpop.f32.mrb[0].mxu0
  %4472 = vmatprep.mubr.bf16.mxu0 %v1414
  %4473 = vmatmul.mubr.bf16.gmra.mrb[0].mxu0 %v1413
  %v4474 = vpop.f32.mrb[0].mxu0
  %v4475 = vadd.f32 %v4186, %v4474
  %v4476 = vpop.f32.mrb[0].mxu0
  %v4477 = vpop.f32.mrb[0].mxu0
  %v4478 = vadd.f32 %v4189, %v4477
  %v4479 = vpop.f32.mrb[0].mxu0
  %4480 = vdwg.mxu0
  %4481 = vmatprep.subr.bf16.mxu0 0
  %4482 = vmatpush1.bf16.msra.mxu0 %v2198
  %4483 = vmatprep.subr.bf16.mxu0 0
  %4484 = vmatpush1.bf16.msra.mxu0 %v2201
  %4485 = vmatprep.subr.bf16.mxu0 0
  %4486 = vmatpush1.bf16.msra.mxu0 %v2204
  %4487 = vmatprep.subr.bf16.mxu0 0
  %4488 = vmatpush1.bf16.msra.mxu0 %v2207
  %4489 = vmatprep.subr.bf16.mxu0 0
  %4490 = vmatpush1.bf16.msra.mxu0 %v2210
  %4491 = vmatprep.subr.bf16.mxu0 0
  %4492 = vmatpush1.bf16.msra.mxu0 %v2213
  %4493 = vmatprep.subr.bf16.mxu0 0
  %4494 = vmatpush1.bf16.msra.mxu0 %v2216
  %4495 = vmatprep.subr.bf16.mxu0 0
  %4496 = vmatpush1.bf16.msra.mxu0 %v2219
  %4497 = vmatprep.subr.bf16.mxu0 0
  %4498 = vmatpush1.bf16.msra.mxu0 %v2222
  %4499 = vmatprep.subr.bf16.mxu0 0
  %4500 = vmatpush1.bf16.msra.mxu0 %v2225
  %4501 = vmatprep.subr.bf16.mxu0 0
  %4502 = vmatpush1.bf16.msra.mxu0 %v2228
  %4503 = vmatprep.subr.bf16.mxu0 0
  %4504 = vmatpush1.bf16.msra.mxu0 %v2231
  %4505 = vmatprep.subr.bf16.mxu0 0
  %4506 = vmatpush1.bf16.msra.mxu0 %v2234
  %4507 = vmatprep.subr.bf16.mxu0 0
  %4508 = vmatpush1.bf16.msra.mxu0 %v2237
  %4509 = vmatprep.subr.bf16.mxu0 0
  %4510 = vmatpush1.bf16.msra.mxu0 %v2240
  %4511 = vmatprep.subr.bf16.mxu0 0
  %4512 = vmatpush1.bf16.msra.mxu0 %v2243
  %4513 = vmatprep.mubr.bf16.mxu0 %v1199
  %4514 = vmatmul.mubr.bf16.gmra.mrb[0].mxu0 %v1198
  %v4515 = vpop.f32.mrb[0].mxu0
  %v4516 = vadd.f32 %v4227, %v4515
  %v4517 = vpop.f32.mrb[0].mxu0
  %v4518 = vpop.f32.mrb[0].mxu0
  %v4519 = vadd.f32 %v4230, %v4518
  %v4520 = vpop.f32.mrb[0].mxu0
  %4521 = vmatprep.mubr.bf16.mxu0 %v1206
  %4522 = vmatmul.mubr.bf16.gmra.mrb[0].mxu0 %v1205
  %v4523 = vpop.f32.mrb[0].mxu0
  %v4524 = vadd.f32 %v4235, %v4523
  %v4525 = vpop.f32.mrb[0].mxu0
  %v4526 = vpop.f32.mrb[0].mxu0
  %v4527 = vadd.f32 %v4238, %v4526
  %v4528 = vpop.f32.mrb[0].mxu0
  %4529 = vmatprep.mubr.bf16.mxu0 %v1213
  %4530 = vmatmul.mubr.bf16.gmra.mrb[0].mxu0 %v1212
  %v4531 = vpop.f32.mrb[0].mxu0
  %v4532 = vadd.f32 %v4243, %v4531
  %v4533 = vpop.f32.mrb[0].mxu0
  %v4534 = vpop.f32.mrb[0].mxu0
  %v4535 = vadd.f32 %v4246, %v4534
  %v4536 = vpop.f32.mrb[0].mxu0
  %4537 = vmatprep.mubr.bf16.mxu0 %v1220
  %4538 = vmatmul.mubr.bf16.gmra.mrb[0].mxu0 %v1219
  %v4539 = vpop.f32.mrb[0].mxu0
  %v4540 = vadd.f32 %v4251, %v4539
  %v4541 = vpop.f32.mrb[0].mxu0
  %v4542 = vpop.f32.mrb[0].mxu0
  %v4543 = vadd.f32 %v4254, %v4542
  %v4544 = vpop.f32.mrb[0].mxu0
  %4545 = vmatprep.mubr.bf16.mxu0 %v1227
  %4546 = vmatmul.mubr.bf16.gmra.mrb[0].mxu0 %v1226
  %v4547 = vpop.f32.mrb[0].mxu0
  %v4548 = vadd.f32 %v4259, %v4547
  %v4549 = vpop.f32.mrb[0].mxu0
  %v4550 = vpop.f32.mrb[0].mxu0
  %v4551 = vadd.f32 %v4262, %v4550
  %v4552 = vpop.f32.mrb[0].mxu0
  %4553 = vmatprep.mubr.bf16.mxu0 %v1234
  %4554 = vmatmul.mubr.bf16.gmra.mrb[0].mxu0 %v1233
  %v4555 = vpop.f32.mrb[0].mxu0
  %v4556 = vadd.f32 %v4267, %v4555
  %v4557 = vpop.f32.mrb[0].mxu0
  %v4558 = vpop.f32.mrb[0].mxu0
  %v4559 = vadd.f32 %v4270, %v4558
  %v4560 = vpop.f32.mrb[0].mxu0
  %4561 = vmatprep.mubr.bf16.mxu0 %v1241
  %4562 = vmatmul.mubr.bf16.gmra.mrb[0].mxu0 %v1240
  %v4563 = vpop.f32.mrb[0].mxu0
  %v4564 = vadd.f32 %v4275, %v4563
  %v4565 = vpop.f32.mrb[0].mxu0
  %v4566 = vpop.f32.mrb[0].mxu0
  %v4567 = vadd.f32 %v4278, %v4566
  %v4568 = vpop.f32.mrb[0].mxu0
  %4569 = vmatprep.mubr.bf16.mxu0 %v1248
  %4570 = vmatmul.mubr.bf16.gmra.mrb[0].mxu0 %v1247
  %v4571 = vpop.f32.mrb[0].mxu0
  %v4572 = vadd.f32 %v4283, %v4571
  %v4573 = vpop.f32.mrb[0].mxu0
  %v4574 = vpop.f32.mrb[0].mxu0
  %v4575 = vadd.f32 %v4286, %v4574
  %v4576 = vpop.f32.mrb[0].mxu0
  %4577 = vmatprep.mubr.bf16.mxu0 %v1255
  %4578 = vmatmul.mubr.bf16.gmra.mrb[0].mxu0 %v1254
  %v4579 = vpop.f32.mrb[0].mxu0
  %v4580 = vadd.f32 %v4291, %v4579
  %v4581 = vpop.f32.mrb[0].mxu0
  %v4582 = vpop.f32.mrb[0].mxu0
  %v4583 = vadd.f32 %v4294, %v4582
  %v4584 = vpop.f32.mrb[0].mxu0
  %4585 = vmatprep.mubr.bf16.mxu0 %v1262
  %4586 = vmatmul.mubr.bf16.gmra.mrb[0].mxu0 %v1261
  %v4587 = vpop.f32.mrb[0].mxu0
  %v4588 = vadd.f32 %v4299, %v4587
  %v4589 = vpop.f32.mrb[0].mxu0
  %v4590 = vpop.f32.mrb[0].mxu0
  %v4591 = vadd.f32 %v4302, %v4590
  %v4592 = vpop.f32.mrb[0].mxu0
  %4593 = vmatprep.mubr.bf16.mxu0 %v1269
  %4594 = vmatmul.mubr.bf16.gmra.mrb[0].mxu0 %v1268
  %v4595 = vpop.f32.mrb[0].mxu0
  %v4596 = vadd.f32 %v4307, %v4595
  %v4597 = vpop.f32.mrb[0].mxu0
  %v4598 = vpop.f32.mrb[0].mxu0
  %v4599 = vadd.f32 %v4310, %v4598
  %v4600 = vpop.f32.mrb[0].mxu0
  %4601 = vmatprep.mubr.bf16.mxu0 %v1276
  %4602 = vmatmul.mubr.bf16.gmra.mrb[0].mxu0 %v1275
  %v4603 = vpop.f32.mrb[0].mxu0
  %v4604 = vadd.f32 %v4315, %v4603
  %v4605 = vpop.f32.mrb[0].mxu0
  %v4606 = vpop.f32.mrb[0].mxu0
  %v4607 = vadd.f32 %v4318, %v4606
  %v4608 = vpop.f32.mrb[0].mxu0
  %4609 = vmatprep.mubr.bf16.mxu0 %v1283
  %4610 = vmatmul.mubr.bf16.gmra.mrb[0].mxu0 %v1282
  %v4611 = vpop.f32.mrb[0].mxu0
  %v4612 = vadd.f32 %v4323, %v4611
  %v4613 = vpop.f32.mrb[0].mxu0
  %v4614 = vpop.f32.mrb[0].mxu0
  %v4615 = vadd.f32 %v4326, %v4614
  %v4616 = vpop.f32.mrb[0].mxu0
  %4617 = vmatprep.mubr.bf16.mxu0 %v1290
  %4618 = vmatmul.mubr.bf16.gmra.mrb[0].mxu0 %v1289
  %v4619 = vpop.f32.mrb[0].mxu0
  %v4620 = vadd.f32 %v4331, %v4619
  %v4621 = vpop.f32.mrb[0].mxu0
  %v4622 = vpop.f32.mrb[0].mxu0
  %v4623 = vadd.f32 %v4334, %v4622
  %v4624 = vpop.f32.mrb[0].mxu0
  %4625 = vmatprep.mubr.bf16.mxu0 %v1297
  %4626 = vmatmul.mubr.bf16.gmra.mrb[0].mxu0 %v1296
  %v4627 = vpop.f32.mrb[0].mxu0
  %v4628 = vadd.f32 %v4339, %v4627
  %v4629 = vpop.f32.mrb[0].mxu0
  %v4630 = vpop.f32.mrb[0].mxu0
  %v4631 = vadd.f32 %v4342, %v4630
  %v4632 = vpop.f32.mrb[0].mxu0
  %4633 = vmatprep.mubr.bf16.mxu0 %v1304
  %4634 = vmatmul.mubr.bf16.gmra.mrb[0].mxu0 %v1303
  %v4635 = vpop.f32.mrb[0].mxu0
  %v4636 = vadd.f32 %v4347, %v4635
  %v4637 = vpop.f32.mrb[0].mxu0
  %v4638 = vpop.f32.mrb[0].mxu0
  %v4639 = vadd.f32 %v4350, %v4638
  %v4640 = vpop.f32.mrb[0].mxu0
  %4641 = vmatprep.mubr.bf16.mxu0 %v1311
  %4642 = vmatmul.mubr.bf16.gmra.mrb[0].mxu0 %v1310
  %v4643 = vpop.f32.mrb[0].mxu0
  %v4644 = vadd.f32 %v4355, %v4643
  %v4645 = vpop.f32.mrb[0].mxu0
  %v4646 = vpop.f32.mrb[0].mxu0
  %v4647 = vadd.f32 %v4358, %v4646
  %v4648 = vpop.f32.mrb[0].mxu0
  %4649 = vmatprep.mubr.bf16.mxu0 %v1318
  %4650 = vmatmul.mubr.bf16.gmra.mrb[0].mxu0 %v1317
  %v4651 = vpop.f32.mrb[0].mxu0
  %v4652 = vadd.f32 %v4363, %v4651
  %v4653 = vpop.f32.mrb[0].mxu0
  %v4654 = vpop.f32.mrb[0].mxu0
  %v4655 = vadd.f32 %v4366, %v4654
  %v4656 = vpop.f32.mrb[0].mxu0
  %4657 = vmatprep.mubr.bf16.mxu0 %v1325
  %4658 = vmatmul.mubr.bf16.gmra.mrb[0].mxu0 %v1324
  %v4659 = vpop.f32.mrb[0].mxu0
  %v4660 = vadd.f32 %v4371, %v4659
  %v4661 = vpop.f32.mrb[0].mxu0
  %v4662 = vpop.f32.mrb[0].mxu0
  %v4663 = vadd.f32 %v4374, %v4662
  %v4664 = vpop.f32.mrb[0].mxu0
  %4665 = vmatprep.mubr.bf16.mxu0 %v1332
  %4666 = vmatmul.mubr.bf16.gmra.mrb[0].mxu0 %v1331
  %v4667 = vpop.f32.mrb[0].mxu0
  %v4668 = vadd.f32 %v4379, %v4667
  %v4669 = vpop.f32.mrb[0].mxu0
  %v4670 = vpop.f32.mrb[0].mxu0
  %v4671 = vadd.f32 %v4382, %v4670
  %v4672 = vpop.f32.mrb[0].mxu0
  %4673 = vmatprep.mubr.bf16.mxu0 %v1339
  %4674 = vmatmul.mubr.bf16.gmra.mrb[0].mxu0 %v1338
  %v4675 = vpop.f32.mrb[0].mxu0
  %v4676 = vadd.f32 %v4387, %v4675
  %v4677 = vpop.f32.mrb[0].mxu0
  %v4678 = vpop.f32.mrb[0].mxu0
  %v4679 = vadd.f32 %v4390, %v4678
  %v4680 = vpop.f32.mrb[0].mxu0
  %4681 = vmatprep.mubr.bf16.mxu0 %v1346
  %4682 = vmatmul.mubr.bf16.gmra.mrb[0].mxu0 %v1345
  %v4683 = vpop.f32.mrb[0].mxu0
  %v4684 = vadd.f32 %v4395, %v4683
  %v4685 = vpop.f32.mrb[0].mxu0
  %v4686 = vpop.f32.mrb[0].mxu0
  %v4687 = vadd.f32 %v4398, %v4686
  %v4688 = vpop.f32.mrb[0].mxu0
  %4689 = vmatprep.mubr.bf16.mxu0 %v1353
  %4690 = vmatmul.mubr.bf16.gmra.mrb[0].mxu0 %v1352
  %v4691 = vpop.f32.mrb[0].mxu0
  %v4692 = vadd.f32 %v4403, %v4691
  %v4693 = vpop.f32.mrb[0].mxu0
  %v4694 = vpop.f32.mrb[0].mxu0
  %v4695 = vadd.f32 %v4406, %v4694
  %v4696 = vpop.f32.mrb[0].mxu0
  %4697 = vmatprep.mubr.bf16.mxu0 %v1360
  %4698 = vmatmul.mubr.bf16.gmra.mrb[0].mxu0 %v1359
  %v4699 = vpop.f32.mrb[0].mxu0
  %v4700 = vadd.f32 %v4411, %v4699
  %v4701 = vpop.f32.mrb[0].mxu0
  %v4702 = vpop.f32.mrb[0].mxu0
  %v4703 = vadd.f32 %v4414, %v4702
  %v4704 = vpop.f32.mrb[0].mxu0
  %4705 = vmatprep.mubr.bf16.mxu0 %v1367
  %4706 = vmatmul.mubr.bf16.gmra.mrb[0].mxu0 %v1366
  %v4707 = vpop.f32.mrb[0].mxu0
  %v4708 = vadd.f32 %v4419, %v4707
  %v4709 = vpop.f32.mrb[0].mxu0
  %v4710 = vpop.f32.mrb[0].mxu0
  %v4711 = vadd.f32 %v4422, %v4710
  %v4712 = vpop.f32.mrb[0].mxu0
  %4713 = vmatprep.mubr.bf16.mxu0 %v1374
  %4714 = vmatmul.mubr.bf16.gmra.mrb[0].mxu0 %v1373
  %v4715 = vpop.f32.mrb[0].mxu0
  %v4716 = vadd.f32 %v4427, %v4715
  %v4717 = vpop.f32.mrb[0].mxu0
  %v4718 = vpop.f32.mrb[0].mxu0
  %v4719 = vadd.f32 %v4430, %v4718
  %v4720 = vpop.f32.mrb[0].mxu0
  %4721 = vmatprep.mubr.bf16.mxu0 %v1381
  %4722 = vmatmul.mubr.bf16.gmra.mrb[0].mxu0 %v1380
  %v4723 = vpop.f32.mrb[0].mxu0
  %v4724 = vadd.f32 %v4435, %v4723
  %v4725 = vpop.f32.mrb[0].mxu0
  %v4726 = vpop.f32.mrb[0].mxu0
  %v4727 = vadd.f32 %v4438, %v4726
  %v4728 = vpop.f32.mrb[0].mxu0
  %4729 = vmatprep.mubr.bf16.mxu0 %v1388
  %4730 = vmatmul.mubr.bf16.gmra.mrb[0].mxu0 %v1387
  %v4731 = vpop.f32.mrb[0].mxu0
  %v4732 = vadd.f32 %v4443, %v4731
  %v4733 = vpop.f32.mrb[0].mxu0
  %v4734 = vpop.f32.mrb[0].mxu0
  %v4735 = vadd.f32 %v4446, %v4734
  %v4736 = vpop.f32.mrb[0].mxu0
  %4737 = vmatprep.mubr.bf16.mxu0 %v1395
  %4738 = vmatmul.mubr.bf16.gmra.mrb[0].mxu0 %v1394
  %v4739 = vpop.f32.mrb[0].mxu0
  %v4740 = vadd.f32 %v4451, %v4739
  %v4741 = vpop.f32.mrb[0].mxu0
  %v4742 = vpop.f32.mrb[0].mxu0
  %v4743 = vadd.f32 %v4454, %v4742
  %v4744 = vpop.f32.mrb[0].mxu0
  %4745 = vmatprep.mubr.bf16.mxu0 %v1402
  %4746 = vmatmul.mubr.bf16.gmra.mrb[0].mxu0 %v1401
  %v4747 = vpop.f32.mrb[0].mxu0
  %v4748 = vadd.f32 %v4459, %v4747
  %v4749 = vpop.f32.mrb[0].mxu0
  %v4750 = vpop.f32.mrb[0].mxu0
  %v4751 = vadd.f32 %v4462, %v4750
  %v4752 = vpop.f32.mrb[0].mxu0
  %4753 = vmatprep.mubr.bf16.mxu0 %v1409
  %4754 = vmatmul.mubr.bf16.gmra.mrb[0].mxu0 %v1408
  %v4755 = vpop.f32.mrb[0].mxu0
  %v4756 = vadd.f32 %v4467, %v4755
  %v4757 = vpop.f32.mrb[0].mxu0
  %v4758 = vpop.f32.mrb[0].mxu0
  %v4759 = vadd.f32 %v4470, %v4758
  %v4760 = vpop.f32.mrb[0].mxu0
  %4761 = vmatprep.mubr.bf16.mxu0 %v1416
  %4762 = vmatmul.mubr.bf16.gmra.mrb[0].mxu0 %v1415
  %v4763 = vpop.f32.mrb[0].mxu0
  %v4764 = vadd.f32 %v4475, %v4763
  %v4765 = vpop.f32.mrb[0].mxu0
  %v4766 = vpop.f32.mrb[0].mxu0
  %v4767 = vadd.f32 %v4478, %v4766
  %v4768 = vpop.f32.mrb[0].mxu0
  %4769 = vdwg.mxu0
  %4770 = vmatprep.subr.bf16.mxu0 0
  %4771 = vmatpush1.bf16.msra.mxu0 %v2246
  %4772 = vmatprep.subr.bf16.mxu0 0
  %4773 = vmatpush1.bf16.msra.mxu0 0
  %4774 = vmatprep.subr.bf16.mxu0 0
  %4775 = vmatpush1.bf16.msra.mxu0 0
  %4776 = vmatprep.subr.bf16.mxu0 0
  %4777 = vmatpush1.bf16.msra.mxu0 0
  %4778 = vmatprep.subr.bf16.mxu0 0
  %4779 = vmatpush1.bf16.msra.mxu0 0
  %4780 = vmatprep.subr.bf16.mxu0 0
  %4781 = vmatpush1.bf16.msra.mxu0 0
  %4782 = vmatprep.subr.bf16.mxu0 0
  %4783 = vmatpush1.bf16.msra.mxu0 0
  %4784 = vmatprep.subr.bf16.mxu0 0
  %4785 = vmatpush1.bf16.msra.mxu0 0
  %4786 = vmatprep.subr.bf16.mxu0 0
  %4787 = vmatpush1.bf16.msra.mxu0 0
  %4788 = vmatprep.subr.bf16.mxu0 0
  %4789 = vmatpush1.bf16.msra.mxu0 0
  %4790 = vmatprep.subr.bf16.mxu0 0
  %4791 = vmatpush1.bf16.msra.mxu0 0
  %4792 = vmatprep.subr.bf16.mxu0 0
  %4793 = vmatpush1.bf16.msra.mxu0 0
  %4794 = vmatprep.subr.bf16.mxu0 0
  %4795 = vmatpush1.bf16.msra.mxu0 0
  %4796 = vmatprep.subr.bf16.mxu0 0
  %4797 = vmatpush1.bf16.msra.mxu0 0
  %4798 = vmatprep.subr.bf16.mxu0 0
  %4799 = vmatpush1.bf16.msra.mxu0 0
  %4800 = vmatprep.subr.bf16.mxu0 0
  %4801 = vmatpush1.bf16.msra.mxu0 0
  %4802 = vmatprep.mubr.bf16.mxu0 0
  %4803 = vmatmul.mubr.bf16.gmra.mrb[0].mxu0 %v2396
  %v4804 = vpop.f32.mrb[0].mxu0
  %v4805 = vadd.f32 %v4516, %v4804
  %v4806 = vpop.f32.mrb[0].mxu0
  %v4807 = vpop.f32.mrb[0].mxu0
  %v4808 = vadd.f32 %v4519, %v4807
  %v4809 = vpop.f32.mrb[0].mxu0
  %4810 = vmatprep.mubr.bf16.mxu0 0
  %4811 = vmatmul.mubr.bf16.gmra.mrb[0].mxu0 %v2399
  %v4812 = vpop.f32.mrb[0].mxu0
  %v4813 = vadd.f32 %v4524, %v4812
  %v4814 = vpop.f32.mrb[0].mxu0
  %v4815 = vpop.f32.mrb[0].mxu0
  %v4816 = vadd.f32 %v4527, %v4815
  %v4817 = vpop.f32.mrb[0].mxu0
  %4818 = vmatprep.mubr.bf16.mxu0 0
  %4819 = vmatmul.mubr.bf16.gmra.mrb[0].mxu0 %v2402
  %v4820 = vpop.f32.mrb[0].mxu0
  %v4821 = vadd.f32 %v4532, %v4820
  %v4822 = vpop.f32.mrb[0].mxu0
  %v4823 = vpop.f32.mrb[0].mxu0
  %v4824 = vadd.f32 %v4535, %v4823
  %v4825 = vpop.f32.mrb[0].mxu0
  %4826 = vmatprep.mubr.bf16.mxu0 0
  %4827 = vmatmul.mubr.bf16.gmra.mrb[0].mxu0 %v2405
  %v4828 = vpop.f32.mrb[0].mxu0
  %v4829 = vadd.f32 %v4540, %v4828
  %v4830 = vpop.f32.mrb[0].mxu0
  %v4831 = vpop.f32.mrb[0].mxu0
  %v4832 = vadd.f32 %v4543, %v4831
  %v4833 = vpop.f32.mrb[0].mxu0
  %4834 = vmatprep.mubr.bf16.mxu0 0
  %4835 = vmatmul.mubr.bf16.gmra.mrb[0].mxu0 %v2408
  %v4836 = vpop.f32.mrb[0].mxu0
  %v4837 = vadd.f32 %v4548, %v4836
  %v4838 = vpop.f32.mrb[0].mxu0
  %v4839 = vpop.f32.mrb[0].mxu0
  %v4840 = vadd.f32 %v4551, %v4839
  %v4841 = vpop.f32.mrb[0].mxu0
  %4842 = vmatprep.mubr.bf16.mxu0 0
  %4843 = vmatmul.mubr.bf16.gmra.mrb[0].mxu0 %v2411
  %v4844 = vpop.f32.mrb[0].mxu0
  %v4845 = vadd.f32 %v4556, %v4844
  %v4846 = vpop.f32.mrb[0].mxu0
  %v4847 = vpop.f32.mrb[0].mxu0
  %v4848 = vadd.f32 %v4559, %v4847
  %v4849 = vpop.f32.mrb[0].mxu0
  %4850 = vmatprep.mubr.bf16.mxu0 0
  %4851 = vmatmul.mubr.bf16.gmra.mrb[0].mxu0 %v2414
  %v4852 = vpop.f32.mrb[0].mxu0
  %v4853 = vadd.f32 %v4564, %v4852
  %v4854 = vpop.f32.mrb[0].mxu0
  %v4855 = vpop.f32.mrb[0].mxu0
  %v4856 = vadd.f32 %v4567, %v4855
  %v4857 = vpop.f32.mrb[0].mxu0
  %4858 = vmatprep.mubr.bf16.mxu0 0
  %4859 = vmatmul.mubr.bf16.gmra.mrb[0].mxu0 %v2417
  %v4860 = vpop.f32.mrb[0].mxu0
  %v4861 = vadd.f32 %v4572, %v4860
  %v4862 = vpop.f32.mrb[0].mxu0
  %v4863 = vpop.f32.mrb[0].mxu0
  %v4864 = vadd.f32 %v4575, %v4863
  %v4865 = vpop.f32.mrb[0].mxu0
  %4866 = vmatprep.mubr.bf16.mxu0 0
  %4867 = vmatmul.mubr.bf16.gmra.mrb[0].mxu0 %v2420
  %v4868 = vpop.f32.mrb[0].mxu0
  %v4869 = vadd.f32 %v4580, %v4868
  %v4870 = vpop.f32.mrb[0].mxu0
  %v4871 = vpop.f32.mrb[0].mxu0
  %v4872 = vadd.f32 %v4583, %v4871
  %v4873 = vpop.f32.mrb[0].mxu0
  %4874 = vmatprep.mubr.bf16.mxu0 0
  %4875 = vmatmul.mubr.bf16.gmra.mrb[0].mxu0 %v2423
  %v4876 = vpop.f32.mrb[0].mxu0
  %v4877 = vadd.f32 %v4588, %v4876
  %v4878 = vpop.f32.mrb[0].mxu0
  %v4879 = vpop.f32.mrb[0].mxu0
  %v4880 = vadd.f32 %v4591, %v4879
  %v4881 = vpop.f32.mrb[0].mxu0
  %4882 = vmatprep.mubr.bf16.mxu0 0
  %4883 = vmatmul.mubr.bf16.gmra.mrb[0].mxu0 %v2426
  %v4884 = vpop.f32.mrb[0].mxu0
  %v4885 = vadd.f32 %v4596, %v4884
  %v4886 = vpop.f32.mrb[0].mxu0
  %v4887 = vpop.f32.mrb[0].mxu0
  %v4888 = vadd.f32 %v4599, %v4887
  %v4889 = vpop.f32.mrb[0].mxu0
  %4890 = vmatprep.mubr.bf16.mxu0 0
  %4891 = vmatmul.mubr.bf16.gmra.mrb[0].mxu0 %v2429
  %v4892 = vpop.f32.mrb[0].mxu0
  %v4893 = vadd.f32 %v4604, %v4892
  %v4894 = vpop.f32.mrb[0].mxu0
  %v4895 = vpop.f32.mrb[0].mxu0
  %v4896 = vadd.f32 %v4607, %v4895
  %v4897 = vpop.f32.mrb[0].mxu0
  %4898 = vmatprep.mubr.bf16.mxu0 0
  %4899 = vmatmul.mubr.bf16.gmra.mrb[0].mxu0 %v2432
  %v4900 = vpop.f32.mrb[0].mxu0
  %v4901 = vadd.f32 %v4612, %v4900
  %v4902 = vpop.f32.mrb[0].mxu0
  %v4903 = vpop.f32.mrb[0].mxu0
  %v4904 = vadd.f32 %v4615, %v4903
  %v4905 = vpop.f32.mrb[0].mxu0
  %4906 = vmatprep.mubr.bf16.mxu0 0
  %4907 = vmatmul.mubr.bf16.gmra.mrb[0].mxu0 %v2435
  %v4908 = vpop.f32.mrb[0].mxu0
  %v4909 = vadd.f32 %v4620, %v4908
  %v4910 = vpop.f32.mrb[0].mxu0
  %v4911 = vpop.f32.mrb[0].mxu0
  %v4912 = vadd.f32 %v4623, %v4911
  %v4913 = vpop.f32.mrb[0].mxu0
  %4914 = vmatprep.mubr.bf16.mxu0 0
  %4915 = vmatmul.mubr.bf16.gmra.mrb[0].mxu0 %v2438
  %v4916 = vpop.f32.mrb[0].mxu0
  %v4917 = vadd.f32 %v4628, %v4916
  %v4918 = vpop.f32.mrb[0].mxu0
  %v4919 = vpop.f32.mrb[0].mxu0
  %v4920 = vadd.f32 %v4631, %v4919
  %v4921 = vpop.f32.mrb[0].mxu0
  %4922 = vmatprep.mubr.bf16.mxu0 0
  %4923 = vmatmul.mubr.bf16.gmra.mrb[0].mxu0 %v2441
  %v4924 = vpop.f32.mrb[0].mxu0
  %v4925 = vadd.f32 %v4636, %v4924
  %v4926 = vpop.f32.mrb[0].mxu0
  %v4927 = vpop.f32.mrb[0].mxu0
  %v4928 = vadd.f32 %v4639, %v4927
  %v4929 = vpop.f32.mrb[0].mxu0
  %4930 = vmatprep.mubr.bf16.mxu0 0
  %4931 = vmatmul.mubr.bf16.gmra.mrb[0].mxu0 %v2444
  %v4932 = vpop.f32.mrb[0].mxu0
  %v4933 = vadd.f32 %v4644, %v4932
  %v4934 = vpop.f32.mrb[0].mxu0
  %v4935 = vpop.f32.mrb[0].mxu0
  %v4936 = vadd.f32 %v4647, %v4935
  %v4937 = vpop.f32.mrb[0].mxu0
  %4938 = vmatprep.mubr.bf16.mxu0 0
  %4939 = vmatmul.mubr.bf16.gmra.mrb[0].mxu0 %v2447
  %v4940 = vpop.f32.mrb[0].mxu0
  %v4941 = vadd.f32 %v4652, %v4940
  %v4942 = vpop.f32.mrb[0].mxu0
  %v4943 = vpop.f32.mrb[0].mxu0
  %v4944 = vadd.f32 %v4655, %v4943
  %v4945 = vpop.f32.mrb[0].mxu0
  %4946 = vmatprep.mubr.bf16.mxu0 0
  %4947 = vmatmul.mubr.bf16.gmra.mrb[0].mxu0 %v2450
  %v4948 = vpop.f32.mrb[0].mxu0
  %v4949 = vadd.f32 %v4660, %v4948
  %v4950 = vpop.f32.mrb[0].mxu0
  %v4951 = vpop.f32.mrb[0].mxu0
  %v4952 = vadd.f32 %v4663, %v4951
  %v4953 = vpop.f32.mrb[0].mxu0
  %4954 = vmatprep.mubr.bf16.mxu0 0
  %4955 = vmatmul.mubr.bf16.gmra.mrb[0].mxu0 %v2453
  %v4956 = vpop.f32.mrb[0].mxu0
  %v4957 = vadd.f32 %v4668, %v4956
  %v4958 = vpop.f32.mrb[0].mxu0
  %v4959 = vpop.f32.mrb[0].mxu0
  %v4960 = vadd.f32 %v4671, %v4959
  %v4961 = vpop.f32.mrb[0].mxu0
  %4962 = vmatprep.mubr.bf16.mxu0 0
  %4963 = vmatmul.mubr.bf16.gmra.mrb[0].mxu0 %v2456
  %v4964 = vpop.f32.mrb[0].mxu0
  %v4965 = vadd.f32 %v4676, %v4964
  %v4966 = vpop.f32.mrb[0].mxu0
  %v4967 = vpop.f32.mrb[0].mxu0
  %v4968 = vadd.f32 %v4679, %v4967
  %v4969 = vpop.f32.mrb[0].mxu0
  %4970 = vmatprep.mubr.bf16.mxu0 0
  %4971 = vmatmul.mubr.bf16.gmra.mrb[0].mxu0 %v2459
  %v4972 = vpop.f32.mrb[0].mxu0
  %v4973 = vadd.f32 %v4684, %v4972
  %v4974 = vpop.f32.mrb[0].mxu0
  %v4975 = vpop.f32.mrb[0].mxu0
  %v4976 = vadd.f32 %v4687, %v4975
  %v4977 = vpop.f32.mrb[0].mxu0
  %4978 = vmatprep.mubr.bf16.mxu0 0
  %4979 = vmatmul.mubr.bf16.gmra.mrb[0].mxu0 %v2462
  %v4980 = vpop.f32.mrb[0].mxu0
  %v4981 = vadd.f32 %v4692, %v4980
  %v4982 = vpop.f32.mrb[0].mxu0
  %v4983 = vpop.f32.mrb[0].mxu0
  %v4984 = vadd.f32 %v4695, %v4983
  %v4985 = vpop.f32.mrb[0].mxu0
  %4986 = vmatprep.mubr.bf16.mxu0 0
  %4987 = vmatmul.mubr.bf16.gmra.mrb[0].mxu0 %v2465
  %v4988 = vpop.f32.mrb[0].mxu0
  %v4989 = vadd.f32 %v4700, %v4988
  %v4990 = vpop.f32.mrb[0].mxu0
  %v4991 = vpop.f32.mrb[0].mxu0
  %v4992 = vadd.f32 %v4703, %v4991
  %v4993 = vpop.f32.mrb[0].mxu0
  %4994 = vmatprep.mubr.bf16.mxu0 0
  %4995 = vmatmul.mubr.bf16.gmra.mrb[0].mxu0 %v2468
  %v4996 = vpop.f32.mrb[0].mxu0
  %v4997 = vadd.f32 %v4708, %v4996
  %v4998 = vpop.f32.mrb[0].mxu0
  %v4999 = vpop.f32.mrb[0].mxu0
  %v5000 = vadd.f32 %v4711, %v4999
  %v5001 = vpop.f32.mrb[0].mxu0
  %5002 = vmatprep.mubr.bf16.mxu0 0
  %5003 = vmatmul.mubr.bf16.gmra.mrb[0].mxu0 %v2471
  %v5004 = vpop.f32.mrb[0].mxu0
  %v5005 = vadd.f32 %v4716, %v5004
  %v5006 = vpop.f32.mrb[0].mxu0
  %v5007 = vpop.f32.mrb[0].mxu0
  %v5008 = vadd.f32 %v4719, %v5007
  %v5009 = vpop.f32.mrb[0].mxu0
  %5010 = vmatprep.mubr.bf16.mxu0 0
  %5011 = vmatmul.mubr.bf16.gmra.mrb[0].mxu0 %v2474
  %v5012 = vpop.f32.mrb[0].mxu0
  %v5013 = vadd.f32 %v4724, %v5012
  %v5014 = vpop.f32.mrb[0].mxu0
  %v5015 = vpop.f32.mrb[0].mxu0
  %v5016 = vadd.f32 %v4727, %v5015
  %v5017 = vpop.f32.mrb[0].mxu0
  %5018 = vmatprep.mubr.bf16.mxu0 0
  %5019 = vmatmul.mubr.bf16.gmra.mrb[0].mxu0 %v2477
  %v5020 = vpop.f32.mrb[0].mxu0
  %v5021 = vadd.f32 %v4732, %v5020
  %v5022 = vpop.f32.mrb[0].mxu0
  %v5023 = vpop.f32.mrb[0].mxu0
  %v5024 = vadd.f32 %v4735, %v5023
  %v5025 = vpop.f32.mrb[0].mxu0
  %5026 = vmatprep.mubr.bf16.mxu0 0
  %5027 = vmatmul.mubr.bf16.gmra.mrb[0].mxu0 %v2480
  %v5028 = vpop.f32.mrb[0].mxu0
  %v5029 = vadd.f32 %v4740, %v5028
  %v5030 = vpop.f32.mrb[0].mxu0
  %v5031 = vpop.f32.mrb[0].mxu0
  %v5032 = vadd.f32 %v4743, %v5031
  %v5033 = vpop.f32.mrb[0].mxu0
  %5034 = vmatprep.mubr.bf16.mxu0 0
  %5035 = vmatmul.mubr.bf16.gmra.mrb[0].mxu0 %v2483
  %v5036 = vpop.f32.mrb[0].mxu0
  %v5037 = vadd.f32 %v4748, %v5036
  %v5038 = vpop.f32.mrb[0].mxu0
  %v5039 = vpop.f32.mrb[0].mxu0
  %v5040 = vadd.f32 %v4751, %v5039
  %v5041 = vpop.f32.mrb[0].mxu0
  %5042 = vmatprep.mubr.bf16.mxu0 0
  %5043 = vmatmul.mubr.bf16.gmra.mrb[0].mxu0 %v2486
  %v5044 = vpop.f32.mrb[0].mxu0
  %v5045 = vadd.f32 %v4756, %v5044
  %v5046 = vpop.f32.mrb[0].mxu0
  %v5047 = vpop.f32.mrb[0].mxu0
  %v5048 = vadd.f32 %v4759, %v5047
  %v5049 = vpop.f32.mrb[0].mxu0
  %5050 = vmatprep.mubr.bf16.mxu0 0
  %5051 = vmatmul.mubr.bf16.gmra.mrb[0].mxu0 %v2489
  %v5052 = vpop.f32.mrb[0].mxu0
  %v5053 = vadd.f32 %v4764, %v5052
  %v5054 = vpop.f32.mrb[0].mxu0
  %v5055 = vpop.f32.mrb[0].mxu0
  %v5056 = vadd.f32 %v4767, %v5055
  %v5057 = vpop.f32.mrb[0].mxu0
  %5058 = vdwg.mxu0
  %v5059 = vmax.f32 %v3585, 0.0
  %v5060 = vmax.f32 %v3587, 0.0
  %v5061 = vmax.f32 %v4805, 0.0
  %v5062 = vmax.f32 %v3589, 0.0
  %v5063 = vmax.f32 %v3591, 0.0
  %v5064 = vmax.f32 %v4808, 0.0
  %v5065 = vmax.f32 %v3595, 0.0
  %v5066 = vmax.f32 %v3597, 0.0
  %v5067 = vmax.f32 %v4813, 0.0
  %v5068 = vmax.f32 %v3599, 0.0
  %v5069 = vmax.f32 %v3601, 0.0
  %v5070 = vmax.f32 %v4816, 0.0
  %v5071 = vmax.f32 %v3605, 0.0
  %v5072 = vmax.f32 %v3607, 0.0
  %v5073 = vmax.f32 %v4821, 0.0
  %v5074 = vmax.f32 %v3609, 0.0
  %v5075 = vmax.f32 %v3611, 0.0
  %v5076 = vmax.f32 %v4824, 0.0
  %v5077 = vmax.f32 %v3615, 0.0
  %v5078 = vmax.f32 %v3617, 0.0
  %v5079 = vmax.f32 %v4829, 0.0
  %v5080 = vmax.f32 %v3619, 0.0
  %v5081 = vmax.f32 %v3621, 0.0
  %v5082 = vmax.f32 %v4832, 0.0
  %v5083 = vmax.f32 %v3625, 0.0
  %v5084 = vmax.f32 %v3627, 0.0
  %v5085 = vmax.f32 %v4837, 0.0
  %v5086 = vmax.f32 %v3629, 0.0
  %v5087 = vmax.f32 %v3631, 0.0
  %v5088 = vmax.f32 %v4840, 0.0
  %v5089 = vmax.f32 %v3635, 0.0
  %v5090 = vmax.f32 %v3637, 0.0
  %v5091 = vmax.f32 %v4845, 0.0
  %v5092 = vmax.f32 %v3639, 0.0
  %v5093 = vmax.f32 %v3641, 0.0
  %v5094 = vmax.f32 %v4848, 0.0
  %v5095 = vmax.f32 %v3645, 0.0
  %v5096 = vmax.f32 %v3647, 0.0
  %v5097 = vmax.f32 %v4853, 0.0
  %v5098 = vmax.f32 %v3649, 0.0
  %v5099 = vmax.f32 %v3651, 0.0
  %v5100 = vmax.f32 %v4856, 0.0
  %v5101 = vmax.f32 %v3655, 0.0
  %v5102 = vmax.f32 %v3657, 0.0
  %v5103 = vmax.f32 %v4861, 0.0
  %v5104 = vmax.f32 %v3659, 0.0
  %v5105 = vmax.f32 %v3661, 0.0
  %v5106 = vmax.f32 %v4864, 0.0
  %v5107 = vmax.f32 %v3665, 0.0
  %v5108 = vmax.f32 %v3667, 0.0
  %v5109 = vmax.f32 %v4869, 0.0
  %v5110 = vmax.f32 %v3669, 0.0
  %v5111 = vmax.f32 %v3671, 0.0
  %v5112 = vmax.f32 %v4872, 0.0
  %v5113 = vmax.f32 %v3675, 0.0
  %v5114 = vmax.f32 %v3677, 0.0
  %v5115 = vmax.f32 %v4877, 0.0
  %v5116 = vmax.f32 %v3679, 0.0
  %v5117 = vmax.f32 %v3681, 0.0
  %v5118 = vmax.f32 %v4880, 0.0
  %v5119 = vmax.f32 %v3685, 0.0
  %v5120 = vmax.f32 %v3687, 0.0
  %v5121 = vmax.f32 %v4885, 0.0
  %v5122 = vmax.f32 %v3689, 0.0
  %v5123 = vmax.f32 %v3691, 0.0
  %v5124 = vmax.f32 %v4888, 0.0
  %v5125 = vmax.f32 %v3695, 0.0
  %v5126 = vmax.f32 %v3697, 0.0
  %v5127 = vmax.f32 %v4893, 0.0
  %v5128 = vmax.f32 %v3699, 0.0
  %v5129 = vmax.f32 %v3701, 0.0
  %v5130 = vmax.f32 %v4896, 0.0
  %v5131 = vmax.f32 %v3705, 0.0
  %v5132 = vmax.f32 %v3707, 0.0
  %v5133 = vmax.f32 %v4901, 0.0
  %v5134 = vmax.f32 %v3709, 0.0
  %v5135 = vmax.f32 %v3711, 0.0
  %v5136 = vmax.f32 %v4904, 0.0
  %v5137 = vmax.f32 %v3715, 0.0
  %v5138 = vmax.f32 %v3717, 0.0
  %v5139 = vmax.f32 %v4909, 0.0
  %v5140 = vmax.f32 %v3719, 0.0
  %v5141 = vmax.f32 %v3721, 0.0
  %v5142 = vmax.f32 %v4912, 0.0
  %v5143 = vmax.f32 %v3725, 0.0
  %v5144 = vmax.f32 %v3727, 0.0
  %v5145 = vmax.f32 %v4917, 0.0
  %v5146 = vmax.f32 %v3729, 0.0
  %v5147 = vmax.f32 %v3731, 0.0
  %v5148 = vmax.f32 %v4920, 0.0
  %v5149 = vmax.f32 %v3735, 0.0
  %v5150 = vmax.f32 %v3737, 0.0
  %v5151 = vmax.f32 %v4925, 0.0
  %v5152 = vmax.f32 %v3739, 0.0
  %v5153 = vmax.f32 %v3741, 0.0
  %v5154 = vmax.f32 %v4928, 0.0
  %v5155 = vmax.f32 %v3745, 0.0
  %v5156 = vmax.f32 %v3747, 0.0
  %v5157 = vmax.f32 %v4933, 0.0
  %v5158 = vmax.f32 %v3749, 0.0
  %v5159 = vmax.f32 %v3751, 0.0
  %v5160 = vmax.f32 %v4936, 0.0
  %v5161 = vmax.f32 %v3755, 0.0
  %v5162 = vmax.f32 %v3757, 0.0
  %v5163 = vmax.f32 %v4941, 0.0
  %v5164 = vmax.f32 %v3759, 0.0
  %v5165 = vmax.f32 %v3761, 0.0
  %v5166 = vmax.f32 %v4944, 0.0
  %v5167 = vmax.f32 %v3765, 0.0
  %v5168 = vmax.f32 %v3767, 0.0
  %v5169 = vmax.f32 %v4949, 0.0
  %v5170 = vmax.f32 %v3769, 0.0
  %v5171 = vmax.f32 %v3771, 0.0
  %v5172 = vmax.f32 %v4952, 0.0
  %v5173 = vmax.f32 %v3775, 0.0
  %v5174 = vmax.f32 %v3777, 0.0
  %v5175 = vmax.f32 %v4957, 0.0
  %v5176 = vmax.f32 %v3779, 0.0
  %v5177 = vmax.f32 %v3781, 0.0
  %v5178 = vmax.f32 %v4960, 0.0
  %v5179 = vmax.f32 %v3785, 0.0
  %v5180 = vmax.f32 %v3787, 0.0
  %v5181 = vmax.f32 %v4965, 0.0
  %v5182 = vmax.f32 %v3789, 0.0
  %v5183 = vmax.f32 %v3791, 0.0
  %v5184 = vmax.f32 %v4968, 0.0
  %v5185 = vmax.f32 %v3795, 0.0
  %v5186 = vmax.f32 %v3797, 0.0
  %v5187 = vmax.f32 %v4973, 0.0
  %v5188 = vmax.f32 %v3799, 0.0
  %v5189 = vmax.f32 %v3801, 0.0
  %v5190 = vmax.f32 %v4976, 0.0
  %v5191 = vmax.f32 %v3805, 0.0
  %v5192 = vmax.f32 %v3807, 0.0
  %v5193 = vmax.f32 %v4981, 0.0
  %v5194 = vmax.f32 %v3809, 0.0
  %v5195 = vmax.f32 %v3811, 0.0
  %v5196 = vmax.f32 %v4984, 0.0
  %v5197 = vmax.f32 %v3815, 0.0
  %v5198 = vmax.f32 %v3817, 0.0
  %v5199 = vmax.f32 %v4989, 0.0
  %v5200 = vmax.f32 %v3819, 0.0
  %v5201 = vmax.f32 %v3821, 0.0
  %v5202 = vmax.f32 %v4992, 0.0
  %v5203 = vmax.f32 %v3825, 0.0
  %v5204 = vmax.f32 %v3827, 0.0
  %v5205 = vmax.f32 %v4997, 0.0
  %v5206 = vmax.f32 %v3829, 0.0
  %v5207 = vmax.f32 %v3831, 0.0
  %v5208 = vmax.f32 %v5000, 0.0
  %v5209 = vmax.f32 %v3835, 0.0
  %v5210 = vmax.f32 %v3837, 0.0
  %v5211 = vmax.f32 %v5005, 0.0
  %v5212 = vmax.f32 %v3839, 0.0
  %v5213 = vmax.f32 %v3841, 0.0
  %v5214 = vmax.f32 %v5008, 0.0
  %v5215 = vmax.f32 %v3845, 0.0
  %v5216 = vmax.f32 %v3847, 0.0
  %v5217 = vmax.f32 %v5013, 0.0
  %v5218 = vmax.f32 %v3849, 0.0
  %v5219 = vmax.f32 %v3851, 0.0
  %v5220 = vmax.f32 %v5016, 0.0
  %v5221 = vmax.f32 %v3855, 0.0
  %v5222 = vmax.f32 %v3857, 0.0
  %v5223 = vmax.f32 %v5021, 0.0
  %v5224 = vmax.f32 %v3859, 0.0
  %v5225 = vmax.f32 %v3861, 0.0
  %v5226 = vmax.f32 %v5024, 0.0
  %v5227 = vmax.f32 %v3865, 0.0
  %v5228 = vmax.f32 %v3867, 0.0
  %v5229 = vmax.f32 %v5029, 0.0
  %v5230 = vmax.f32 %v3869, 0.0
  %v5231 = vmax.f32 %v3871, 0.0
  %v5232 = vmax.f32 %v5032, 0.0
  %v5233 = vmax.f32 %v3875, 0.0
  %v5234 = vmax.f32 %v3877, 0.0
  %v5235 = vmax.f32 %v5037, 0.0
  %v5236 = vmax.f32 %v3879, 0.0
  %v5237 = vmax.f32 %v3881, 0.0
  %v5238 = vmax.f32 %v5040, 0.0
  %v5239 = vmax.f32 %v3885, 0.0
  %v5240 = vmax.f32 %v3887, 0.0
  %v5241 = vmax.f32 %v5045, 0.0
  %v5242 = vmax.f32 %v3889, 0.0
  %v5243 = vmax.f32 %v3891, 0.0
  %v5244 = vmax.f32 %v5048, 0.0
  %v5245 = vmax.f32 %v3895, 0.0
  %v5246 = vmax.f32 %v3897, 0.0
  %v5247 = vmax.f32 %v5053, 0.0
  %v5248 = vmax.f32 %v3899, 0.0
  %v5249 = vmax.f32 %v3901, 0.0
  %v5250 = vmax.f32 %v5056, 0.0
  %v5251 = vpack.c.bf16 %v5062, %v5059
  %v5252 = vpack.c.bf16 %v5063, %v5060
  %v5253 = vpack.c.bf16 %v5064, %v5061
  %v5254 = vpack.c.bf16 %v5068, %v5065
  %v5255 = vpack.c.bf16 %v5069, %v5066
  %v5256 = vpack.c.bf16 %v5070, %v5067
  %v5257 = vpack.c.bf16 %v5074, %v5071
  %v5258 = vpack.c.bf16 %v5075, %v5072
  %v5259 = vpack.c.bf16 %v5076, %v5073
  %v5260 = vpack.c.bf16 %v5080, %v5077
  %v5261 = vpack.c.bf16 %v5081, %v5078
  %v5262 = vpack.c.bf16 %v5082, %v5079
  %v5263 = vpack.c.bf16 %v5086, %v5083
  %v5264 = vpack.c.bf16 %v5087, %v5084
  %v5265 = vpack.c.bf16 %v5088, %v5085
  %v5266 = vpack.c.bf16 %v5092, %v5089
  %v5267 = vpack.c.bf16 %v5093, %v5090
  %v5268 = vpack.c.bf16 %v5094, %v5091
  %v5269 = vpack.c.bf16 %v5098, %v5095
  %v5270 = vpack.c.bf16 %v5099, %v5096
  %v5271 = vpack.c.bf16 %v5100, %v5097
  %v5272 = vpack.c.bf16 %v5104, %v5101
  %v5273 = vpack.c.bf16 %v5105, %v5102
  %v5274 = vpack.c.bf16 %v5106, %v5103
  %v5275 = vpack.c.bf16 %v5110, %v5107
  %v5276 = vpack.c.bf16 %v5111, %v5108
  %v5277 = vpack.c.bf16 %v5112, %v5109
  %v5278 = vpack.c.bf16 %v5116, %v5113
  %v5279 = vpack.c.bf16 %v5117, %v5114
  %v5280 = vpack.c.bf16 %v5118, %v5115
  %v5281 = vpack.c.bf16 %v5122, %v5119
  %v5282 = vpack.c.bf16 %v5123, %v5120
  %v5283 = vpack.c.bf16 %v5124, %v5121
  %v5284 = vpack.c.bf16 %v5128, %v5125
  %v5285 = vpack.c.bf16 %v5129, %v5126
  %v5286 = vpack.c.bf16 %v5130, %v5127
  %v5287 = vpack.c.bf16 %v5134, %v5131
  %v5288 = vpack.c.bf16 %v5135, %v5132
  %v5289 = vpack.c.bf16 %v5136, %v5133
  %v5290 = vpack.c.bf16 %v5140, %v5137
  %v5291 = vpack.c.bf16 %v5141, %v5138
  %v5292 = vpack.c.bf16 %v5142, %v5139
  %v5293 = vpack.c.bf16 %v5146, %v5143
  %v5294 = vpack.c.bf16 %v5147, %v5144
  %v5295 = vpack.c.bf16 %v5148, %v5145
  %v5296 = vpack.c.bf16 %v5152, %v5149
  %v5297 = vpack.c.bf16 %v5153, %v5150
  %v5298 = vpack.c.bf16 %v5154, %v5151
  %v5299 = vpack.c.bf16 %v5158, %v5155
  %v5300 = vpack.c.bf16 %v5159, %v5156
  %v5301 = vpack.c.bf16 %v5160, %v5157
  %v5302 = vpack.c.bf16 %v5164, %v5161
  %v5303 = vpack.c.bf16 %v5165, %v5162
  %v5304 = vpack.c.bf16 %v5166, %v5163
  %v5305 = vpack.c.bf16 %v5170, %v5167
  %v5306 = vpack.c.bf16 %v5171, %v5168
  %v5307 = vpack.c.bf16 %v5172, %v5169
  %v5308 = vpack.c.bf16 %v5176, %v5173
  %v5309 = vpack.c.bf16 %v5177, %v5174
  %v5310 = vpack.c.bf16 %v5178, %v5175
  %v5311 = vpack.c.bf16 %v5182, %v5179
  %v5312 = vpack.c.bf16 %v5183, %v5180
  %v5313 = vpack.c.bf16 %v5184, %v5181
  %v5314 = vpack.c.bf16 %v5188, %v5185
  %v5315 = vpack.c.bf16 %v5189, %v5186
  %v5316 = vpack.c.bf16 %v5190, %v5187
  %v5317 = vpack.c.bf16 %v5194, %v5191
  %v5318 = vpack.c.bf16 %v5195, %v5192
  %v5319 = vpack.c.bf16 %v5196, %v5193
  %v5320 = vpack.c.bf16 %v5200, %v5197
  %v5321 = vpack.c.bf16 %v5201, %v5198
  %v5322 = vpack.c.bf16 %v5202, %v5199
  %v5323 = vpack.c.bf16 %v5206, %v5203
  %v5324 = vpack.c.bf16 %v5207, %v5204
  %v5325 = vpack.c.bf16 %v5208, %v5205
  %v5326 = vpack.c.bf16 %v5212, %v5209
  %v5327 = vpack.c.bf16 %v5213, %v5210
  %v5328 = vpack.c.bf16 %v5214, %v5211
  %v5329 = vpack.c.bf16 %v5218, %v5215
  %v5330 = vpack.c.bf16 %v5219, %v5216
  %v5331 = vpack.c.bf16 %v5220, %v5217
  %v5332 = vpack.c.bf16 %v5224, %v5221
  %v5333 = vpack.c.bf16 %v5225, %v5222
  %v5334 = vpack.c.bf16 %v5226, %v5223
  %v5335 = vpack.c.bf16 %v5230, %v5227
  %v5336 = vpack.c.bf16 %v5231, %v5228
  %v5337 = vpack.c.bf16 %v5232, %v5229
  %v5338 = vpack.c.bf16 %v5236, %v5233
  %v5339 = vpack.c.bf16 %v5237, %v5234
  %v5340 = vpack.c.bf16 %v5238, %v5235
  %v5341 = vpack.c.bf16 %v5242, %v5239
  %v5342 = vpack.c.bf16 %v5243, %v5240
  %v5343 = vpack.c.bf16 %v5244, %v5241
  %v5344 = vpack.c.bf16 %v5248, %v5245
  %v5345 = vpack.c.bf16 %v5249, %v5246
  %v5346 = vpack.c.bf16 %v5250, %v5247
  %v5347 = vld [vmem:[%s3] sm:$0xf]
  %v5348 = vld [vmem:[%s3 + $0x4] sm:$0xf]
  %v5349 = vld [vmem:[%s3 + $0x8] sm:$0xf]
  %v5350 = vld [vmem:[%s3 + $0xc] sm:$0xf]
  %v5351 = vld [vmem:[%s3 + $0x10] sm:$0xf]
  %v5352 = vld [vmem:[%s3 + $0x14] sm:$0xf]
  %v5353 = vld [vmem:[%s3 + $0x18] sm:$0xf]
  %v5354 = vld [vmem:[%s3 + $0x1c] sm:$0xf]
  %v5355 = vld [vmem:[%s3 + $0x20] sm:$0xf]
  %v5356 = vld [vmem:[%s3 + $0x24] sm:$0xf]
  %v5357 = vld [vmem:[%s3 + $0x28] sm:$0xf]
  %v5358 = vld [vmem:[%s3 + $0x2c] sm:$0xf]
  %v5359 = vld [vmem:[%s3 + $0x30] sm:$0xf]
  %v5360 = vld [vmem:[%s3 + $0x34] sm:$0xf]
  %v5361 = vld [vmem:[%s3 + $0x38] sm:$0xf]
  %v5362 = vld [vmem:[%s3 + $0x3c] sm:$0xf]
  %v5363 = vld [vmem:[%s3 + $0x40] sm:$0xf]
  %v5364 = vld [vmem:[%s3 + $0x44] sm:$0xf]
  %v5365 = vld [vmem:[%s3 + $0x48] sm:$0xf]
  %v5366 = vld [vmem:[%s3 + $0x4c] sm:$0xf]
  %v5367 = vld [vmem:[%s3 + $0x50] sm:$0xf]
  %v5368 = vld [vmem:[%s3 + $0x54] sm:$0xf]
  %v5369 = vld [vmem:[%s3 + $0x58] sm:$0xf]
  %v5370 = vld [vmem:[%s3 + $0x5c] sm:$0xf]
  %v5371 = vld [vmem:[%s3 + $0x60] sm:$0xf]
  %v5372 = vld [vmem:[%s3 + $0x64] sm:$0xf]
  %v5373 = vld [vmem:[%s3 + $0x68] sm:$0xf]
  %v5374 = vld [vmem:[%s3 + $0x6c] sm:$0xf]
  %v5375 = vld [vmem:[%s3 + $0x70] sm:$0xf]
  %v5376 = vld [vmem:[%s3 + $0x74] sm:$0xf]
  %v5377 = vld [vmem:[%s3 + $0x78] sm:$0xf]
  %v5378 = vld [vmem:[%s3 + $0x7c] sm:$0xf]
  %v5379 = vld [vmem:[%s3 + $0x80] sm:$0xf]
  %v5380 = vld [vmem:[%s3 + $0x84] sm:$0xf]
  %v5381 = vld [vmem:[%s3 + $0x88] sm:$0xf]
  %v5382 = vld [vmem:[%s3 + $0x8c] sm:$0xf]
  %v5383 = vld [vmem:[%s3 + $0x90] sm:$0xf]
  %v5384 = vld [vmem:[%s3 + $0x94] sm:$0xf]
  %v5385 = vld [vmem:[%s3 + $0x98] sm:$0xf]
  %v5386 = vld [vmem:[%s3 + $0x9c] sm:$0xf]
  %v5387 = vld [vmem:[%s3 + $0xa0] sm:$0xf]
  %v5388 = vld [vmem:[%s3 + $0xa4] sm:$0xf]
  %v5389 = vld [vmem:[%s3 + $0xa8] sm:$0xf]
  %v5390 = vld [vmem:[%s3 + $0xac] sm:$0xf]
  %v5391 = vld [vmem:[%s3 + $0xb0] sm:$0xf]
  %v5392 = vld [vmem:[%s3 + $0xb4] sm:$0xf]
  %v5393 = vld [vmem:[%s3 + $0xb8] sm:$0xf]
  %v5394 = vld [vmem:[%s3 + $0xbc] sm:$0xf]
  %v5395 = vld [vmem:[%s4] sm:$0x1]
  %v5397 = vlaneseq
  %v5398 = vshrl.u32 %v5397, 7
  %v5399 = vsub.s32 0, %v5398
  %v5400 = vrot.slane %v5395, %v5399
  %v5450 = vunpack.c.l.b16 %v5347
  %v5451 = vunpack.c.l.b16 %v5348
  %v5452 = vunpack.c.l.b16 %v5349
  %v5453 = vunpack.c.l.b16 %v5350
  %v5454 = vunpack.c.l.b16 %v5351
  %v5455 = vunpack.c.l.b16 %v5352
  %v5456 = vunpack.c.l.b16 %v5353
  %v5457 = vunpack.c.l.b16 %v5354
  %v5458 = vunpack.c.l.b16 %v5355
  %v5459 = vunpack.c.l.b16 %v5356
  %v5460 = vunpack.c.l.b16 %v5357
  %v5461 = vunpack.c.l.b16 %v5358
  %v5462 = vunpack.c.l.b16 %v5359
  %v5463 = vunpack.c.l.b16 %v5360
  %v5464 = vunpack.c.l.b16 %v5361
  %v5465 = vunpack.c.l.b16 %v5362
  %v5466 = vunpack.c.l.b16 %v5363
  %v5467 = vunpack.c.l.b16 %v5364
  %v5468 = vunpack.c.l.b16 %v5365
  %v5469 = vunpack.c.l.b16 %v5366
  %v5470 = vunpack.c.l.b16 %v5367
  %v5471 = vunpack.c.l.b16 %v5368
  %v5472 = vunpack.c.l.b16 %v5369
  %v5473 = vunpack.c.l.b16 %v5370
  %v5474 = vunpack.c.l.b16 %v5371
  %v5475 = vunpack.c.l.b16 %v5372
  %v5476 = vunpack.c.l.b16 %v5373
  %v5477 = vunpack.c.l.b16 %v5374
  %v5478 = vunpack.c.l.b16 %v5375
  %v5479 = vunpack.c.l.b16 %v5376
  %v5480 = vunpack.c.l.b16 %v5377
  %v5481 = vunpack.c.l.b16 %v5378
  %v5482 = vunpack.c.l.b16 %v5379
  %v5483 = vunpack.c.l.b16 %v5380
  %v5484 = vunpack.c.l.b16 %v5381
  %v5485 = vunpack.c.l.b16 %v5382
  %v5486 = vunpack.c.l.b16 %v5383
  %v5487 = vunpack.c.l.b16 %v5384
  %v5488 = vunpack.c.l.b16 %v5385
  %v5489 = vunpack.c.l.b16 %v5386
  %v5490 = vunpack.c.l.b16 %v5387
  %v5491 = vunpack.c.l.b16 %v5388
  %v5492 = vunpack.c.l.b16 %v5389
  %v5493 = vunpack.c.l.b16 %v5390
  %v5494 = vunpack.c.l.b16 %v5391
  %v5495 = vunpack.c.l.b16 %v5392
  %v5496 = vunpack.c.l.b16 %v5393
  %v5497 = vunpack.c.l.b16 %v5394
  %v5498 = vpack.c.b16 %v5451, %v5450
  %v5499 = vpack.c.b16 %v5453, %v5452
  %v5500 = vpack.c.b16 %v5455, %v5454
  %v5501 = vpack.c.b16 %v5457, %v5456
  %v5502 = vpack.c.b16 %v5459, %v5458
  %v5503 = vpack.c.b16 %v5461, %v5460
  %v5504 = vpack.c.b16 %v5463, %v5462
  %v5505 = vpack.c.b16 %v5465, %v5464
  %v5506 = vpack.c.b16 %v5467, %v5466
  %v5507 = vpack.c.b16 %v5469, %v5468
  %v5508 = vpack.c.b16 %v5471, %v5470
  %v5509 = vpack.c.b16 %v5473, %v5472
  %v5510 = vpack.c.b16 %v5475, %v5474
  %v5511 = vpack.c.b16 %v5477, %v5476
  %v5512 = vpack.c.b16 %v5479, %v5478
  %v5513 = vpack.c.b16 %v5481, %v5480
  %v5514 = vpack.c.b16 %v5483, %v5482
  %v5515 = vpack.c.b16 %v5485, %v5484
  %v5516 = vpack.c.b16 %v5487, %v5486
  %v5517 = vpack.c.b16 %v5489, %v5488
  %v5518 = vpack.c.b16 %v5491, %v5490
  %v5519 = vpack.c.b16 %v5493, %v5492
  %v5520 = vpack.c.b16 %v5495, %v5494
  %v5521 = vpack.c.b16 %v5497, %v5496
  %5546 = vmatprep.subr.bf16.mxu0 0
  %5547 = vmatpush1.bf16.msra.mxu0 %v5498
  %5548 = vmatprep.subr.bf16.mxu0 0
  %5549 = vmatpush1.bf16.msra.mxu0 %v5499
  %5550 = vmatprep.subr.bf16.mxu0 0
  %5551 = vmatpush1.bf16.msra.mxu0 %v5500
  %5552 = vmatprep.subr.bf16.mxu0 0
  %5553 = vmatpush1.bf16.msra.mxu0 %v5501
  %5554 = vmatprep.subr.bf16.mxu0 0
  %5555 = vmatpush1.bf16.msra.mxu0 %v5502
  %5556 = vmatprep.subr.bf16.mxu0 0
  %5557 = vmatpush1.bf16.msra.mxu0 %v5503
  %5558 = vmatprep.subr.bf16.mxu0 0
  %5559 = vmatpush1.bf16.msra.mxu0 %v5504
  %5560 = vmatprep.subr.bf16.mxu0 0
  %5561 = vmatpush1.bf16.msra.mxu0 %v5505
  %5562 = vmatprep.subr.bf16.mxu0 0
  %5563 = vmatpush1.bf16.msra.mxu0 %v5506
  %5564 = vmatprep.subr.bf16.mxu0 0
  %5565 = vmatpush1.bf16.msra.mxu0 %v5507
  %5566 = vmatprep.subr.bf16.mxu0 0
  %5567 = vmatpush1.bf16.msra.mxu0 %v5508
  %5568 = vmatprep.subr.bf16.mxu0 0
  %5569 = vmatpush1.bf16.msra.mxu0 %v5509
  %5570 = vmatprep.subr.bf16.mxu0 0
  %5571 = vmatpush1.bf16.msra.mxu0 %v5510
  %5572 = vmatprep.subr.bf16.mxu0 0
  %5573 = vmatpush1.bf16.msra.mxu0 %v5511
  %5574 = vmatprep.subr.bf16.mxu0 0
  %5575 = vmatpush1.bf16.msra.mxu0 %v5512
  %5576 = vmatprep.subr.bf16.mxu0 0
  %5577 = vmatpush1.bf16.msra.mxu0 %v5513
  %5578 = vmatprep.mubr.bf16.mxu0 %v5252
  %5579 = vmatmul.mubr.bf16.gmra.mrb[0].mxu0 %v5251
  %v5580 = vpop.f32.mrb[0].mxu0
  %v5581 = vadd.f32 %v5400, %v5580
  %v5582 = vpop.f32.mrb[0].mxu0
  %v5583 = vpop.f32.mrb[0].mxu0
  %v5584 = vadd.f32 %v5400, %v5583
  %v5585 = vpop.f32.mrb[0].mxu0
  %5586 = vmatprep.mubr.bf16.mxu0 %v5255
  %5587 = vmatmul.mubr.bf16.gmra.mrb[0].mxu0 %v5254
  %v5588 = vpop.f32.mrb[0].mxu0
  %v5589 = vadd.f32 %v5400, %v5588
  %v5590 = vpop.f32.mrb[0].mxu0
  %v5591 = vpop.f32.mrb[0].mxu0
  %v5592 = vadd.f32 %v5400, %v5591
  %v5593 = vpop.f32.mrb[0].mxu0
  %5594 = vmatprep.mubr.bf16.mxu0 %v5258
  %5595 = vmatmul.mubr.bf16.gmra.mrb[0].mxu0 %v5257
  %v5596 = vpop.f32.mrb[0].mxu0
  %v5597 = vadd.f32 %v5400, %v5596
  %v5598 = vpop.f32.mrb[0].mxu0
  %v5599 = vpop.f32.mrb[0].mxu0
  %v5600 = vadd.f32 %v5400, %v5599
  %v5601 = vpop.f32.mrb[0].mxu0
  %5602 = vmatprep.mubr.bf16.mxu0 %v5261
  %5603 = vmatmul.mubr.bf16.gmra.mrb[0].mxu0 %v5260
  %v5604 = vpop.f32.mrb[0].mxu0
  %v5605 = vadd.f32 %v5400, %v5604
  %v5606 = vpop.f32.mrb[0].mxu0
  %v5607 = vpop.f32.mrb[0].mxu0
  %v5608 = vadd.f32 %v5400, %v5607
  %v5609 = vpop.f32.mrb[0].mxu0
  %5610 = vmatprep.mubr.bf16.mxu0 %v5264
  %5611 = vmatmul.mubr.bf16.gmra.mrb[0].mxu0 %v5263
  %v5612 = vpop.f32.mrb[0].mxu0
  %v5613 = vadd.f32 %v5400, %v5612
  %v5614 = vpop.f32.mrb[0].mxu0
  %v5615 = vpop.f32.mrb[0].mxu0
  %v5616 = vadd.f32 %v5400, %v5615
  %v5617 = vpop.f32.mrb[0].mxu0
  %5618 = vmatprep.mubr.bf16.mxu0 %v5267
  %5619 = vmatmul.mubr.bf16.gmra.mrb[0].mxu0 %v5266
  %v5620 = vpop.f32.mrb[0].mxu0
  %v5621 = vadd.f32 %v5400, %v5620
  %v5622 = vpop.f32.mrb[0].mxu0
  %v5623 = vpop.f32.mrb[0].mxu0
  %v5624 = vadd.f32 %v5400, %v5623
  %v5625 = vpop.f32.mrb[0].mxu0
  %5626 = vmatprep.mubr.bf16.mxu0 %v5270
  %5627 = vmatmul.mubr.bf16.gmra.mrb[0].mxu0 %v5269
  %v5628 = vpop.f32.mrb[0].mxu0
  %v5629 = vadd.f32 %v5400, %v5628
  %v5630 = vpop.f32.mrb[0].mxu0
  %v5631 = vpop.f32.mrb[0].mxu0
  %v5632 = vadd.f32 %v5400, %v5631
  %v5633 = vpop.f32.mrb[0].mxu0
  %5634 = vmatprep.mubr.bf16.mxu0 %v5273
  %5635 = vmatmul.mubr.bf16.gmra.mrb[0].mxu0 %v5272
  %v5636 = vpop.f32.mrb[0].mxu0
  %v5637 = vadd.f32 %v5400, %v5636
  %v5638 = vpop.f32.mrb[0].mxu0
  %v5639 = vpop.f32.mrb[0].mxu0
  %v5640 = vadd.f32 %v5400, %v5639
  %v5641 = vpop.f32.mrb[0].mxu0
  %5642 = vmatprep.mubr.bf16.mxu0 %v5276
  %5643 = vmatmul.mubr.bf16.gmra.mrb[0].mxu0 %v5275
  %v5644 = vpop.f32.mrb[0].mxu0
  %v5645 = vadd.f32 %v5400, %v5644
  %v5646 = vpop.f32.mrb[0].mxu0
  %v5647 = vpop.f32.mrb[0].mxu0
  %v5648 = vadd.f32 %v5400, %v5647
  %v5649 = vpop.f32.mrb[0].mxu0
  %5650 = vmatprep.mubr.bf16.mxu0 %v5279
  %5651 = vmatmul.mubr.bf16.gmra.mrb[0].mxu0 %v5278
  %v5652 = vpop.f32.mrb[0].mxu0
  %v5653 = vadd.f32 %v5400, %v5652
  %v5654 = vpop.f32.mrb[0].mxu0
  %v5655 = vpop.f32.mrb[0].mxu0
  %v5656 = vadd.f32 %v5400, %v5655
  %v5657 = vpop.f32.mrb[0].mxu0
  %5658 = vmatprep.mubr.bf16.mxu0 %v5282
  %5659 = vmatmul.mubr.bf16.gmra.mrb[0].mxu0 %v5281
  %v5660 = vpop.f32.mrb[0].mxu0
  %v5661 = vadd.f32 %v5400, %v5660
  %v5662 = vpop.f32.mrb[0].mxu0
  %v5663 = vpop.f32.mrb[0].mxu0
  %v5664 = vadd.f32 %v5400, %v5663
  %v5665 = vpop.f32.mrb[0].mxu0
  %5666 = vmatprep.mubr.bf16.mxu0 %v5285
  %5667 = vmatmul.mubr.bf16.gmra.mrb[0].mxu0 %v5284
  %v5668 = vpop.f32.mrb[0].mxu0
  %v5669 = vadd.f32 %v5400, %v5668
  %v5670 = vpop.f32.mrb[0].mxu0
  %v5671 = vpop.f32.mrb[0].mxu0
  %v5672 = vadd.f32 %v5400, %v5671
  %v5673 = vpop.f32.mrb[0].mxu0
  %5674 = vmatprep.mubr.bf16.mxu0 %v5288
  %5675 = vmatmul.mubr.bf16.gmra.mrb[0].mxu0 %v5287
  %v5676 = vpop.f32.mrb[0].mxu0
  %v5677 = vadd.f32 %v5400, %v5676
  %v5678 = vpop.f32.mrb[0].mxu0
  %v5679 = vpop.f32.mrb[0].mxu0
  %v5680 = vadd.f32 %v5400, %v5679
  %v5681 = vpop.f32.mrb[0].mxu0
  %5682 = vmatprep.mubr.bf16.mxu0 %v5291
  %5683 = vmatmul.mubr.bf16.gmra.mrb[0].mxu0 %v5290
  %v5684 = vpop.f32.mrb[0].mxu0
  %v5685 = vadd.f32 %v5400, %v5684
  %v5686 = vpop.f32.mrb[0].mxu0
  %v5687 = vpop.f32.mrb[0].mxu0
  %v5688 = vadd.f32 %v5400, %v5687
  %v5689 = vpop.f32.mrb[0].mxu0
  %5690 = vmatprep.mubr.bf16.mxu0 %v5294
  %5691 = vmatmul.mubr.bf16.gmra.mrb[0].mxu0 %v5293
  %v5692 = vpop.f32.mrb[0].mxu0
  %v5693 = vadd.f32 %v5400, %v5692
  %v5694 = vpop.f32.mrb[0].mxu0
  %v5695 = vpop.f32.mrb[0].mxu0
  %v5696 = vadd.f32 %v5400, %v5695
  %v5697 = vpop.f32.mrb[0].mxu0
  %5698 = vmatprep.mubr.bf16.mxu0 %v5297
  %5699 = vmatmul.mubr.bf16.gmra.mrb[0].mxu0 %v5296
  %v5700 = vpop.f32.mrb[0].mxu0
  %v5701 = vadd.f32 %v5400, %v5700
  %v5702 = vpop.f32.mrb[0].mxu0
  %v5703 = vpop.f32.mrb[0].mxu0
  %v5704 = vadd.f32 %v5400, %v5703
  %v5705 = vpop.f32.mrb[0].mxu0
  %5706 = vmatprep.mubr.bf16.mxu0 %v5300
  %5707 = vmatmul.mubr.bf16.gmra.mrb[0].mxu0 %v5299
  %v5708 = vpop.f32.mrb[0].mxu0
  %v5709 = vadd.f32 %v5400, %v5708
  %v5710 = vpop.f32.mrb[0].mxu0
  %v5711 = vpop.f32.mrb[0].mxu0
  %v5712 = vadd.f32 %v5400, %v5711
  %v5713 = vpop.f32.mrb[0].mxu0
  %5714 = vmatprep.mubr.bf16.mxu0 %v5303
  %5715 = vmatmul.mubr.bf16.gmra.mrb[0].mxu0 %v5302
  %v5716 = vpop.f32.mrb[0].mxu0
  %v5717 = vadd.f32 %v5400, %v5716
  %v5718 = vpop.f32.mrb[0].mxu0
  %v5719 = vpop.f32.mrb[0].mxu0
  %v5720 = vadd.f32 %v5400, %v5719
  %v5721 = vpop.f32.mrb[0].mxu0
  %5722 = vmatprep.mubr.bf16.mxu0 %v5306
  %5723 = vmatmul.mubr.bf16.gmra.mrb[0].mxu0 %v5305
  %v5724 = vpop.f32.mrb[0].mxu0
  %v5725 = vadd.f32 %v5400, %v5724
  %v5726 = vpop.f32.mrb[0].mxu0
  %v5727 = vpop.f32.mrb[0].mxu0
  %v5728 = vadd.f32 %v5400, %v5727
  %v5729 = vpop.f32.mrb[0].mxu0
  %5730 = vmatprep.mubr.bf16.mxu0 %v5309
  %5731 = vmatmul.mubr.bf16.gmra.mrb[0].mxu0 %v5308
  %v5732 = vpop.f32.mrb[0].mxu0
  %v5733 = vadd.f32 %v5400, %v5732
  %v5734 = vpop.f32.mrb[0].mxu0
  %v5735 = vpop.f32.mrb[0].mxu0
  %v5736 = vadd.f32 %v5400, %v5735
  %v5737 = vpop.f32.mrb[0].mxu0
  %5738 = vmatprep.mubr.bf16.mxu0 %v5312
  %5739 = vmatmul.mubr.bf16.gmra.mrb[0].mxu0 %v5311
  %v5740 = vpop.f32.mrb[0].mxu0
  %v5741 = vadd.f32 %v5400, %v5740
  %v5742 = vpop.f32.mrb[0].mxu0
  %v5743 = vpop.f32.mrb[0].mxu0
  %v5744 = vadd.f32 %v5400, %v5743
  %v5745 = vpop.f32.mrb[0].mxu0
  %5746 = vmatprep.mubr.bf16.mxu0 %v5315
  %5747 = vmatmul.mubr.bf16.gmra.mrb[0].mxu0 %v5314
  %v5748 = vpop.f32.mrb[0].mxu0
  %v5749 = vadd.f32 %v5400, %v5748
  %v5750 = vpop.f32.mrb[0].mxu0
  %v5751 = vpop.f32.mrb[0].mxu0
  %v5752 = vadd.f32 %v5400, %v5751
  %v5753 = vpop.f32.mrb[0].mxu0
  %5754 = vmatprep.mubr.bf16.mxu0 %v5318
  %5755 = vmatmul.mubr.bf16.gmra.mrb[0].mxu0 %v5317
  %v5756 = vpop.f32.mrb[0].mxu0
  %v5757 = vadd.f32 %v5400, %v5756
  %v5758 = vpop.f32.mrb[0].mxu0
  %v5759 = vpop.f32.mrb[0].mxu0
  %v5760 = vadd.f32 %v5400, %v5759
  %v5761 = vpop.f32.mrb[0].mxu0
  %5762 = vmatprep.mubr.bf16.mxu0 %v5321
  %5763 = vmatmul.mubr.bf16.gmra.mrb[0].mxu0 %v5320
  %v5764 = vpop.f32.mrb[0].mxu0
  %v5765 = vadd.f32 %v5400, %v5764
  %v5766 = vpop.f32.mrb[0].mxu0
  %v5767 = vpop.f32.mrb[0].mxu0
  %v5768 = vadd.f32 %v5400, %v5767
  %v5769 = vpop.f32.mrb[0].mxu0
  %5770 = vmatprep.mubr.bf16.mxu0 %v5324
  %5771 = vmatmul.mubr.bf16.gmra.mrb[0].mxu0 %v5323
  %v5772 = vpop.f32.mrb[0].mxu0
  %v5773 = vadd.f32 %v5400, %v5772
  %v5774 = vpop.f32.mrb[0].mxu0
  %v5775 = vpop.f32.mrb[0].mxu0
  %v5776 = vadd.f32 %v5400, %v5775
  %v5777 = vpop.f32.mrb[0].mxu0
  %5778 = vmatprep.mubr.bf16.mxu0 %v5327
  %5779 = vmatmul.mubr.bf16.gmra.mrb[0].mxu0 %v5326
  %v5780 = vpop.f32.mrb[0].mxu0
  %v5781 = vadd.f32 %v5400, %v5780
  %v5782 = vpop.f32.mrb[0].mxu0
  %v5783 = vpop.f32.mrb[0].mxu0
  %v5784 = vadd.f32 %v5400, %v5783
  %v5785 = vpop.f32.mrb[0].mxu0
  %5786 = vmatprep.mubr.bf16.mxu0 %v5330
  %5787 = vmatmul.mubr.bf16.gmra.mrb[0].mxu0 %v5329
  %v5788 = vpop.f32.mrb[0].mxu0
  %v5789 = vadd.f32 %v5400, %v5788
  %v5790 = vpop.f32.mrb[0].mxu0
  %v5791 = vpop.f32.mrb[0].mxu0
  %v5792 = vadd.f32 %v5400, %v5791
  %v5793 = vpop.f32.mrb[0].mxu0
  %5794 = vmatprep.mubr.bf16.mxu0 %v5333
  %5795 = vmatmul.mubr.bf16.gmra.mrb[0].mxu0 %v5332
  %v5796 = vpop.f32.mrb[0].mxu0
  %v5797 = vadd.f32 %v5400, %v5796
  %v5798 = vpop.f32.mrb[0].mxu0
  %v5799 = vpop.f32.mrb[0].mxu0
  %v5800 = vadd.f32 %v5400, %v5799
  %v5801 = vpop.f32.mrb[0].mxu0
  %5802 = vmatprep.mubr.bf16.mxu0 %v5336
  %5803 = vmatmul.mubr.bf16.gmra.mrb[0].mxu0 %v5335
  %v5804 = vpop.f32.mrb[0].mxu0
  %v5805 = vadd.f32 %v5400, %v5804
  %v5806 = vpop.f32.mrb[0].mxu0
  %v5807 = vpop.f32.mrb[0].mxu0
  %v5808 = vadd.f32 %v5400, %v5807
  %v5809 = vpop.f32.mrb[0].mxu0
  %5810 = vmatprep.mubr.bf16.mxu0 %v5339
  %5811 = vmatmul.mubr.bf16.gmra.mrb[0].mxu0 %v5338
  %v5812 = vpop.f32.mrb[0].mxu0
  %v5813 = vadd.f32 %v5400, %v5812
  %v5814 = vpop.f32.mrb[0].mxu0
  %v5815 = vpop.f32.mrb[0].mxu0
  %v5816 = vadd.f32 %v5400, %v5815
  %v5817 = vpop.f32.mrb[0].mxu0
  %5818 = vmatprep.mubr.bf16.mxu0 %v5342
  %5819 = vmatmul.mubr.bf16.gmra.mrb[0].mxu0 %v5341
  %v5820 = vpop.f32.mrb[0].mxu0
  %v5821 = vadd.f32 %v5400, %v5820
  %v5822 = vpop.f32.mrb[0].mxu0
  %v5823 = vpop.f32.mrb[0].mxu0
  %v5824 = vadd.f32 %v5400, %v5823
  %v5825 = vpop.f32.mrb[0].mxu0
  %5826 = vmatprep.mubr.bf16.mxu0 %v5345
  %5827 = vmatmul.mubr.bf16.gmra.mrb[0].mxu0 %v5344
  %v5828 = vpop.f32.mrb[0].mxu0
  %v5829 = vadd.f32 %v5400, %v5828
  %v5830 = vpop.f32.mrb[0].mxu0
  %v5831 = vpop.f32.mrb[0].mxu0
  %v5832 = vadd.f32 %v5400, %v5831
  %v5833 = vpop.f32.mrb[0].mxu0
  %5834 = vdwg.mxu0
  %5835 = vmatprep.subr.bf16.mxu0 0
  %5836 = vmatpush1.bf16.msra.mxu0 %v5514
  %5837 = vmatprep.subr.bf16.mxu0 0
  %5838 = vmatpush1.bf16.msra.mxu0 %v5515
  %5839 = vmatprep.subr.bf16.mxu0 0
  %5840 = vmatpush1.bf16.msra.mxu0 %v5516
  %5841 = vmatprep.subr.bf16.mxu0 0
  %5842 = vmatpush1.bf16.msra.mxu0 %v5517
  %5843 = vmatprep.subr.bf16.mxu0 0
  %5844 = vmatpush1.bf16.msra.mxu0 %v5518
  %5845 = vmatprep.subr.bf16.mxu0 0
  %5846 = vmatpush1.bf16.msra.mxu0 %v5519
  %5847 = vmatprep.subr.bf16.mxu0 0
  %5848 = vmatpush1.bf16.msra.mxu0 %v5520
  %5849 = vmatprep.subr.bf16.mxu0 0
  %5850 = vmatpush1.bf16.msra.mxu0 %v5521
  %5851 = vmatprep.subr.bf16.mxu0 0
  %5852 = vmatpush1.bf16.msra.mxu0 0
  %5853 = vmatprep.subr.bf16.mxu0 0
  %5854 = vmatpush1.bf16.msra.mxu0 0
  %5855 = vmatprep.subr.bf16.mxu0 0
  %5856 = vmatpush1.bf16.msra.mxu0 0
  %5857 = vmatprep.subr.bf16.mxu0 0
  %5858 = vmatpush1.bf16.msra.mxu0 0
  %5859 = vmatprep.subr.bf16.mxu0 0
  %5860 = vmatpush1.bf16.msra.mxu0 0
  %5861 = vmatprep.subr.bf16.mxu0 0
  %5862 = vmatpush1.bf16.msra.mxu0 0
  %5863 = vmatprep.subr.bf16.mxu0 0
  %5864 = vmatpush1.bf16.msra.mxu0 0
  %5865 = vmatprep.subr.bf16.mxu0 0
  %5866 = vmatpush1.bf16.msra.mxu0 0
  %5867 = vmatprep.mubr.bf16.mxu0 0
  %5868 = vmatmul.mubr.bf16.gmra.mrb[0].mxu0 %v5253
  %v5869 = vpop.f32.mrb[0].mxu0
  %v5870 = vadd.f32 %v5581, %v5869
  %v5871 = vpop.f32.mrb[0].mxu0
  %v5872 = vpop.f32.mrb[0].mxu0
  %v5873 = vadd.f32 %v5584, %v5872
  %v5874 = vpop.f32.mrb[0].mxu0
  %5875 = vmatprep.mubr.bf16.mxu0 0
  %5876 = vmatmul.mubr.bf16.gmra.mrb[0].mxu0 %v5256
  %v5877 = vpop.f32.mrb[0].mxu0
  %v5878 = vadd.f32 %v5589, %v5877
  %v5879 = vpop.f32.mrb[0].mxu0
  %v5880 = vpop.f32.mrb[0].mxu0
  %v5881 = vadd.f32 %v5592, %v5880
  %v5882 = vpop.f32.mrb[0].mxu0
  %5883 = vmatprep.mubr.bf16.mxu0 0
  %5884 = vmatmul.mubr.bf16.gmra.mrb[0].mxu0 %v5259
  %v5885 = vpop.f32.mrb[0].mxu0
  %v5886 = vadd.f32 %v5597, %v5885
  %v5887 = vpop.f32.mrb[0].mxu0
  %v5888 = vpop.f32.mrb[0].mxu0
  %v5889 = vadd.f32 %v5600, %v5888
  %v5890 = vpop.f32.mrb[0].mxu0
  %5891 = vmatprep.mubr.bf16.mxu0 0
  %5892 = vmatmul.mubr.bf16.gmra.mrb[0].mxu0 %v5262
  %v5893 = vpop.f32.mrb[0].mxu0
  %v5894 = vadd.f32 %v5605, %v5893
  %v5895 = vpop.f32.mrb[0].mxu0
  %v5896 = vpop.f32.mrb[0].mxu0
  %v5897 = vadd.f32 %v5608, %v5896
  %v5898 = vpop.f32.mrb[0].mxu0
  %5899 = vmatprep.mubr.bf16.mxu0 0
  %5900 = vmatmul.mubr.bf16.gmra.mrb[0].mxu0 %v5265
  %v5901 = vpop.f32.mrb[0].mxu0
  %v5902 = vadd.f32 %v5613, %v5901
  %v5903 = vpop.f32.mrb[0].mxu0
  %v5904 = vpop.f32.mrb[0].mxu0
  %v5905 = vadd.f32 %v5616, %v5904
  %v5906 = vpop.f32.mrb[0].mxu0
  %5907 = vmatprep.mubr.bf16.mxu0 0
  %5908 = vmatmul.mubr.bf16.gmra.mrb[0].mxu0 %v5268
  %v5909 = vpop.f32.mrb[0].mxu0
  %v5910 = vadd.f32 %v5621, %v5909
  %v5911 = vpop.f32.mrb[0].mxu0
  %v5912 = vpop.f32.mrb[0].mxu0
  %v5913 = vadd.f32 %v5624, %v5912
  %v5914 = vpop.f32.mrb[0].mxu0
  %5915 = vmatprep.mubr.bf16.mxu0 0
  %5916 = vmatmul.mubr.bf16.gmra.mrb[0].mxu0 %v5271
  %v5917 = vpop.f32.mrb[0].mxu0
  %v5918 = vadd.f32 %v5629, %v5917
  %v5919 = vpop.f32.mrb[0].mxu0
  %v5920 = vpop.f32.mrb[0].mxu0
  %v5921 = vadd.f32 %v5632, %v5920
  %v5922 = vpop.f32.mrb[0].mxu0
  %5923 = vmatprep.mubr.bf16.mxu0 0
  %5924 = vmatmul.mubr.bf16.gmra.mrb[0].mxu0 %v5274
  %v5925 = vpop.f32.mrb[0].mxu0
  %v5926 = vadd.f32 %v5637, %v5925
  %v5927 = vpop.f32.mrb[0].mxu0
  %v5928 = vpop.f32.mrb[0].mxu0
  %v5929 = vadd.f32 %v5640, %v5928
  %v5930 = vpop.f32.mrb[0].mxu0
  %5931 = vmatprep.mubr.bf16.mxu0 0
  %5932 = vmatmul.mubr.bf16.gmra.mrb[0].mxu0 %v5277
  %v5933 = vpop.f32.mrb[0].mxu0
  %v5934 = vadd.f32 %v5645, %v5933
  %v5935 = vpop.f32.mrb[0].mxu0
  %v5936 = vpop.f32.mrb[0].mxu0
  %v5937 = vadd.f32 %v5648, %v5936
  %v5938 = vpop.f32.mrb[0].mxu0
  %5939 = vmatprep.mubr.bf16.mxu0 0
  %5940 = vmatmul.mubr.bf16.gmra.mrb[0].mxu0 %v5280
  %v5941 = vpop.f32.mrb[0].mxu0
  %v5942 = vadd.f32 %v5653, %v5941
  %v5943 = vpop.f32.mrb[0].mxu0
  %v5944 = vpop.f32.mrb[0].mxu0
  %v5945 = vadd.f32 %v5656, %v5944
  %v5946 = vpop.f32.mrb[0].mxu0
  %5947 = vmatprep.mubr.bf16.mxu0 0
  %5948 = vmatmul.mubr.bf16.gmra.mrb[0].mxu0 %v5283
  %v5949 = vpop.f32.mrb[0].mxu0
  %v5950 = vadd.f32 %v5661, %v5949
  %v5951 = vpop.f32.mrb[0].mxu0
  %v5952 = vpop.f32.mrb[0].mxu0
  %v5953 = vadd.f32 %v5664, %v5952
  %v5954 = vpop.f32.mrb[0].mxu0
  %5955 = vmatprep.mubr.bf16.mxu0 0
  %5956 = vmatmul.mubr.bf16.gmra.mrb[0].mxu0 %v5286
  %v5957 = vpop.f32.mrb[0].mxu0
  %v5958 = vadd.f32 %v5669, %v5957
  %v5959 = vpop.f32.mrb[0].mxu0
  %v5960 = vpop.f32.mrb[0].mxu0
  %v5961 = vadd.f32 %v5672, %v5960
  %v5962 = vpop.f32.mrb[0].mxu0
  %5963 = vmatprep.mubr.bf16.mxu0 0
  %5964 = vmatmul.mubr.bf16.gmra.mrb[0].mxu0 %v5289
  %v5965 = vpop.f32.mrb[0].mxu0
  %v5966 = vadd.f32 %v5677, %v5965
  %v5967 = vpop.f32.mrb[0].mxu0
  %v5968 = vpop.f32.mrb[0].mxu0
  %v5969 = vadd.f32 %v5680, %v5968
  %v5970 = vpop.f32.mrb[0].mxu0
  %5971 = vmatprep.mubr.bf16.mxu0 0
  %5972 = vmatmul.mubr.bf16.gmra.mrb[0].mxu0 %v5292
  %v5973 = vpop.f32.mrb[0].mxu0
  %v5974 = vadd.f32 %v5685, %v5973
  %v5975 = vpop.f32.mrb[0].mxu0
  %v5976 = vpop.f32.mrb[0].mxu0
  %v5977 = vadd.f32 %v5688, %v5976
  %v5978 = vpop.f32.mrb[0].mxu0
  %5979 = vmatprep.mubr.bf16.mxu0 0
  %5980 = vmatmul.mubr.bf16.gmra.mrb[0].mxu0 %v5295
  %v5981 = vpop.f32.mrb[0].mxu0
  %v5982 = vadd.f32 %v5693, %v5981
  %v5983 = vpop.f32.mrb[0].mxu0
  %v5984 = vpop.f32.mrb[0].mxu0
  %v5985 = vadd.f32 %v5696, %v5984
  %v5986 = vpop.f32.mrb[0].mxu0
  %5987 = vmatprep.mubr.bf16.mxu0 0
  %5988 = vmatmul.mubr.bf16.gmra.mrb[0].mxu0 %v5298
  %v5989 = vpop.f32.mrb[0].mxu0
  %v5990 = vadd.f32 %v5701, %v5989
  %v5991 = vpop.f32.mrb[0].mxu0
  %v5992 = vpop.f32.mrb[0].mxu0
  %v5993 = vadd.f32 %v5704, %v5992
  %v5994 = vpop.f32.mrb[0].mxu0
  %5995 = vmatprep.mubr.bf16.mxu0 0
  %5996 = vmatmul.mubr.bf16.gmra.mrb[0].mxu0 %v5301
  %v5997 = vpop.f32.mrb[0].mxu0
  %v5998 = vadd.f32 %v5709, %v5997
  %v5999 = vpop.f32.mrb[0].mxu0
  %v6000 = vpop.f32.mrb[0].mxu0
  %v6001 = vadd.f32 %v5712, %v6000
  %v6002 = vpop.f32.mrb[0].mxu0
  %6003 = vmatprep.mubr.bf16.mxu0 0
  %6004 = vmatmul.mubr.bf16.gmra.mrb[0].mxu0 %v5304
  %v6005 = vpop.f32.mrb[0].mxu0
  %v6006 = vadd.f32 %v5717, %v6005
  %v6007 = vpop.f32.mrb[0].mxu0
  %v6008 = vpop.f32.mrb[0].mxu0
  %v6009 = vadd.f32 %v5720, %v6008
  %v6010 = vpop.f32.mrb[0].mxu0
  %6011 = vmatprep.mubr.bf16.mxu0 0
  %6012 = vmatmul.mubr.bf16.gmra.mrb[0].mxu0 %v5307
  %v6013 = vpop.f32.mrb[0].mxu0
  %v6014 = vadd.f32 %v5725, %v6013
  %v6015 = vpop.f32.mrb[0].mxu0
  %v6016 = vpop.f32.mrb[0].mxu0
  %v6017 = vadd.f32 %v5728, %v6016
  %v6018 = vpop.f32.mrb[0].mxu0
  %6019 = vmatprep.mubr.bf16.mxu0 0
  %6020 = vmatmul.mubr.bf16.gmra.mrb[0].mxu0 %v5310
  %v6021 = vpop.f32.mrb[0].mxu0
  %v6022 = vadd.f32 %v5733, %v6021
  %v6023 = vpop.f32.mrb[0].mxu0
  %v6024 = vpop.f32.mrb[0].mxu0
  %v6025 = vadd.f32 %v5736, %v6024
  %v6026 = vpop.f32.mrb[0].mxu0
  %6027 = vmatprep.mubr.bf16.mxu0 0
  %6028 = vmatmul.mubr.bf16.gmra.mrb[0].mxu0 %v5313
  %v6029 = vpop.f32.mrb[0].mxu0
  %v6030 = vadd.f32 %v5741, %v6029
  %v6031 = vpop.f32.mrb[0].mxu0
  %v6032 = vpop.f32.mrb[0].mxu0
  %v6033 = vadd.f32 %v5744, %v6032
  %v6034 = vpop.f32.mrb[0].mxu0
  %6035 = vmatprep.mubr.bf16.mxu0 0
  %6036 = vmatmul.mubr.bf16.gmra.mrb[0].mxu0 %v5316
  %v6037 = vpop.f32.mrb[0].mxu0
  %v6038 = vadd.f32 %v5749, %v6037
  %v6039 = vpop.f32.mrb[0].mxu0
  %v6040 = vpop.f32.mrb[0].mxu0
  %v6041 = vadd.f32 %v5752, %v6040
  %v6042 = vpop.f32.mrb[0].mxu0
  %6043 = vmatprep.mubr.bf16.mxu0 0
  %6044 = vmatmul.mubr.bf16.gmra.mrb[0].mxu0 %v5319
  %v6045 = vpop.f32.mrb[0].mxu0
  %v6046 = vadd.f32 %v5757, %v6045
  %v6047 = vpop.f32.mrb[0].mxu0
  %v6048 = vpop.f32.mrb[0].mxu0
  %v6049 = vadd.f32 %v5760, %v6048
  %v6050 = vpop.f32.mrb[0].mxu0
  %6051 = vmatprep.mubr.bf16.mxu0 0
  %6052 = vmatmul.mubr.bf16.gmra.mrb[0].mxu0 %v5322
  %v6053 = vpop.f32.mrb[0].mxu0
  %v6054 = vadd.f32 %v5765, %v6053
  %v6055 = vpop.f32.mrb[0].mxu0
  %v6056 = vpop.f32.mrb[0].mxu0
  %v6057 = vadd.f32 %v5768, %v6056
  %v6058 = vpop.f32.mrb[0].mxu0
  %6059 = vmatprep.mubr.bf16.mxu0 0
  %6060 = vmatmul.mubr.bf16.gmra.mrb[0].mxu0 %v5325
  %v6061 = vpop.f32.mrb[0].mxu0
  %v6062 = vadd.f32 %v5773, %v6061
  %v6063 = vpop.f32.mrb[0].mxu0
  %v6064 = vpop.f32.mrb[0].mxu0
  %v6065 = vadd.f32 %v5776, %v6064
  %v6066 = vpop.f32.mrb[0].mxu0
  %6067 = vmatprep.mubr.bf16.mxu0 0
  %6068 = vmatmul.mubr.bf16.gmra.mrb[0].mxu0 %v5328
  %v6069 = vpop.f32.mrb[0].mxu0
  %v6070 = vadd.f32 %v5781, %v6069
  %v6071 = vpop.f32.mrb[0].mxu0
  %v6072 = vpop.f32.mrb[0].mxu0
  %v6073 = vadd.f32 %v5784, %v6072
  %v6074 = vpop.f32.mrb[0].mxu0
  %6075 = vmatprep.mubr.bf16.mxu0 0
  %6076 = vmatmul.mubr.bf16.gmra.mrb[0].mxu0 %v5331
  %v6077 = vpop.f32.mrb[0].mxu0
  %v6078 = vadd.f32 %v5789, %v6077
  %v6079 = vpop.f32.mrb[0].mxu0
  %v6080 = vpop.f32.mrb[0].mxu0
  %v6081 = vadd.f32 %v5792, %v6080
  %v6082 = vpop.f32.mrb[0].mxu0
  %6083 = vmatprep.mubr.bf16.mxu0 0
  %6084 = vmatmul.mubr.bf16.gmra.mrb[0].mxu0 %v5334
  %v6085 = vpop.f32.mrb[0].mxu0
  %v6086 = vadd.f32 %v5797, %v6085
  %v6087 = vpop.f32.mrb[0].mxu0
  %v6088 = vpop.f32.mrb[0].mxu0
  %v6089 = vadd.f32 %v5800, %v6088
  %v6090 = vpop.f32.mrb[0].mxu0
  %6091 = vmatprep.mubr.bf16.mxu0 0
  %6092 = vmatmul.mubr.bf16.gmra.mrb[0].mxu0 %v5337
  %v6093 = vpop.f32.mrb[0].mxu0
  %v6094 = vadd.f32 %v5805, %v6093
  %v6095 = vpop.f32.mrb[0].mxu0
  %v6096 = vpop.f32.mrb[0].mxu0
  %v6097 = vadd.f32 %v5808, %v6096
  %v6098 = vpop.f32.mrb[0].mxu0
  %6099 = vmatprep.mubr.bf16.mxu0 0
  %6100 = vmatmul.mubr.bf16.gmra.mrb[0].mxu0 %v5340
  %v6101 = vpop.f32.mrb[0].mxu0
  %v6102 = vadd.f32 %v5813, %v6101
  %v6103 = vpop.f32.mrb[0].mxu0
  %v6104 = vpop.f32.mrb[0].mxu0
  %v6105 = vadd.f32 %v5816, %v6104
  %v6106 = vpop.f32.mrb[0].mxu0
  %6107 = vmatprep.mubr.bf16.mxu0 0
  %6108 = vmatmul.mubr.bf16.gmra.mrb[0].mxu0 %v5343
  %v6109 = vpop.f32.mrb[0].mxu0
  %v6110 = vadd.f32 %v5821, %v6109
  %v6111 = vpop.f32.mrb[0].mxu0
  %v6112 = vpop.f32.mrb[0].mxu0
  %v6113 = vadd.f32 %v5824, %v6112
  %v6114 = vpop.f32.mrb[0].mxu0
  %6115 = vmatprep.mubr.bf16.mxu0 0
  %6116 = vmatmul.mubr.bf16.gmra.mrb[0].mxu0 %v5346
  %v6117 = vpop.f32.mrb[0].mxu0
  %v6118 = vadd.f32 %v5829, %v6117
  %v6119 = vpop.f32.mrb[0].mxu0
  %v6120 = vpop.f32.mrb[0].mxu0
  %v6121 = vadd.f32 %v5832, %v6120
  %v6122 = vpop.f32.mrb[0].mxu0
  %6123 = vdwg.mxu0
  %6124 = vmax.xlane.f32.xlu0 %v5870
  %v6125 = vpop.xlane.xlu0 %6124
  %6126 = vmax.xlane.f32.xlu0 %v5873
  %v6127 = vpop.xlane.xlu0 %6126
  %6128 = vmax.xlane.f32.xlu0 %v5878
  %v6129 = vpop.xlane.xlu0 %6128
  %6130 = vmax.xlane.f32.xlu0 %v5881
  %v6131 = vpop.xlane.xlu0 %6130
  %6132 = vmax.xlane.f32.xlu0 %v5886
  %v6133 = vpop.xlane.xlu0 %6132
  %6134 = vmax.xlane.f32.xlu0 %v5889
  %v6135 = vpop.xlane.xlu0 %6134
  %6136 = vmax.xlane.f32.xlu0 %v5894
  %v6137 = vpop.xlane.xlu0 %6136
  %6138 = vmax.xlane.f32.xlu0 %v5897
  %v6139 = vpop.xlane.xlu0 %6138
  %6140 = vmax.xlane.f32.xlu0 %v5902
  %v6141 = vpop.xlane.xlu0 %6140
  %6142 = vmax.xlane.f32.xlu0 %v5905
  %v6143 = vpop.xlane.xlu0 %6142
  %6144 = vmax.xlane.f32.xlu0 %v5910
  %v6145 = vpop.xlane.xlu0 %6144
  %6146 = vmax.xlane.f32.xlu0 %v5913
  %v6147 = vpop.xlane.xlu0 %6146
  %6148 = vmax.xlane.f32.xlu0 %v5918
  %v6149 = vpop.xlane.xlu0 %6148
  %6150 = vmax.xlane.f32.xlu0 %v5921
  %v6151 = vpop.xlane.xlu0 %6150
  %6152 = vmax.xlane.f32.xlu0 %v5926
  %v6153 = vpop.xlane.xlu0 %6152
  %6154 = vmax.xlane.f32.xlu0 %v5929
  %v6155 = vpop.xlane.xlu0 %6154
  %6156 = vmax.xlane.f32.xlu0 %v5934
  %v6157 = vpop.xlane.xlu0 %6156
  %6158 = vmax.xlane.f32.xlu0 %v5937
  %v6159 = vpop.xlane.xlu0 %6158
  %6160 = vmax.xlane.f32.xlu0 %v5942
  %v6161 = vpop.xlane.xlu0 %6160
  %6162 = vmax.xlane.f32.xlu0 %v5945
  %v6163 = vpop.xlane.xlu0 %6162
  %6164 = vmax.xlane.f32.xlu0 %v5950
  %v6165 = vpop.xlane.xlu0 %6164
  %6166 = vmax.xlane.f32.xlu0 %v5953
  %v6167 = vpop.xlane.xlu0 %6166
  %6168 = vmax.xlane.f32.xlu0 %v5958
  %v6169 = vpop.xlane.xlu0 %6168
  %6170 = vmax.xlane.f32.xlu0 %v5961
  %v6171 = vpop.xlane.xlu0 %6170
  %6172 = vmax.xlane.f32.xlu0 %v5966
  %v6173 = vpop.xlane.xlu0 %6172
  %6174 = vmax.xlane.f32.xlu0 %v5969
  %v6175 = vpop.xlane.xlu0 %6174
  %6176 = vmax.xlane.f32.xlu0 %v5974
  %v6177 = vpop.xlane.xlu0 %6176
  %6178 = vmax.xlane.f32.xlu0 %v5977
  %v6179 = vpop.xlane.xlu0 %6178
  %6180 = vmax.xlane.f32.xlu0 %v5982
  %v6181 = vpop.xlane.xlu0 %6180
  %6182 = vmax.xlane.f32.xlu0 %v5985
  %v6183 = vpop.xlane.xlu0 %6182
  %6184 = vmax.xlane.f32.xlu0 %v5990
  %v6185 = vpop.xlane.xlu0 %6184
  %6186 = vmax.xlane.f32.xlu0 %v5993
  %v6187 = vpop.xlane.xlu0 %6186
  %6188 = vmax.xlane.f32.xlu0 %v5998
  %v6189 = vpop.xlane.xlu0 %6188
  %6190 = vmax.xlane.f32.xlu0 %v6001
  %v6191 = vpop.xlane.xlu0 %6190
  %6192 = vmax.xlane.f32.xlu0 %v6006
  %v6193 = vpop.xlane.xlu0 %6192
  %6194 = vmax.xlane.f32.xlu0 %v6009
  %v6195 = vpop.xlane.xlu0 %6194
  %6196 = vmax.xlane.f32.xlu0 %v6014
  %v6197 = vpop.xlane.xlu0 %6196
  %6198 = vmax.xlane.f32.xlu0 %v6017
  %v6199 = vpop.xlane.xlu0 %6198
  %6200 = vmax.xlane.f32.xlu0 %v6022
  %v6201 = vpop.xlane.xlu0 %6200
  %6202 = vmax.xlane.f32.xlu0 %v6025
  %v6203 = vpop.xlane.xlu0 %6202
  %6204 = vmax.xlane.f32.xlu0 %v6030
  %v6205 = vpop.xlane.xlu0 %6204
  %6206 = vmax.xlane.f32.xlu0 %v6033
  %v6207 = vpop.xlane.xlu0 %6206
  %6208 = vmax.xlane.f32.xlu0 %v6038
  %v6209 = vpop.xlane.xlu0 %6208
  %6210 = vmax.xlane.f32.xlu0 %v6041
  %v6211 = vpop.xlane.xlu0 %6210
  %6212 = vmax.xlane.f32.xlu0 %v6046
  %v6213 = vpop.xlane.xlu0 %6212
  %6214 = vmax.xlane.f32.xlu0 %v6049
  %v6215 = vpop.xlane.xlu0 %6214
  %6216 = vmax.xlane.f32.xlu0 %v6054
  %v6217 = vpop.xlane.xlu0 %6216
  %6218 = vmax.xlane.f32.xlu0 %v6057
  %v6219 = vpop.xlane.xlu0 %6218
  %6220 = vmax.xlane.f32.xlu0 %v6062
  %v6221 = vpop.xlane.xlu0 %6220
  %6222 = vmax.xlane.f32.xlu0 %v6065
  %v6223 = vpop.xlane.xlu0 %6222
  %6224 = vmax.xlane.f32.xlu0 %v6070
  %v6225 = vpop.xlane.xlu0 %6224
  %6226 = vmax.xlane.f32.xlu0 %v6073
  %v6227 = vpop.xlane.xlu0 %6226
  %6228 = vmax.xlane.f32.xlu0 %v6078
  %v6229 = vpop.xlane.xlu0 %6228
  %6230 = vmax.xlane.f32.xlu0 %v6081
  %v6231 = vpop.xlane.xlu0 %6230
  %6232 = vmax.xlane.f32.xlu0 %v6086
  %v6233 = vpop.xlane.xlu0 %6232
  %6234 = vmax.xlane.f32.xlu0 %v6089
  %v6235 = vpop.xlane.xlu0 %6234
  %6236 = vmax.xlane.f32.xlu0 %v6094
  %v6237 = vpop.xlane.xlu0 %6236
  %6238 = vmax.xlane.f32.xlu0 %v6097
  %v6239 = vpop.xlane.xlu0 %6238
  %6240 = vmax.xlane.f32.xlu0 %v6102
  %v6241 = vpop.xlane.xlu0 %6240
  %6242 = vmax.xlane.f32.xlu0 %v6105
  %v6243 = vpop.xlane.xlu0 %6242
  %6244 = vmax.xlane.f32.xlu0 %v6110
  %v6245 = vpop.xlane.xlu0 %6244
  %6246 = vmax.xlane.f32.xlu0 %v6113
  %v6247 = vpop.xlane.xlu0 %6246
  %6248 = vmax.xlane.f32.xlu0 %v6118
  %v6249 = vpop.xlane.xlu0 %6248
  %6250 = vmax.xlane.f32.xlu0 %v6121
  %v6251 = vpop.xlane.xlu0 %6250
  %v6252 = vsub.f32 %v5870, %v6125
  %v6253 = vsub.f32 %v5873, %v6127
  %v6254 = vsub.f32 %v5878, %v6129
  %v6255 = vsub.f32 %v5881, %v6131
  %v6256 = vsub.f32 %v5886, %v6133
  %v6257 = vsub.f32 %v5889, %v6135
  %v6258 = vsub.f32 %v5894, %v6137
  %v6259 = vsub.f32 %v5897, %v6139
  %v6260 = vsub.f32 %v5902, %v6141
  %v6261 = vsub.f32 %v5905, %v6143
  %v6262 = vsub.f32 %v5910, %v6145
  %v6263 = vsub.f32 %v5913, %v6147
  %v6264 = vsub.f32 %v5918, %v6149
  %v6265 = vsub.f32 %v5921, %v6151
  %v6266 = vsub.f32 %v5926, %v6153
  %v6267 = vsub.f32 %v5929, %v6155
  %v6268 = vsub.f32 %v5934, %v6157
  %v6269 = vsub.f32 %v5937, %v6159
  %v6270 = vsub.f32 %v5942, %v6161
  %v6271 = vsub.f32 %v5945, %v6163
  %v6272 = vsub.f32 %v5950, %v6165
  %v6273 = vsub.f32 %v5953, %v6167
  %v6274 = vsub.f32 %v5958, %v6169
  %v6275 = vsub.f32 %v5961, %v6171
  %v6276 = vsub.f32 %v5966, %v6173
  %v6277 = vsub.f32 %v5969, %v6175
  %v6278 = vsub.f32 %v5974, %v6177
  %v6279 = vsub.f32 %v5977, %v6179
  %v6280 = vsub.f32 %v5982, %v6181
  %v6281 = vsub.f32 %v5985, %v6183
  %v6282 = vsub.f32 %v5990, %v6185
  %v6283 = vsub.f32 %v5993, %v6187
  %v6284 = vsub.f32 %v5998, %v6189
  %v6285 = vsub.f32 %v6001, %v6191
  %v6286 = vsub.f32 %v6006, %v6193
  %v6287 = vsub.f32 %v6009, %v6195
  %v6288 = vsub.f32 %v6014, %v6197
  %v6289 = vsub.f32 %v6017, %v6199
  %v6290 = vsub.f32 %v6022, %v6201
  %v6291 = vsub.f32 %v6025, %v6203
  %v6292 = vsub.f32 %v6030, %v6205
  %v6293 = vsub.f32 %v6033, %v6207
  %v6294 = vsub.f32 %v6038, %v6209
  %v6295 = vsub.f32 %v6041, %v6211
  %v6296 = vsub.f32 %v6046, %v6213
  %v6297 = vsub.f32 %v6049, %v6215
  %v6298 = vsub.f32 %v6054, %v6217
  %v6299 = vsub.f32 %v6057, %v6219
  %v6300 = vsub.f32 %v6062, %v6221
  %v6301 = vsub.f32 %v6065, %v6223
  %v6302 = vsub.f32 %v6070, %v6225
  %v6303 = vsub.f32 %v6073, %v6227
  %v6304 = vsub.f32 %v6078, %v6229
  %v6305 = vsub.f32 %v6081, %v6231
  %v6306 = vsub.f32 %v6086, %v6233
  %v6307 = vsub.f32 %v6089, %v6235
  %v6308 = vsub.f32 %v6094, %v6237
  %v6309 = vsub.f32 %v6097, %v6239
  %v6310 = vsub.f32 %v6102, %v6241
  %v6311 = vsub.f32 %v6105, %v6243
  %v6312 = vsub.f32 %v6110, %v6245
  %v6313 = vsub.f32 %v6113, %v6247
  %v6314 = vsub.f32 %v6118, %v6249
  %v6315 = vsub.f32 %v6121, %v6251
  %v6316 = vmul.f32 %v6252, 1.442695
  %v6317 = vpow.pop %v6316
  %v6318 = vmul.f32 %v6253, 1.442695
  %v6319 = vpow.pop %v6318
  %v6320 = vmul.f32 %v6254, 1.442695
  %v6321 = vpow.pop %v6320
  %v6322 = vmul.f32 %v6255, 1.442695
  %v6323 = vpow.pop %v6322
  %v6324 = vmul.f32 %v6256, 1.442695
  %v6325 = vpow.pop %v6324
  %v6326 = vmul.f32 %v6257, 1.442695
  %v6327 = vpow.pop %v6326
  %v6328 = vmul.f32 %v6258, 1.442695
  %v6329 = vpow.pop %v6328
  %v6330 = vmul.f32 %v6259, 1.442695
  %v6331 = vpow.pop %v6330
  %v6332 = vmul.f32 %v6260, 1.442695
  %v6333 = vpow.pop %v6332
  %v6334 = vmul.f32 %v6261, 1.442695
  %v6335 = vpow.pop %v6334
  %v6336 = vmul.f32 %v6262, 1.442695
  %v6337 = vpow.pop %v6336
  %v6338 = vmul.f32 %v6263, 1.442695
  %v6339 = vpow.pop %v6338
  %v6340 = vmul.f32 %v6264, 1.442695
  %v6341 = vpow.pop %v6340
  %v6342 = vmul.f32 %v6265, 1.442695
  %v6343 = vpow.pop %v6342
  %v6344 = vmul.f32 %v6266, 1.442695
  %v6345 = vpow.pop %v6344
  %v6346 = vmul.f32 %v6267, 1.442695
  %v6347 = vpow.pop %v6346
  %v6348 = vmul.f32 %v6268, 1.442695
  %v6349 = vpow.pop %v6348
  %v6350 = vmul.f32 %v6269, 1.442695
  %v6351 = vpow.pop %v6350
  %v6352 = vmul.f32 %v6270, 1.442695
  %v6353 = vpow.pop %v6352
  %v6354 = vmul.f32 %v6271, 1.442695
  %v6355 = vpow.pop %v6354
  %v6356 = vmul.f32 %v6272, 1.442695
  %v6357 = vpow.pop %v6356
  %v6358 = vmul.f32 %v6273, 1.442695
  %v6359 = vpow.pop %v6358
  %v6360 = vmul.f32 %v6274, 1.442695
  %v6361 = vpow.pop %v6360
  %v6362 = vmul.f32 %v6275, 1.442695
  %v6363 = vpow.pop %v6362
  %v6364 = vmul.f32 %v6276, 1.442695
  %v6365 = vpow.pop %v6364
  %v6366 = vmul.f32 %v6277, 1.442695
  %v6367 = vpow.pop %v6366
  %v6368 = vmul.f32 %v6278, 1.442695
  %v6369 = vpow.pop %v6368
  %v6370 = vmul.f32 %v6279, 1.442695
  %v6371 = vpow.pop %v6370
  %v6372 = vmul.f32 %v6280, 1.442695
  %v6373 = vpow.pop %v6372
  %v6374 = vmul.f32 %v6281, 1.442695
  %v6375 = vpow.pop %v6374
  %v6376 = vmul.f32 %v6282, 1.442695
  %v6377 = vpow.pop %v6376
  %v6378 = vmul.f32 %v6283, 1.442695
  %v6379 = vpow.pop %v6378
  %v6380 = vmul.f32 %v6284, 1.442695
  %v6381 = vpow.pop %v6380
  %v6382 = vmul.f32 %v6285, 1.442695
  %v6383 = vpow.pop %v6382
  %v6384 = vmul.f32 %v6286, 1.442695
  %v6385 = vpow.pop %v6384
  %v6386 = vmul.f32 %v6287, 1.442695
  %v6387 = vpow.pop %v6386
  %v6388 = vmul.f32 %v6288, 1.442695
  %v6389 = vpow.pop %v6388
  %v6390 = vmul.f32 %v6289, 1.442695
  %v6391 = vpow.pop %v6390
  %v6392 = vmul.f32 %v6290, 1.442695
  %v6393 = vpow.pop %v6392
  %v6394 = vmul.f32 %v6291, 1.442695
  %v6395 = vpow.pop %v6394
  %v6396 = vmul.f32 %v6292, 1.442695
  %v6397 = vpow.pop %v6396
  %v6398 = vmul.f32 %v6293, 1.442695
  %v6399 = vpow.pop %v6398
  %v6400 = vmul.f32 %v6294, 1.442695
  %v6401 = vpow.pop %v6400
  %v6402 = vmul.f32 %v6295, 1.442695
  %v6403 = vpow.pop %v6402
  %v6404 = vmul.f32 %v6296, 1.442695
  %v6405 = vpow.pop %v6404
  %v6406 = vmul.f32 %v6297, 1.442695
  %v6407 = vpow.pop %v6406
  %v6408 = vmul.f32 %v6298, 1.442695
  %v6409 = vpow.pop %v6408
  %v6410 = vmul.f32 %v6299, 1.442695
  %v6411 = vpow.pop %v6410
  %v6412 = vmul.f32 %v6300, 1.442695
  %v6413 = vpow.pop %v6412
  %v6414 = vmul.f32 %v6301, 1.442695
  %v6415 = vpow.pop %v6414
  %v6416 = vmul.f32 %v6302, 1.442695
  %v6417 = vpow.pop %v6416
  %v6418 = vmul.f32 %v6303, 1.442695
  %v6419 = vpow.pop %v6418
  %v6420 = vmul.f32 %v6304, 1.442695
  %v6421 = vpow.pop %v6420
  %v6422 = vmul.f32 %v6305, 1.442695
  %v6423 = vpow.pop %v6422
  %v6424 = vmul.f32 %v6306, 1.442695
  %v6425 = vpow.pop %v6424
  %v6426 = vmul.f32 %v6307, 1.442695
  %v6427 = vpow.pop %v6426
  %v6428 = vmul.f32 %v6308, 1.442695
  %v6429 = vpow.pop %v6428
  %v6430 = vmul.f32 %v6309, 1.442695
  %v6431 = vpow.pop %v6430
  %v6432 = vmul.f32 %v6310, 1.442695
  %v6433 = vpow.pop %v6432
  %v6434 = vmul.f32 %v6311, 1.442695
  %v6435 = vpow.pop %v6434
  %v6436 = vmul.f32 %v6312, 1.442695
  %v6437 = vpow.pop %v6436
  %v6438 = vmul.f32 %v6313, 1.442695
  %v6439 = vpow.pop %v6438
  %v6440 = vmul.f32 %v6314, 1.442695
  %v6441 = vpow.pop %v6440
  %v6442 = vmul.f32 %v6315, 1.442695
  %v6443 = vpow.pop %v6442
  %6444 = vadd.xlane.f32.xlu0 %v6317
  %v6445 = vpop.xlane.xlu0 %6444
  %6446 = vadd.xlane.f32.xlu0 %v6319
  %v6447 = vpop.xlane.xlu0 %6446
  %6448 = vadd.xlane.f32.xlu0 %v6321
  %v6449 = vpop.xlane.xlu0 %6448
  %6450 = vadd.xlane.f32.xlu0 %v6323
  %v6451 = vpop.xlane.xlu0 %6450
  %6452 = vadd.xlane.f32.xlu0 %v6325
  %v6453 = vpop.xlane.xlu0 %6452
  %6454 = vadd.xlane.f32.xlu0 %v6327
  %v6455 = vpop.xlane.xlu0 %6454
  %6456 = vadd.xlane.f32.xlu0 %v6329
  %v6457 = vpop.xlane.xlu0 %6456
  %6458 = vadd.xlane.f32.xlu0 %v6331
  %v6459 = vpop.xlane.xlu0 %6458
  %6460 = vadd.xlane.f32.xlu0 %v6333
  %v6461 = vpop.xlane.xlu0 %6460
  %6462 = vadd.xlane.f32.xlu0 %v6335
  %v6463 = vpop.xlane.xlu0 %6462
  %6464 = vadd.xlane.f32.xlu0 %v6337
  %v6465 = vpop.xlane.xlu0 %6464
  %6466 = vadd.xlane.f32.xlu0 %v6339
  %v6467 = vpop.xlane.xlu0 %6466
  %6468 = vadd.xlane.f32.xlu0 %v6341
  %v6469 = vpop.xlane.xlu0 %6468
  %6470 = vadd.xlane.f32.xlu0 %v6343
  %v6471 = vpop.xlane.xlu0 %6470
  %6472 = vadd.xlane.f32.xlu0 %v6345
  %v6473 = vpop.xlane.xlu0 %6472
  %6474 = vadd.xlane.f32.xlu0 %v6347
  %v6475 = vpop.xlane.xlu0 %6474
  %6476 = vadd.xlane.f32.xlu0 %v6349
  %v6477 = vpop.xlane.xlu0 %6476
  %6478 = vadd.xlane.f32.xlu0 %v6351
  %v6479 = vpop.xlane.xlu0 %6478
  %6480 = vadd.xlane.f32.xlu0 %v6353
  %v6481 = vpop.xlane.xlu0 %6480
  %6482 = vadd.xlane.f32.xlu0 %v6355
  %v6483 = vpop.xlane.xlu0 %6482
  %6484 = vadd.xlane.f32.xlu0 %v6357
  %v6485 = vpop.xlane.xlu0 %6484
  %6486 = vadd.xlane.f32.xlu0 %v6359
  %v6487 = vpop.xlane.xlu0 %6486
  %6488 = vadd.xlane.f32.xlu0 %v6361
  %v6489 = vpop.xlane.xlu0 %6488
  %6490 = vadd.xlane.f32.xlu0 %v6363
  %v6491 = vpop.xlane.xlu0 %6490
  %6492 = vadd.xlane.f32.xlu0 %v6365
  %v6493 = vpop.xlane.xlu0 %6492
  %6494 = vadd.xlane.f32.xlu0 %v6367
  %v6495 = vpop.xlane.xlu0 %6494
  %6496 = vadd.xlane.f32.xlu0 %v6369
  %v6497 = vpop.xlane.xlu0 %6496
  %6498 = vadd.xlane.f32.xlu0 %v6371
  %v6499 = vpop.xlane.xlu0 %6498
  %6500 = vadd.xlane.f32.xlu0 %v6373
  %v6501 = vpop.xlane.xlu0 %6500
  %6502 = vadd.xlane.f32.xlu0 %v6375
  %v6503 = vpop.xlane.xlu0 %6502
  %6504 = vadd.xlane.f32.xlu0 %v6377
  %v6505 = vpop.xlane.xlu0 %6504
  %6506 = vadd.xlane.f32.xlu0 %v6379
  %v6507 = vpop.xlane.xlu0 %6506
  %6508 = vadd.xlane.f32.xlu0 %v6381
  %v6509 = vpop.xlane.xlu0 %6508
  %6510 = vadd.xlane.f32.xlu0 %v6383
  %v6511 = vpop.xlane.xlu0 %6510
  %6512 = vadd.xlane.f32.xlu0 %v6385
  %v6513 = vpop.xlane.xlu0 %6512
  %6514 = vadd.xlane.f32.xlu0 %v6387
  %v6515 = vpop.xlane.xlu0 %6514
  %6516 = vadd.xlane.f32.xlu0 %v6389
  %v6517 = vpop.xlane.xlu0 %6516
  %6518 = vadd.xlane.f32.xlu0 %v6391
  %v6519 = vpop.xlane.xlu0 %6518
  %6520 = vadd.xlane.f32.xlu0 %v6393
  %v6521 = vpop.xlane.xlu0 %6520
  %6522 = vadd.xlane.f32.xlu0 %v6395
  %v6523 = vpop.xlane.xlu0 %6522
  %6524 = vadd.xlane.f32.xlu0 %v6397
  %v6525 = vpop.xlane.xlu0 %6524
  %6526 = vadd.xlane.f32.xlu0 %v6399
  %v6527 = vpop.xlane.xlu0 %6526
  %6528 = vadd.xlane.f32.xlu0 %v6401
  %v6529 = vpop.xlane.xlu0 %6528
  %6530 = vadd.xlane.f32.xlu0 %v6403
  %v6531 = vpop.xlane.xlu0 %6530
  %6532 = vadd.xlane.f32.xlu0 %v6405
  %v6533 = vpop.xlane.xlu0 %6532
  %6534 = vadd.xlane.f32.xlu0 %v6407
  %v6535 = vpop.xlane.xlu0 %6534
  %6536 = vadd.xlane.f32.xlu0 %v6409
  %v6537 = vpop.xlane.xlu0 %6536
  %6538 = vadd.xlane.f32.xlu0 %v6411
  %v6539 = vpop.xlane.xlu0 %6538
  %6540 = vadd.xlane.f32.xlu0 %v6413
  %v6541 = vpop.xlane.xlu0 %6540
  %6542 = vadd.xlane.f32.xlu0 %v6415
  %v6543 = vpop.xlane.xlu0 %6542
  %6544 = vadd.xlane.f32.xlu0 %v6417
  %v6545 = vpop.xlane.xlu0 %6544
  %6546 = vadd.xlane.f32.xlu0 %v6419
  %v6547 = vpop.xlane.xlu0 %6546
  %6548 = vadd.xlane.f32.xlu0 %v6421
  %v6549 = vpop.xlane.xlu0 %6548
  %6550 = vadd.xlane.f32.xlu0 %v6423
  %v6551 = vpop.xlane.xlu0 %6550
  %6552 = vadd.xlane.f32.xlu0 %v6425
  %v6553 = vpop.xlane.xlu0 %6552
  %6554 = vadd.xlane.f32.xlu0 %v6427
  %v6555 = vpop.xlane.xlu0 %6554
  %6556 = vadd.xlane.f32.xlu0 %v6429
  %v6557 = vpop.xlane.xlu0 %6556
  %6558 = vadd.xlane.f32.xlu0 %v6431
  %v6559 = vpop.xlane.xlu0 %6558
  %6560 = vadd.xlane.f32.xlu0 %v6433
  %v6561 = vpop.xlane.xlu0 %6560
  %6562 = vadd.xlane.f32.xlu0 %v6435
  %v6563 = vpop.xlane.xlu0 %6562
  %6564 = vadd.xlane.f32.xlu0 %v6437
  %v6565 = vpop.xlane.xlu0 %6564
  %6566 = vadd.xlane.f32.xlu0 %v6439
  %v6567 = vpop.xlane.xlu0 %6566
  %6568 = vadd.xlane.f32.xlu0 %v6441
  %v6569 = vpop.xlane.xlu0 %6568
  %6570 = vadd.xlane.f32.xlu0 %v6443
  %v6571 = vpop.xlane.xlu0 %6570
  %v6572 = vlog2.pop %v6445
  %v6573 = vmul.f32 %v6572, 0.6931472
  %v6574 = vlog2.pop %v6447
  %v6575 = vmul.f32 %v6574, 0.6931472
  %v6576 = vlog2.pop %v6449
  %v6577 = vmul.f32 %v6576, 0.6931472
  %v6578 = vlog2.pop %v6451
  %v6579 = vmul.f32 %v6578, 0.6931472
  %v6580 = vlog2.pop %v6453
  %v6581 = vmul.f32 %v6580, 0.6931472
  %v6582 = vlog2.pop %v6455
  %v6583 = vmul.f32 %v6582, 0.6931472
  %v6584 = vlog2.pop %v6457
  %v6585 = vmul.f32 %v6584, 0.6931472
  %v6586 = vlog2.pop %v6459
  %v6587 = vmul.f32 %v6586, 0.6931472
  %v6588 = vlog2.pop %v6461
  %v6589 = vmul.f32 %v6588, 0.6931472
  %v6590 = vlog2.pop %v6463
  %v6591 = vmul.f32 %v6590, 0.6931472
  %v6592 = vlog2.pop %v6465
  %v6593 = vmul.f32 %v6592, 0.6931472
  %v6594 = vlog2.pop %v6467
  %v6595 = vmul.f32 %v6594, 0.6931472
  %v6596 = vlog2.pop %v6469
  %v6597 = vmul.f32 %v6596, 0.6931472
  %v6598 = vlog2.pop %v6471
  %v6599 = vmul.f32 %v6598, 0.6931472
  %v6600 = vlog2.pop %v6473
  %v6601 = vmul.f32 %v6600, 0.6931472
  %v6602 = vlog2.pop %v6475
  %v6603 = vmul.f32 %v6602, 0.6931472
  %v6604 = vlog2.pop %v6477
  %v6605 = vmul.f32 %v6604, 0.6931472
  %v6606 = vlog2.pop %v6479
  %v6607 = vmul.f32 %v6606, 0.6931472
  %v6608 = vlog2.pop %v6481
  %v6609 = vmul.f32 %v6608, 0.6931472
  %v6610 = vlog2.pop %v6483
  %v6611 = vmul.f32 %v6610, 0.6931472
  %v6612 = vlog2.pop %v6485
  %v6613 = vmul.f32 %v6612, 0.6931472
  %v6614 = vlog2.pop %v6487
  %v6615 = vmul.f32 %v6614, 0.6931472
  %v6616 = vlog2.pop %v6489
  %v6617 = vmul.f32 %v6616, 0.6931472
  %v6618 = vlog2.pop %v6491
  %v6619 = vmul.f32 %v6618, 0.6931472
  %v6620 = vlog2.pop %v6493
  %v6621 = vmul.f32 %v6620, 0.6931472
  %v6622 = vlog2.pop %v6495
  %v6623 = vmul.f32 %v6622, 0.6931472
  %v6624 = vlog2.pop %v6497
  %v6625 = vmul.f32 %v6624, 0.6931472
  %v6626 = vlog2.pop %v6499
  %v6627 = vmul.f32 %v6626, 0.6931472
  %v6628 = vlog2.pop %v6501
  %v6629 = vmul.f32 %v6628, 0.6931472
  %v6630 = vlog2.pop %v6503
  %v6631 = vmul.f32 %v6630, 0.6931472
  %v6632 = vlog2.pop %v6505
  %v6633 = vmul.f32 %v6632, 0.6931472
  %v6634 = vlog2.pop %v6507
  %v6635 = vmul.f32 %v6634, 0.6931472
  %v6636 = vlog2.pop %v6509
  %v6637 = vmul.f32 %v6636, 0.6931472
  %v6638 = vlog2.pop %v6511
  %v6639 = vmul.f32 %v6638, 0.6931472
  %v6640 = vlog2.pop %v6513
  %v6641 = vmul.f32 %v6640, 0.6931472
  %v6642 = vlog2.pop %v6515
  %v6643 = vmul.f32 %v6642, 0.6931472
  %v6644 = vlog2.pop %v6517
  %v6645 = vmul.f32 %v6644, 0.6931472
  %v6646 = vlog2.pop %v6519
  %v6647 = vmul.f32 %v6646, 0.6931472
  %v6648 = vlog2.pop %v6521
  %v6649 = vmul.f32 %v6648, 0.6931472
  %v6650 = vlog2.pop %v6523
  %v6651 = vmul.f32 %v6650, 0.6931472
  %v6652 = vlog2.pop %v6525
  %v6653 = vmul.f32 %v6652, 0.6931472
  %v6654 = vlog2.pop %v6527
  %v6655 = vmul.f32 %v6654, 0.6931472
  %v6656 = vlog2.pop %v6529
  %v6657 = vmul.f32 %v6656, 0.6931472
  %v6658 = vlog2.pop %v6531
  %v6659 = vmul.f32 %v6658, 0.6931472
  %v6660 = vlog2.pop %v6533
  %v6661 = vmul.f32 %v6660, 0.6931472
  %v6662 = vlog2.pop %v6535
  %v6663 = vmul.f32 %v6662, 0.6931472
  %v6664 = vlog2.pop %v6537
  %v6665 = vmul.f32 %v6664, 0.6931472
  %v6666 = vlog2.pop %v6539
  %v6667 = vmul.f32 %v6666, 0.6931472
  %v6668 = vlog2.pop %v6541
  %v6669 = vmul.f32 %v6668, 0.6931472
  %v6670 = vlog2.pop %v6543
  %v6671 = vmul.f32 %v6670, 0.6931472
  %v6672 = vlog2.pop %v6545
  %v6673 = vmul.f32 %v6672, 0.6931472
  %v6674 = vlog2.pop %v6547
  %v6675 = vmul.f32 %v6674, 0.6931472
  %v6676 = vlog2.pop %v6549
  %v6677 = vmul.f32 %v6676, 0.6931472
  %v6678 = vlog2.pop %v6551
  %v6679 = vmul.f32 %v6678, 0.6931472
  %v6680 = vlog2.pop %v6553
  %v6681 = vmul.f32 %v6680, 0.6931472
  %v6682 = vlog2.pop %v6555
  %v6683 = vmul.f32 %v6682, 0.6931472
  %v6684 = vlog2.pop %v6557
  %v6685 = vmul.f32 %v6684, 0.6931472
  %v6686 = vlog2.pop %v6559
  %v6687 = vmul.f32 %v6686, 0.6931472
  %v6688 = vlog2.pop %v6561
  %v6689 = vmul.f32 %v6688, 0.6931472
  %v6690 = vlog2.pop %v6563
  %v6691 = vmul.f32 %v6690, 0.6931472
  %v6692 = vlog2.pop %v6565
  %v6693 = vmul.f32 %v6692, 0.6931472
  %v6694 = vlog2.pop %v6567
  %v6695 = vmul.f32 %v6694, 0.6931472
  %v6696 = vlog2.pop %v6569
  %v6697 = vmul.f32 %v6696, 0.6931472
  %v6698 = vlog2.pop %v6571
  %v6699 = vmul.f32 %v6698, 0.6931472
  %v6700 = vsub.f32 %v6252, %v6573
  %v6701 = vsub.f32 %v6253, %v6575
  %v6702 = vsub.f32 %v6254, %v6577
  %v6703 = vsub.f32 %v6255, %v6579
  %v6704 = vsub.f32 %v6256, %v6581
  %v6705 = vsub.f32 %v6257, %v6583
  %v6706 = vsub.f32 %v6258, %v6585
  %v6707 = vsub.f32 %v6259, %v6587
  %v6708 = vsub.f32 %v6260, %v6589
  %v6709 = vsub.f32 %v6261, %v6591
  %v6710 = vsub.f32 %v6262, %v6593
  %v6711 = vsub.f32 %v6263, %v6595
  %v6712 = vsub.f32 %v6264, %v6597
  %v6713 = vsub.f32 %v6265, %v6599
  %v6714 = vsub.f32 %v6266, %v6601
  %v6715 = vsub.f32 %v6267, %v6603
  %v6716 = vsub.f32 %v6268, %v6605
  %v6717 = vsub.f32 %v6269, %v6607
  %v6718 = vsub.f32 %v6270, %v6609
  %v6719 = vsub.f32 %v6271, %v6611
  %v6720 = vsub.f32 %v6272, %v6613
  %v6721 = vsub.f32 %v6273, %v6615
  %v6722 = vsub.f32 %v6274, %v6617
  %v6723 = vsub.f32 %v6275, %v6619
  %v6724 = vsub.f32 %v6276, %v6621
  %v6725 = vsub.f32 %v6277, %v6623
  %v6726 = vsub.f32 %v6278, %v6625
  %v6727 = vsub.f32 %v6279, %v6627
  %v6728 = vsub.f32 %v6280, %v6629
  %v6729 = vsub.f32 %v6281, %v6631
  %v6730 = vsub.f32 %v6282, %v6633
  %v6731 = vsub.f32 %v6283, %v6635
  %v6732 = vsub.f32 %v6284, %v6637
  %v6733 = vsub.f32 %v6285, %v6639
  %v6734 = vsub.f32 %v6286, %v6641
  %v6735 = vsub.f32 %v6287, %v6643
  %v6736 = vsub.f32 %v6288, %v6645
  %v6737 = vsub.f32 %v6289, %v6647
  %v6738 = vsub.f32 %v6290, %v6649
  %v6739 = vsub.f32 %v6291, %v6651
  %v6740 = vsub.f32 %v6292, %v6653
  %v6741 = vsub.f32 %v6293, %v6655
  %v6742 = vsub.f32 %v6294, %v6657
  %v6743 = vsub.f32 %v6295, %v6659
  %v6744 = vsub.f32 %v6296, %v6661
  %v6745 = vsub.f32 %v6297, %v6663
  %v6746 = vsub.f32 %v6298, %v6665
  %v6747 = vsub.f32 %v6299, %v6667
  %v6748 = vsub.f32 %v6300, %v6669
  %v6749 = vsub.f32 %v6301, %v6671
  %v6750 = vsub.f32 %v6302, %v6673
  %v6751 = vsub.f32 %v6303, %v6675
  %v6752 = vsub.f32 %v6304, %v6677
  %v6753 = vsub.f32 %v6305, %v6679
  %v6754 = vsub.f32 %v6306, %v6681
  %v6755 = vsub.f32 %v6307, %v6683
  %v6756 = vsub.f32 %v6308, %v6685
  %v6757 = vsub.f32 %v6309, %v6687
  %v6758 = vsub.f32 %v6310, %v6689
  %v6759 = vsub.f32 %v6311, %v6691
  %v6760 = vsub.f32 %v6312, %v6693
  %v6761 = vsub.f32 %v6313, %v6695
  %v6762 = vsub.f32 %v6314, %v6697
  %v6763 = vsub.f32 %v6315, %v6699
  %6764 = vst [vmem:[%s5] sm:$0xff] %v6700
  %6765 = vst [vmem:[%s5 + $0x8] sm:$0xff] %v6701
  %6766 = vst [vmem:[%s5 + $0x10] sm:$0xff] %v6702
  %6767 = vst [vmem:[%s5 + $0x18] sm:$0xff] %v6703
  %6768 = vst [vmem:[%s5 + $0x20] sm:$0xff] %v6704
  %6769 = vst [vmem:[%s5 + $0x28] sm:$0xff] %v6705
  %6770 = vst [vmem:[%s5 + $0x30] sm:$0xff] %v6706
  %6771 = vst [vmem:[%s5 + $0x38] sm:$0xff] %v6707
  %6772 = vst [vmem:[%s5 + $0x40] sm:$0xff] %v6708
  %6773 = vst [vmem:[%s5 + $0x48] sm:$0xff] %v6709
  %6774 = vst [vmem:[%s5 + $0x50] sm:$0xff] %v6710
  %6775 = vst [vmem:[%s5 + $0x58] sm:$0xff] %v6711
  %6776 = vst [vmem:[%s5 + $0x60] sm:$0xff] %v6712
  %6777 = vst [vmem:[%s5 + $0x68] sm:$0xff] %v6713
  %6778 = vst [vmem:[%s5 + $0x70] sm:$0xff] %v6714
  %6779 = vst [vmem:[%s5 + $0x78] sm:$0xff] %v6715
  %6780 = vst [vmem:[%s5 + $0x80] sm:$0xff] %v6716
  %6781 = vst [vmem:[%s5 + $0x88] sm:$0xff] %v6717
  %6782 = vst [vmem:[%s5 + $0x90] sm:$0xff] %v6718
  %6783 = vst [vmem:[%s5 + $0x98] sm:$0xff] %v6719
  %6784 = vst [vmem:[%s5 + $0xa0] sm:$0xff] %v6720
  %6785 = vst [vmem:[%s5 + $0xa8] sm:$0xff] %v6721
  %6786 = vst [vmem:[%s5 + $0xb0] sm:$0xff] %v6722
  %6787 = vst [vmem:[%s5 + $0xb8] sm:$0xff] %v6723
  %6788 = vst [vmem:[%s5 + $0xc0] sm:$0xff] %v6724
  %6789 = vst [vmem:[%s5 + $0xc8] sm:$0xff] %v6725
  %6790 = vst [vmem:[%s5 + $0xd0] sm:$0xff] %v6726
  %6791 = vst [vmem:[%s5 + $0xd8] sm:$0xff] %v6727
  %6792 = vst [vmem:[%s5 + $0xe0] sm:$0xff] %v6728
  %6793 = vst [vmem:[%s5 + $0xe8] sm:$0xff] %v6729
  %6794 = vst [vmem:[%s5 + $0xf0] sm:$0xff] %v6730
  %6795 = vst [vmem:[%s5 + $0xf8] sm:$0xff] %v6731
  %6796 = vst [vmem:[%s5 + $0x100] sm:$0xff] %v6732
  %6797 = vst [vmem:[%s5 + $0x108] sm:$0xff] %v6733
  %6798 = vst [vmem:[%s5 + $0x110] sm:$0xff] %v6734
  %6799 = vst [vmem:[%s5 + $0x118] sm:$0xff] %v6735
  %6800 = vst [vmem:[%s5 + $0x120] sm:$0xff] %v6736
  %6801 = vst [vmem:[%s5 + $0x128] sm:$0xff] %v6737
  %6802 = vst [vmem:[%s5 + $0x130] sm:$0xff] %v6738
  %6803 = vst [vmem:[%s5 + $0x138] sm:$0xff] %v6739
  %6804 = vst [vmem:[%s5 + $0x140] sm:$0xff] %v6740
  %6805 = vst [vmem:[%s5 + $0x148] sm:$0xff] %v6741
  %6806 = vst [vmem:[%s5 + $0x150] sm:$0xff] %v6742
  %6807 = vst [vmem:[%s5 + $0x158] sm:$0xff] %v6743
  %6808 = vst [vmem:[%s5 + $0x160] sm:$0xff] %v6744
  %6809 = vst [vmem:[%s5 + $0x168] sm:$0xff] %v6745
  %6810 = vst [vmem:[%s5 + $0x170] sm:$0xff] %v6746
  %6811 = vst [vmem:[%s5 + $0x178] sm:$0xff] %v6747
  %6812 = vst [vmem:[%s5 + $0x180] sm:$0xff] %v6748
  %6813 = vst [vmem:[%s5 + $0x188] sm:$0xff] %v6749
  %6814 = vst [vmem:[%s5 + $0x190] sm:$0xff] %v6750
  %6815 = vst [vmem:[%s5 + $0x198] sm:$0xff] %v6751
  %6816 = vst [vmem:[%s5 + $0x1a0] sm:$0xff] %v6752
  %6817 = vst [vmem:[%s5 + $0x1a8] sm:$0xff] %v6753
  %6818 = vst [vmem:[%s5 + $0x1b0] sm:$0xff] %v6754
  %6819 = vst [vmem:[%s5 + $0x1b8] sm:$0xff] %v6755
  %6820 = vst [vmem:[%s5 + $0x1c0] sm:$0xff] %v6756
  %6821 = vst [vmem:[%s5 + $0x1c8] sm:$0xff] %v6757
  %6822 = vst [vmem:[%s5 + $0x1d0] sm:$0xff] %v6758
  %6823 = vst [vmem:[%s5 + $0x1d8] sm:$0xff] %v6759
  %6824 = vst [vmem:[%s5 + $0x1e0] sm:$0xff] %v6760
  %6825 = vst [vmem:[%s5 + $0x1e8] sm:$0xff] %v6761
  %6826 = vst [vmem:[%s5 + $0x1f0] sm:$0xff] %v6762
  %6827 = vst [vmem:[%s5 + $0x1f8] sm:$0xff] %v6763
  // Predicated region
  $region22: #{mlp_forward_padded.1} parent=0 // pred_check
    _
  $region23: #{mlp_forward_padded.1} parent=0 // pred_check_branch
    %6829 = sbr.rel (0) target = $region25
  $region24: #{mlp_forward_padded.1} parent=0 // pred_region
    _
  $region25: #{mlp_forward_padded.1} parent=0 // pred_fallthru
    _
  // Predicated region
  $region26: #{mlp_forward_padded.1} parent=0 // pred_check
    _
  $region27: #{mlp_forward_padded.1} parent=0 // pred_check_branch
    %6831 = sbr.rel (0) target = $region29
  $region28: #{mlp_forward_padded.1} parent=0 // pred_region
    _
  $region29: #{mlp_forward_padded.1} parent=0 // pred_fallthru
    _

</llo_original>
